<compile_context>
chip_gen: v7x
topology: tpu7x:2x2x1
jax: 0.10.0
libtpu: 0.0.40
codegen_flags: <defaults>
</compile_context>

<pallas_src>
import jax
import jax.numpy as jnp
from jax.experimental import pallas as pl
from jax.experimental.pallas import tpu as pltpu


def _iclassifier_kernel(x_ref, wc_ref, bc_ref, poolT_ref, wfT_ref, bf_ref,
                        featsT_ref, logitsT_ref, h_ref):
    """One grid step processes NB bags.

    x_ref:       (NB, C*HW)  VMEM  bags, channel-major flattened (free view of NCHW)
    wc_ref:      (F*C,)      SMEM  conv weight, wc_ref[f*C + c] = w_conv[c, f]
    bc_ref:      (F,)        SMEM  conv bias
    poolT_ref:   (F, F*HW)   VMEM  block-diagonal mean-pool matrix (transposed)
    wfT_ref:     (K, F)      VMEM  fc weight, transposed
    bf_ref:      (K, 1)      VMEM  fc bias (column)
    featsT_ref:  (1, F, NB)        transposed feats block (lane axis = bags)
    logitsT_ref: (1, K, NB)        transposed logits block
    h_ref:       (NB, F*HW)  VMEM  scratch: ReLU(conv) activation
    """
    chw = x_ref.shape[1]
    f_dim = bc_ref.shape[0]
    hw = poolT_ref.shape[1] // f_dim
    c_dim = chw // hw

    # 1x1 conv + bias + ReLU on the VPU: the contraction depth C is tiny, so
    # each output feature is C broadcast FMAs over the (NB, HW) tile instead
    # of a C-deep MXU matmul.  All slices are static and 128-lane aligned.
    for f in range(f_dim):
        acc = bc_ref[f] + wc_ref[f * c_dim] * x_ref[:, 0:hw]
        for c in range(1, c_dim):
            acc = acc + wc_ref[f * c_dim + c] * x_ref[:, c * hw:(c + 1) * hw]
        h_ref[:, f * hw:(f + 1) * hw] = jnp.maximum(acc, 0.0)

    # Global average pooling as ONE MXU matmul: contract the activation's
    # (F*HW) lane axis against the block-diagonal pooling matrix, yielding
    # featsT (F, NB) directly in the lane-dense transposed output layout.
    featsT = jax.lax.dot_general(
        poolT_ref[...], h_ref[...],
        dimension_numbers=(((1,), (1,)), ((), ())),
        preferred_element_type=jnp.float32)                         # (F, NB)
    featsT_ref[0] = featsT.astype(featsT_ref.dtype)

    # Batched fc for all NB bags in one matmul: (K, F) @ (F, NB) + (K, 1).
    logitsT = jnp.dot(wfT_ref[...], featsT,
                      preferred_element_type=jnp.float32) + bf_ref[...]
    logitsT_ref[0] = logitsT.astype(logitsT_ref.dtype)


def _vmem_limit_bytes():
    """~Half the physical VMEM: 64 MiB on v5e/v6e (128 MiB), 32 MiB on v7x (64 MiB)."""
    try:
        cap = int(pltpu.get_tpu_info().vmem_capacity_bytes)
    except Exception:
        cap = 64 * 1024 * 1024
    return int(min(max(cap // 2, 16 * 1024 * 1024), 96 * 1024 * 1024))


def iclassifier_forward(x_nchw, w_conv, b_conv, w_fc, b_fc, *, nb_max=128):
    """x_nchw: (N, C, H, W) float32.

    w_conv: (C, F)   1x1-conv weight of the synthetic feature extractor
    b_conv: (1, F)
    w_fc:   (F, K)   fc weight (feature_size x output_class)
    b_fc:   (1, K)
    returns (feats (N, F), logits (N, K))
    """
    N, C, H, W = x_nchw.shape
    HW = H * W
    F = w_conv.shape[1]
    K = w_fc.shape[1]

    # Up to 128 bags per grid step (lane-dense transposed outputs, few large
    # steps).  NB never exceeds N, so the only raggedness is a partial final
    # x block when N % NB != 0; its garbage columns are sliced off below.
    NB = min(nb_max, N)
    G = -(-N // NB)          # ceil-div

    # Free view: NCHW -> (N, C*H*W).  No transpose, no pad, no extra HBM pass.
    x = x_nchw.reshape(N, C * HW)

    # Tiny parameter re-layouts (done once, negligible).
    wc_flat = jnp.transpose(w_conv, (1, 0)).reshape(F * C)   # [f*C + c] = w_conv[c, f]
    bc = b_conv.reshape(F)
    wfT = jnp.transpose(w_fc, (1, 0))                         # (K, F)
    bf = b_fc.reshape(K, 1)                                   # (K, 1)

    # Block-diagonal mean-pooling matrix, transposed: poolT[g, f*HW+s] = (g==f)/HW.
    seg = jnp.arange(F * HW, dtype=jnp.int32) // HW
    poolT = (jnp.arange(F, dtype=jnp.int32)[:, None] == seg[None, :]).astype(
        jnp.float32) * (1.0 / HW)                              # (F, F*HW)

    featsT, logitsT = pl.pallas_call(
        _iclassifier_kernel,
        out_shape=(
            jax.ShapeDtypeStruct((G, F, NB), jnp.float32),
            jax.ShapeDtypeStruct((G, K, NB), jnp.float32),
        ),
        grid_spec=pltpu.PrefetchScalarGridSpec(
            num_scalar_prefetch=0,
            grid=(G,),
            in_specs=[
                pl.BlockSpec((NB, C * HW), lambda i: (i, 0)),           # x block (dense)
                pl.BlockSpec(memory_space=pltpu.MemorySpace.SMEM),      # conv weight scalars
                pl.BlockSpec(memory_space=pltpu.MemorySpace.SMEM),      # conv bias scalars
                pl.BlockSpec((F, F * HW), lambda i: (0, 0)),            # pooling matrix (resident)
                pl.BlockSpec((K, F), lambda i: (0, 0)),                 # fc weight (resident)
                pl.BlockSpec((K, 1), lambda i: (0, 0)),                 # fc bias (resident)
            ],
            out_specs=[
                pl.BlockSpec((1, F, NB), lambda i: (i, 0, 0)),
                pl.BlockSpec((1, K, NB), lambda i: (i, 0, 0)),
            ],
            scratch_shapes=[pltpu.VMEM((NB, F * HW), jnp.float32)],
        ),
        compiler_params=pltpu.CompilerParams(
            dimension_semantics=("parallel",),
            vmem_limit_bytes=_vmem_limit_bytes(),
        ),
    )(x, wc_flat, bc, poolT, wfT, bf)

    # Tiny (G, F, NB) -> (N, F) / (G, K, NB) -> (N, K) fix-up in the wrapper.
    # Keep the [:N] slice adjacent to the call: columns >= N of the final block
    # are computed from unspecified (out-of-bounds) x rows and must be dropped.
    feats = jnp.transpose(featsT, (0, 2, 1)).reshape(G * NB, F)[:N]
    logits = jnp.transpose(logitsT, (0, 2, 1)).reshape(G * NB, K)[:N]
    return feats, logits


def _reference(x_nchw, w_conv, b_conv, w_fc, b_fc):
    N, C, H, W = x_nchw.shape
    x = jnp.transpose(x_nchw, (0, 2, 3, 1)).reshape(N, H * W, C)
    h = jnp.maximum(jnp.einsum("nsc,cf->nsf", x, w_conv) + b_conv[None], 0.0)
    feats = jnp.mean(h, axis=1)
    c = feats @ w_fc + b_fc
    return feats, c


if __name__ == "__main__":
    # Small shapes consistent with the module's forward.
    N, C, H, W = 2, 4, 16, 16      # input images, NCHW
    feature_size = 32
    output_class = 4

    key = jax.random.PRNGKey(0)
    kx, kwc, kbc, kwf, kbf = jax.random.split(key, 5)

    x = jax.random.normal(kx, (N, C, H, W), dtype=jnp.float32)

    # Deterministic parameter init (synthetic, not a checkpoint load).
    w_conv = jax.random.normal(kwc, (C, feature_size), dtype=jnp.float32) * 0.1
    b_conv = jax.random.normal(kbc, (1, feature_size), dtype=jnp.float32) * 0.01
    w_fc = jax.random.normal(kwf, (feature_size, output_class),
                             dtype=jnp.float32) * 0.1
    b_fc = jax.random.normal(kbf, (1, output_class), dtype=jnp.float32) * 0.01

    feats, logits = jax.jit(iclassifier_forward)(x, w_conv, b_conv, w_fc, b_fc)
    jax.block_until_ready((feats, logits))

    ref_feats, ref_logits = _reference(x, w_conv, b_conv, w_fc, b_fc)
    assert feats.shape == (N, feature_size)
    assert logits.shape == (N, output_class)
    assert jnp.allclose(feats, ref_feats, atol=1e-4, rtol=1e-4)
    assert jnp.allclose(logits, ref_logits, atol=1e-4, rtol=1e-4)

    print("KERNEL_OK")
</pallas_src>

<mosaic_0001>
module attributes {stable_mosaic.version = 11 : i64} {
  func.func @_iclassifier_kernel(%arg0: i32, %arg1: memref<2x1024xf32, #tpu.memory_space<vmem>>, %arg2: memref<128xf32, #tpu.memory_space<smem>>, %arg3: memref<32xf32, #tpu.memory_space<smem>>, %arg4: memref<32x8192xf32, #tpu.memory_space<vmem>>, %arg5: memref<4x32xf32, #tpu.memory_space<vmem>>, %arg6: memref<4x1xf32, #tpu.memory_space<vmem>>, %arg7: memref<1x32x2xf32, #tpu.memory_space<vmem>>, %arg8: memref<1x4x2xf32, #tpu.memory_space<vmem>>, %arg9: memref<2x8192xf32, #tpu.memory_space<vmem>>) attributes {dimension_semantics = [#tpu.dimension_semantics<parallel>], iteration_bounds = array<i64: 1>, scalar_prefetch = 0 : i64, scratch_operands = 1 : i64, tpu.core_type = #tpu.core_type<tc>, window_params = [{transform_indices = @transform_0, window_bounds = array<i64: 2, 1024>}, {transform_indices = @transform_1, window_bounds = array<i64: 128>}, {transform_indices = @transform_2, window_bounds = array<i64: 32>}, {pipeline_mode = #tpu.pipeline_mode<synchronous>, transform_indices = @transform_3, window_bounds = array<i64: 32, 8192>}, {pipeline_mode = #tpu.pipeline_mode<synchronous>, transform_indices = @transform_4, window_bounds = array<i64: 4, 32>}, {pipeline_mode = #tpu.pipeline_mode<synchronous>, transform_indices = @transform_5, window_bounds = array<i64: 4, 1>}, {transform_indices = @transform_6, window_bounds = array<i64: 1, 32, 2>}, {transform_indices = @transform_7, window_bounds = array<i64: 1, 4, 2>}]} {
    %c0 = arith.constant 0 : index
    %0 = memref.load %arg3[%c0] : memref<32xf32, #tpu.memory_space<smem>>
    %c0_0 = arith.constant 0 : index
    %1 = memref.load %arg2[%c0_0] : memref<128xf32, #tpu.memory_space<smem>>
    %c0_1 = arith.constant 0 : index
    %c0_2 = arith.constant 0 : index
    %2 = vector.load %arg1[%c0_1, %c0_2] : memref<2x1024xf32, #tpu.memory_space<vmem>>, vector<2x256xf32>
    %3 = vector.broadcast %1 : f32 to vector<2x256xf32>
    %4 = arith.mulf %3, %2 : vector<2x256xf32>
    %5 = vector.broadcast %0 : f32 to vector<2x256xf32>
    %6 = arith.addf %5, %4 : vector<2x256xf32>
    %c1 = arith.constant 1 : index
    %7 = memref.load %arg2[%c1] : memref<128xf32, #tpu.memory_space<smem>>
    %c0_3 = arith.constant 0 : index
    %c256 = arith.constant 256 : index
    %8 = vector.load %arg1[%c0_3, %c256] : memref<2x1024xf32, #tpu.memory_space<vmem>>, vector<2x256xf32>
    %9 = vector.broadcast %7 : f32 to vector<2x256xf32>
    %10 = arith.mulf %9, %8 : vector<2x256xf32>
    %11 = arith.addf %6, %10 : vector<2x256xf32>
    %c2 = arith.constant 2 : index
    %12 = memref.load %arg2[%c2] : memref<128xf32, #tpu.memory_space<smem>>
    %c0_4 = arith.constant 0 : index
    %c512 = arith.constant 512 : index
    %13 = vector.load %arg1[%c0_4, %c512] : memref<2x1024xf32, #tpu.memory_space<vmem>>, vector<2x256xf32>
    %14 = vector.broadcast %12 : f32 to vector<2x256xf32>
    %15 = arith.mulf %14, %13 : vector<2x256xf32>
    %16 = arith.addf %11, %15 : vector<2x256xf32>
    %c3 = arith.constant 3 : index
    %17 = memref.load %arg2[%c3] : memref<128xf32, #tpu.memory_space<smem>>
    %c0_5 = arith.constant 0 : index
    %c768 = arith.constant 768 : index
    %18 = vector.load %arg1[%c0_5, %c768] : memref<2x1024xf32, #tpu.memory_space<vmem>>, vector<2x256xf32>
    %19 = vector.broadcast %17 : f32 to vector<2x256xf32>
    %20 = arith.mulf %19, %18 : vector<2x256xf32>
    %21 = arith.addf %16, %20 : vector<2x256xf32>
    %cst = arith.constant 0.000000e+00 : f32
    %22 = vector.broadcast %cst : f32 to vector<2x256xf32>
    %23 = arith.maximumf %21, %22 : vector<2x256xf32>
    %c0_6 = arith.constant 0 : index
    %c0_7 = arith.constant 0 : index
    %24 = vector.load %arg9[%c0_6, %c0_7] : memref<2x8192xf32, #tpu.memory_space<vmem>>, vector<2x256xf32>
    tpu.vector_store %arg9[%c0_6, %c0_7], %23 {strides = array<i32>} : memref<2x8192xf32, #tpu.memory_space<vmem>>, vector<2x256xf32>,
    %c1_8 = arith.constant 1 : index
    %25 = memref.load %arg3[%c1_8] : memref<32xf32, #tpu.memory_space<smem>>
    %c4 = arith.constant 4 : index
    %26 = memref.load %arg2[%c4] : memref<128xf32, #tpu.memory_space<smem>>
    %c0_9 = arith.constant 0 : index
    %c0_10 = arith.constant 0 : index
    %27 = vector.load %arg1[%c0_9, %c0_10] : memref<2x1024xf32, #tpu.memory_space<vmem>>, vector<2x256xf32>
    %28 = vector.broadcast %26 : f32 to vector<2x256xf32>
    %29 = arith.mulf %28, %27 : vector<2x256xf32>
    %30 = vector.broadcast %25 : f32 to vector<2x256xf32>
    %31 = arith.addf %30, %29 : vector<2x256xf32>
    %c5 = arith.constant 5 : index
    %32 = memref.load %arg2[%c5] : memref<128xf32, #tpu.memory_space<smem>>
    %c0_11 = arith.constant 0 : index
    %c256_12 = arith.constant 256 : index
    %33 = vector.load %arg1[%c0_11, %c256_12] : memref<2x1024xf32, #tpu.memory_space<vmem>>, vector<2x256xf32>
    %34 = vector.broadcast %32 : f32 to vector<2x256xf32>
    %35 = arith.mulf %34, %33 : vector<2x256xf32>
    %36 = arith.addf %31, %35 : vector<2x256xf32>
    %c6 = arith.constant 6 : index
    %37 = memref.load %arg2[%c6] : memref<128xf32, #tpu.memory_space<smem>>
    %c0_13 = arith.constant 0 : index
    %c512_14 = arith.constant 512 : index
    %38 = vector.load %arg1[%c0_13, %c512_14] : memref<2x1024xf32, #tpu.memory_space<vmem>>, vector<2x256xf32>
    %39 = vector.broadcast %37 : f32 to vector<2x256xf32>
    %40 = arith.mulf %39, %38 : vector<2x256xf32>
    %41 = arith.addf %36, %40 : vector<2x256xf32>
    %c7 = arith.constant 7 : index
    %42 = memref.load %arg2[%c7] : memref<128xf32, #tpu.memory_space<smem>>
    %c0_15 = arith.constant 0 : index
    %c768_16 = arith.constant 768 : index
    %43 = vector.load %arg1[%c0_15, %c768_16] : memref<2x1024xf32, #tpu.memory_space<vmem>>, vector<2x256xf32>
    %44 = vector.broadcast %42 : f32 to vector<2x256xf32>
    %45 = arith.mulf %44, %43 : vector<2x256xf32>
    %46 = arith.addf %41, %45 : vector<2x256xf32>
    %cst_17 = arith.constant 0.000000e+00 : f32
    %47 = vector.broadcast %cst_17 : f32 to vector<2x256xf32>
    %48 = arith.maximumf %46, %47 : vector<2x256xf32>
    %c0_18 = arith.constant 0 : index
    %c256_19 = arith.constant 256 : index
    %49 = vector.load %arg9[%c0_18, %c256_19] : memref<2x8192xf32, #tpu.memory_space<vmem>>, vector<2x256xf32>
    tpu.vector_store %arg9[%c0_18, %c256_19], %48 {strides = array<i32>} : memref<2x8192xf32, #tpu.memory_space<vmem>>, vector<2x256xf32>,
    %c2_20 = arith.constant 2 : index
    %50 = memref.load %arg3[%c2_20] : memref<32xf32, #tpu.memory_space<smem>>
    %c8 = arith.constant 8 : index
    %51 = memref.load %arg2[%c8] : memref<128xf32, #tpu.memory_space<smem>>
    %c0_21 = arith.constant 0 : index
    %c0_22 = arith.constant 0 : index
    %52 = vector.load %arg1[%c0_21, %c0_22] : memref<2x1024xf32, #tpu.memory_space<vmem>>, vector<2x256xf32>
    %53 = vector.broadcast %51 : f32 to vector<2x256xf32>
    %54 = arith.mulf %53, %52 : vector<2x256xf32>
    %55 = vector.broadcast %50 : f32 to vector<2x256xf32>
    %56 = arith.addf %55, %54 : vector<2x256xf32>
    %c9 = arith.constant 9 : index
    %57 = memref.load %arg2[%c9] : memref<128xf32, #tpu.memory_space<smem>>
    %c0_23 = arith.constant 0 : index
    %c256_24 = arith.constant 256 : index
    %58 = vector.load %arg1[%c0_23, %c256_24] : memref<2x1024xf32, #tpu.memory_space<vmem>>, vector<2x256xf32>
    %59 = vector.broadcast %57 : f32 to vector<2x256xf32>
    %60 = arith.mulf %59, %58 : vector<2x256xf32>
    %61 = arith.addf %56, %60 : vector<2x256xf32>
    %c10 = arith.constant 10 : index
    %62 = memref.load %arg2[%c10] : memref<128xf32, #tpu.memory_space<smem>>
    %c0_25 = arith.constant 0 : index
    %c512_26 = arith.constant 512 : index
    %63 = vector.load %arg1[%c0_25, %c512_26] : memref<2x1024xf32, #tpu.memory_space<vmem>>, vector<2x256xf32>
    %64 = vector.broadcast %62 : f32 to vector<2x256xf32>
    %65 = arith.mulf %64, %63 : vector<2x256xf32>
    %66 = arith.addf %61, %65 : vector<2x256xf32>
    %c11 = arith.constant 11 : index
    %67 = memref.load %arg2[%c11] : memref<128xf32, #tpu.memory_space<smem>>
    %c0_27 = arith.constant 0 : index
    %c768_28 = arith.constant 768 : index
    %68 = vector.load %arg1[%c0_27, %c768_28] : memref<2x1024xf32, #tpu.memory_space<vmem>>, vector<2x256xf32>
    %69 = vector.broadcast %67 : f32 to vector<2x256xf32>
    %70 = arith.mulf %69, %68 : vector<2x256xf32>
    %71 = arith.addf %66, %70 : vector<2x256xf32>
    %cst_29 = arith.constant 0.000000e+00 : f32
    %72 = vector.broadcast %cst_29 : f32 to vector<2x256xf32>
    %73 = arith.maximumf %71, %72 : vector<2x256xf32>
    %c0_30 = arith.constant 0 : index
    %c512_31 = arith.constant 512 : index
    %74 = vector.load %arg9[%c0_30, %c512_31] : memref<2x8192xf32, #tpu.memory_space<vmem>>, vector<2x256xf32>
    tpu.vector_store %arg9[%c0_30, %c512_31], %73 {strides = array<i32>} : memref<2x8192xf32, #tpu.memory_space<vmem>>, vector<2x256xf32>,
    %c3_32 = arith.constant 3 : index
    %75 = memref.load %arg3[%c3_32] : memref<32xf32, #tpu.memory_space<smem>>
    %c12 = arith.constant 12 : index
    %76 = memref.load %arg2[%c12] : memref<128xf32, #tpu.memory_space<smem>>
    %c0_33 = arith.constant 0 : index
    %c0_34 = arith.constant 0 : index
    %77 = vector.load %arg1[%c0_33, %c0_34] : memref<2x1024xf32, #tpu.memory_space<vmem>>, vector<2x256xf32>
    %78 = vector.broadcast %76 : f32 to vector<2x256xf32>
    %79 = arith.mulf %78, %77 : vector<2x256xf32>
    %80 = vector.broadcast %75 : f32 to vector<2x256xf32>
    %81 = arith.addf %80, %79 : vector<2x256xf32>
    %c13 = arith.constant 13 : index
    %82 = memref.load %arg2[%c13] : memref<128xf32, #tpu.memory_space<smem>>
    %c0_35 = arith.constant 0 : index
    %c256_36 = arith.constant 256 : index
    %83 = vector.load %arg1[%c0_35, %c256_36] : memref<2x1024xf32, #tpu.memory_space<vmem>>, vector<2x256xf32>
    %84 = vector.broadcast %82 : f32 to vector<2x256xf32>
    %85 = arith.mulf %84, %83 : vector<2x256xf32>
    %86 = arith.addf %81, %85 : vector<2x256xf32>
    %c14 = arith.constant 14 : index
    %87 = memref.load %arg2[%c14] : memref<128xf32, #tpu.memory_space<smem>>
    %c0_37 = arith.constant 0 : index
    %c512_38 = arith.constant 512 : index
    %88 = vector.load %arg1[%c0_37, %c512_38] : memref<2x1024xf32, #tpu.memory_space<vmem>>, vector<2x256xf32>
    %89 = vector.broadcast %87 : f32 to vector<2x256xf32>
    %90 = arith.mulf %89, %88 : vector<2x256xf32>
    %91 = arith.addf %86, %90 : vector<2x256xf32>
    %c15 = arith.constant 15 : index
    %92 = memref.load %arg2[%c15] : memref<128xf32, #tpu.memory_space<smem>>
    %c0_39 = arith.constant 0 : index
    %c768_40 = arith.constant 768 : index
    %93 = vector.load %arg1[%c0_39, %c768_40] : memref<2x1024xf32, #tpu.memory_space<vmem>>, vector<2x256xf32>
    %94 = vector.broadcast %92 : f32 to vector<2x256xf32>
    %95 = arith.mulf %94, %93 : vector<2x256xf32>
    %96 = arith.addf %91, %95 : vector<2x256xf32>
    %cst_41 = arith.constant 0.000000e+00 : f32
    %97 = vector.broadcast %cst_41 : f32 to vector<2x256xf32>
    %98 = arith.maximumf %96, %97 : vector<2x256xf32>
    %c0_42 = arith.constant 0 : index
    %c768_43 = arith.constant 768 : index
    %99 = vector.load %arg9[%c0_42, %c768_43] : memref<2x8192xf32, #tpu.memory_space<vmem>>, vector<2x256xf32>
    tpu.vector_store %arg9[%c0_42, %c768_43], %98 {strides = array<i32>} : memref<2x8192xf32, #tpu.memory_space<vmem>>, vector<2x256xf32>,
    %c4_44 = arith.constant 4 : index
    %100 = memref.load %arg3[%c4_44] : memref<32xf32, #tpu.memory_space<smem>>
    %c16 = arith.constant 16 : index
    %101 = memref.load %arg2[%c16] : memref<128xf32, #tpu.memory_space<smem>>
    %c0_45 = arith.constant 0 : index
    %c0_46 = arith.constant 0 : index
    %102 = vector.load %arg1[%c0_45, %c0_46] : memref<2x1024xf32, #tpu.memory_space<vmem>>, vector<2x256xf32>
    %103 = vector.broadcast %101 : f32 to vector<2x256xf32>
    %104 = arith.mulf %103, %102 : vector<2x256xf32>
    %105 = vector.broadcast %100 : f32 to vector<2x256xf32>
    %106 = arith.addf %105, %104 : vector<2x256xf32>
    %c17 = arith.constant 17 : index
    %107 = memref.load %arg2[%c17] : memref<128xf32, #tpu.memory_space<smem>>
    %c0_47 = arith.constant 0 : index
    %c256_48 = arith.constant 256 : index
    %108 = vector.load %arg1[%c0_47, %c256_48] : memref<2x1024xf32, #tpu.memory_space<vmem>>, vector<2x256xf32>
    %109 = vector.broadcast %107 : f32 to vector<2x256xf32>
    %110 = arith.mulf %109, %108 : vector<2x256xf32>
    %111 = arith.addf %106, %110 : vector<2x256xf32>
    %c18 = arith.constant 18 : index
    %112 = memref.load %arg2[%c18] : memref<128xf32, #tpu.memory_space<smem>>
    %c0_49 = arith.constant 0 : index
    %c512_50 = arith.constant 512 : index
    %113 = vector.load %arg1[%c0_49, %c512_50] : memref<2x1024xf32, #tpu.memory_space<vmem>>, vector<2x256xf32>
    %114 = vector.broadcast %112 : f32 to vector<2x256xf32>
    %115 = arith.mulf %114, %113 : vector<2x256xf32>
    %116 = arith.addf %111, %115 : vector<2x256xf32>
    %c19 = arith.constant 19 : index
    %117 = memref.load %arg2[%c19] : memref<128xf32, #tpu.memory_space<smem>>
    %c0_51 = arith.constant 0 : index
    %c768_52 = arith.constant 768 : index
    %118 = vector.load %arg1[%c0_51, %c768_52] : memref<2x1024xf32, #tpu.memory_space<vmem>>, vector<2x256xf32>
    %119 = vector.broadcast %117 : f32 to vector<2x256xf32>
    %120 = arith.mulf %119, %118 : vector<2x256xf32>
    %121 = arith.addf %116, %120 : vector<2x256xf32>
    %cst_53 = arith.constant 0.000000e+00 : f32
    %122 = vector.broadcast %cst_53 : f32 to vector<2x256xf32>
    %123 = arith.maximumf %121, %122 : vector<2x256xf32>
    %c0_54 = arith.constant 0 : index
    %c1024 = arith.constant 1024 : index
    %124 = vector.load %arg9[%c0_54, %c1024] : memref<2x8192xf32, #tpu.memory_space<vmem>>, vector<2x256xf32>
    tpu.vector_store %arg9[%c0_54, %c1024], %123 {strides = array<i32>} : memref<2x8192xf32, #tpu.memory_space<vmem>>, vector<2x256xf32>,
    %c5_55 = arith.constant 5 : index
    %125 = memref.load %arg3[%c5_55] : memref<32xf32, #tpu.memory_space<smem>>
    %c20 = arith.constant 20 : index
    %126 = memref.load %arg2[%c20] : memref<128xf32, #tpu.memory_space<smem>>
    %c0_56 = arith.constant 0 : index
    %c0_57 = arith.constant 0 : index
    %127 = vector.load %arg1[%c0_56, %c0_57] : memref<2x1024xf32, #tpu.memory_space<vmem>>, vector<2x256xf32>
    %128 = vector.broadcast %126 : f32 to vector<2x256xf32>
    %129 = arith.mulf %128, %127 : vector<2x256xf32>
    %130 = vector.broadcast %125 : f32 to vector<2x256xf32>
    %131 = arith.addf %130, %129 : vector<2x256xf32>
    %c21 = arith.constant 21 : index
    %132 = memref.load %arg2[%c21] : memref<128xf32, #tpu.memory_space<smem>>
    %c0_58 = arith.constant 0 : index
    %c256_59 = arith.constant 256 : index
    %133 = vector.load %arg1[%c0_58, %c256_59] : memref<2x1024xf32, #tpu.memory_space<vmem>>, vector<2x256xf32>
    %134 = vector.broadcast %132 : f32 to vector<2x256xf32>
    %135 = arith.mulf %134, %133 : vector<2x256xf32>
    %136 = arith.addf %131, %135 : vector<2x256xf32>
    %c22 = arith.constant 22 : index
    %137 = memref.load %arg2[%c22] : memref<128xf32, #tpu.memory_space<smem>>
    %c0_60 = arith.constant 0 : index
    %c512_61 = arith.constant 512 : index
    %138 = vector.load %arg1[%c0_60, %c512_61] : memref<2x1024xf32, #tpu.memory_space<vmem>>, vector<2x256xf32>
    %139 = vector.broadcast %137 : f32 to vector<2x256xf32>
    %140 = arith.mulf %139, %138 : vector<2x256xf32>
    %141 = arith.addf %136, %140 : vector<2x256xf32>
    %c23 = arith.constant 23 : index
    %142 = memref.load %arg2[%c23] : memref<128xf32, #tpu.memory_space<smem>>
    %c0_62 = arith.constant 0 : index
    %c768_63 = arith.constant 768 : index
    %143 = vector.load %arg1[%c0_62, %c768_63] : memref<2x1024xf32, #tpu.memory_space<vmem>>, vector<2x256xf32>
    %144 = vector.broadcast %142 : f32 to vector<2x256xf32>
    %145 = arith.mulf %144, %143 : vector<2x256xf32>
    %146 = arith.addf %141, %145 : vector<2x256xf32>
    %cst_64 = arith.constant 0.000000e+00 : f32
    %147 = vector.broadcast %cst_64 : f32 to vector<2x256xf32>
    %148 = arith.maximumf %146, %147 : vector<2x256xf32>
    %c0_65 = arith.constant 0 : index
    %c1280 = arith.constant 1280 : index
    %149 = vector.load %arg9[%c0_65, %c1280] : memref<2x8192xf32, #tpu.memory_space<vmem>>, vector<2x256xf32>
    tpu.vector_store %arg9[%c0_65, %c1280], %148 {strides = array<i32>} : memref<2x8192xf32, #tpu.memory_space<vmem>>, vector<2x256xf32>,
    %c6_66 = arith.constant 6 : index
    %150 = memref.load %arg3[%c6_66] : memref<32xf32, #tpu.memory_space<smem>>
    %c24 = arith.constant 24 : index
    %151 = memref.load %arg2[%c24] : memref<128xf32, #tpu.memory_space<smem>>
    %c0_67 = arith.constant 0 : index
    %c0_68 = arith.constant 0 : index
    %152 = vector.load %arg1[%c0_67, %c0_68] : memref<2x1024xf32, #tpu.memory_space<vmem>>, vector<2x256xf32>
    %153 = vector.broadcast %151 : f32 to vector<2x256xf32>
    %154 = arith.mulf %153, %152 : vector<2x256xf32>
    %155 = vector.broadcast %150 : f32 to vector<2x256xf32>
    %156 = arith.addf %155, %154 : vector<2x256xf32>
    %c25 = arith.constant 25 : index
    %157 = memref.load %arg2[%c25] : memref<128xf32, #tpu.memory_space<smem>>
    %c0_69 = arith.constant 0 : index
    %c256_70 = arith.constant 256 : index
    %158 = vector.load %arg1[%c0_69, %c256_70] : memref<2x1024xf32, #tpu.memory_space<vmem>>, vector<2x256xf32>
    %159 = vector.broadcast %157 : f32 to vector<2x256xf32>
    %160 = arith.mulf %159, %158 : vector<2x256xf32>
    %161 = arith.addf %156, %160 : vector<2x256xf32>
    %c26 = arith.constant 26 : index
    %162 = memref.load %arg2[%c26] : memref<128xf32, #tpu.memory_space<smem>>
    %c0_71 = arith.constant 0 : index
    %c512_72 = arith.constant 512 : index
    %163 = vector.load %arg1[%c0_71, %c512_72] : memref<2x1024xf32, #tpu.memory_space<vmem>>, vector<2x256xf32>
    %164 = vector.broadcast %162 : f32 to vector<2x256xf32>
    %165 = arith.mulf %164, %163 : vector<2x256xf32>
    %166 = arith.addf %161, %165 : vector<2x256xf32>
    %c27 = arith.constant 27 : index
    %167 = memref.load %arg2[%c27] : memref<128xf32, #tpu.memory_space<smem>>
    %c0_73 = arith.constant 0 : index
    %c768_74 = arith.constant 768 : index
    %168 = vector.load %arg1[%c0_73, %c768_74] : memref<2x1024xf32, #tpu.memory_space<vmem>>, vector<2x256xf32>
    %169 = vector.broadcast %167 : f32 to vector<2x256xf32>
    %170 = arith.mulf %169, %168 : vector<2x256xf32>
    %171 = arith.addf %166, %170 : vector<2x256xf32>
    %cst_75 = arith.constant 0.000000e+00 : f32
    %172 = vector.broadcast %cst_75 : f32 to vector<2x256xf32>
    %173 = arith.maximumf %171, %172 : vector<2x256xf32>
    %c0_76 = arith.constant 0 : index
    %c1536 = arith.constant 1536 : index
    %174 = vector.load %arg9[%c0_76, %c1536] : memref<2x8192xf32, #tpu.memory_space<vmem>>, vector<2x256xf32>
    tpu.vector_store %arg9[%c0_76, %c1536], %173 {strides = array<i32>} : memref<2x8192xf32, #tpu.memory_space<vmem>>, vector<2x256xf32>,
    %c7_77 = arith.constant 7 : index
    %175 = memref.load %arg3[%c7_77] : memref<32xf32, #tpu.memory_space<smem>>
    %c28 = arith.constant 28 : index
    %176 = memref.load %arg2[%c28] : memref<128xf32, #tpu.memory_space<smem>>
    %c0_78 = arith.constant 0 : index
    %c0_79 = arith.constant 0 : index
    %177 = vector.load %arg1[%c0_78, %c0_79] : memref<2x1024xf32, #tpu.memory_space<vmem>>, vector<2x256xf32>
    %178 = vector.broadcast %176 : f32 to vector<2x256xf32>
    %179 = arith.mulf %178, %177 : vector<2x256xf32>
    %180 = vector.broadcast %175 : f32 to vector<2x256xf32>
    %181 = arith.addf %180, %179 : vector<2x256xf32>
    %c29 = arith.constant 29 : index
    %182 = memref.load %arg2[%c29] : memref<128xf32, #tpu.memory_space<smem>>
    %c0_80 = arith.constant 0 : index
    %c256_81 = arith.constant 256 : index
    %183 = vector.load %arg1[%c0_80, %c256_81] : memref<2x1024xf32, #tpu.memory_space<vmem>>, vector<2x256xf32>
    %184 = vector.broadcast %182 : f32 to vector<2x256xf32>
    %185 = arith.mulf %184, %183 : vector<2x256xf32>
    %186 = arith.addf %181, %185 : vector<2x256xf32>
    %c30 = arith.constant 30 : index
    %187 = memref.load %arg2[%c30] : memref<128xf32, #tpu.memory_space<smem>>
    %c0_82 = arith.constant 0 : index
    %c512_83 = arith.constant 512 : index
    %188 = vector.load %arg1[%c0_82, %c512_83] : memref<2x1024xf32, #tpu.memory_space<vmem>>, vector<2x256xf32>
    %189 = vector.broadcast %187 : f32 to vector<2x256xf32>
    %190 = arith.mulf %189, %188 : vector<2x256xf32>
    %191 = arith.addf %186, %190 : vector<2x256xf32>
    %c31 = arith.constant 31 : index
    %192 = memref.load %arg2[%c31] : memref<128xf32, #tpu.memory_space<smem>>
    %c0_84 = arith.constant 0 : index
    %c768_85 = arith.constant 768 : index
    %193 = vector.load %arg1[%c0_84, %c768_85] : memref<2x1024xf32, #tpu.memory_space<vmem>>, vector<2x256xf32>
    %194 = vector.broadcast %192 : f32 to vector<2x256xf32>
    %195 = arith.mulf %194, %193 : vector<2x256xf32>
    %196 = arith.addf %191, %195 : vector<2x256xf32>
    %cst_86 = arith.constant 0.000000e+00 : f32
    %197 = vector.broadcast %cst_86 : f32 to vector<2x256xf32>
    %198 = arith.maximumf %196, %197 : vector<2x256xf32>
    %c0_87 = arith.constant 0 : index
    %c1792 = arith.constant 1792 : index
    %199 = vector.load %arg9[%c0_87, %c1792] : memref<2x8192xf32, #tpu.memory_space<vmem>>, vector<2x256xf32>
    tpu.vector_store %arg9[%c0_87, %c1792], %198 {strides = array<i32>} : memref<2x8192xf32, #tpu.memory_space<vmem>>, vector<2x256xf32>,
    %c8_88 = arith.constant 8 : index
    %200 = memref.load %arg3[%c8_88] : memref<32xf32, #tpu.memory_space<smem>>
    %c32 = arith.constant 32 : index
    %201 = memref.load %arg2[%c32] : memref<128xf32, #tpu.memory_space<smem>>
    %c0_89 = arith.constant 0 : index
    %c0_90 = arith.constant 0 : index
    %202 = vector.load %arg1[%c0_89, %c0_90] : memref<2x1024xf32, #tpu.memory_space<vmem>>, vector<2x256xf32>
    %203 = vector.broadcast %201 : f32 to vector<2x256xf32>
    %204 = arith.mulf %203, %202 : vector<2x256xf32>
    %205 = vector.broadcast %200 : f32 to vector<2x256xf32>
    %206 = arith.addf %205, %204 : vector<2x256xf32>
    %c33 = arith.constant 33 : index
    %207 = memref.load %arg2[%c33] : memref<128xf32, #tpu.memory_space<smem>>
    %c0_91 = arith.constant 0 : index
    %c256_92 = arith.constant 256 : index
    %208 = vector.load %arg1[%c0_91, %c256_92] : memref<2x1024xf32, #tpu.memory_space<vmem>>, vector<2x256xf32>
    %209 = vector.broadcast %207 : f32 to vector<2x256xf32>
    %210 = arith.mulf %209, %208 : vector<2x256xf32>
    %211 = arith.addf %206, %210 : vector<2x256xf32>
    %c34 = arith.constant 34 : index
    %212 = memref.load %arg2[%c34] : memref<128xf32, #tpu.memory_space<smem>>
    %c0_93 = arith.constant 0 : index
    %c512_94 = arith.constant 512 : index
    %213 = vector.load %arg1[%c0_93, %c512_94] : memref<2x1024xf32, #tpu.memory_space<vmem>>, vector<2x256xf32>
    %214 = vector.broadcast %212 : f32 to vector<2x256xf32>
    %215 = arith.mulf %214, %213 : vector<2x256xf32>
    %216 = arith.addf %211, %215 : vector<2x256xf32>
    %c35 = arith.constant 35 : index
    %217 = memref.load %arg2[%c35] : memref<128xf32, #tpu.memory_space<smem>>
    %c0_95 = arith.constant 0 : index
    %c768_96 = arith.constant 768 : index
    %218 = vector.load %arg1[%c0_95, %c768_96] : memref<2x1024xf32, #tpu.memory_space<vmem>>, vector<2x256xf32>
    %219 = vector.broadcast %217 : f32 to vector<2x256xf32>
    %220 = arith.mulf %219, %218 : vector<2x256xf32>
    %221 = arith.addf %216, %220 : vector<2x256xf32>
    %cst_97 = arith.constant 0.000000e+00 : f32
    %222 = vector.broadcast %cst_97 : f32 to vector<2x256xf32>
    %223 = arith.maximumf %221, %222 : vector<2x256xf32>
    %c0_98 = arith.constant 0 : index
    %c2048 = arith.constant 2048 : index
    %224 = vector.load %arg9[%c0_98, %c2048] : memref<2x8192xf32, #tpu.memory_space<vmem>>, vector<2x256xf32>
    tpu.vector_store %arg9[%c0_98, %c2048], %223 {strides = array<i32>} : memref<2x8192xf32, #tpu.memory_space<vmem>>, vector<2x256xf32>,
    %c9_99 = arith.constant 9 : index
    %225 = memref.load %arg3[%c9_99] : memref<32xf32, #tpu.memory_space<smem>>
    %c36 = arith.constant 36 : index
    %226 = memref.load %arg2[%c36] : memref<128xf32, #tpu.memory_space<smem>>
    %c0_100 = arith.constant 0 : index
    %c0_101 = arith.constant 0 : index
    %227 = vector.load %arg1[%c0_100, %c0_101] : memref<2x1024xf32, #tpu.memory_space<vmem>>, vector<2x256xf32>
    %228 = vector.broadcast %226 : f32 to vector<2x256xf32>
    %229 = arith.mulf %228, %227 : vector<2x256xf32>
    %230 = vector.broadcast %225 : f32 to vector<2x256xf32>
    %231 = arith.addf %230, %229 : vector<2x256xf32>
    %c37 = arith.constant 37 : index
    %232 = memref.load %arg2[%c37] : memref<128xf32, #tpu.memory_space<smem>>
    %c0_102 = arith.constant 0 : index
    %c256_103 = arith.constant 256 : index
    %233 = vector.load %arg1[%c0_102, %c256_103] : memref<2x1024xf32, #tpu.memory_space<vmem>>, vector<2x256xf32>
    %234 = vector.broadcast %232 : f32 to vector<2x256xf32>
    %235 = arith.mulf %234, %233 : vector<2x256xf32>
    %236 = arith.addf %231, %235 : vector<2x256xf32>
    %c38 = arith.constant 38 : index
    %237 = memref.load %arg2[%c38] : memref<128xf32, #tpu.memory_space<smem>>
    %c0_104 = arith.constant 0 : index
    %c512_105 = arith.constant 512 : index
    %238 = vector.load %arg1[%c0_104, %c512_105] : memref<2x1024xf32, #tpu.memory_space<vmem>>, vector<2x256xf32>
    %239 = vector.broadcast %237 : f32 to vector<2x256xf32>
    %240 = arith.mulf %239, %238 : vector<2x256xf32>
    %241 = arith.addf %236, %240 : vector<2x256xf32>
    %c39 = arith.constant 39 : index
    %242 = memref.load %arg2[%c39] : memref<128xf32, #tpu.memory_space<smem>>
    %c0_106 = arith.constant 0 : index
    %c768_107 = arith.constant 768 : index
    %243 = vector.load %arg1[%c0_106, %c768_107] : memref<2x1024xf32, #tpu.memory_space<vmem>>, vector<2x256xf32>
    %244 = vector.broadcast %242 : f32 to vector<2x256xf32>
    %245 = arith.mulf %244, %243 : vector<2x256xf32>
    %246 = arith.addf %241, %245 : vector<2x256xf32>
    %cst_108 = arith.constant 0.000000e+00 : f32
    %247 = vector.broadcast %cst_108 : f32 to vector<2x256xf32>
    %248 = arith.maximumf %246, %247 : vector<2x256xf32>
    %c0_109 = arith.constant 0 : index
    %c2304 = arith.constant 2304 : index
    %249 = vector.load %arg9[%c0_109, %c2304] : memref<2x8192xf32, #tpu.memory_space<vmem>>, vector<2x256xf32>
    tpu.vector_store %arg9[%c0_109, %c2304], %248 {strides = array<i32>} : memref<2x8192xf32, #tpu.memory_space<vmem>>, vector<2x256xf32>,
    %c10_110 = arith.constant 10 : index
    %250 = memref.load %arg3[%c10_110] : memref<32xf32, #tpu.memory_space<smem>>
    %c40 = arith.constant 40 : index
    %251 = memref.load %arg2[%c40] : memref<128xf32, #tpu.memory_space<smem>>
    %c0_111 = arith.constant 0 : index
    %c0_112 = arith.constant 0 : index
    %252 = vector.load %arg1[%c0_111, %c0_112] : memref<2x1024xf32, #tpu.memory_space<vmem>>, vector<2x256xf32>
    %253 = vector.broadcast %251 : f32 to vector<2x256xf32>
    %254 = arith.mulf %253, %252 : vector<2x256xf32>
    %255 = vector.broadcast %250 : f32 to vector<2x256xf32>
    %256 = arith.addf %255, %254 : vector<2x256xf32>
    %c41 = arith.constant 41 : index
    %257 = memref.load %arg2[%c41] : memref<128xf32, #tpu.memory_space<smem>>
    %c0_113 = arith.constant 0 : index
    %c256_114 = arith.constant 256 : index
    %258 = vector.load %arg1[%c0_113, %c256_114] : memref<2x1024xf32, #tpu.memory_space<vmem>>, vector<2x256xf32>
    %259 = vector.broadcast %257 : f32 to vector<2x256xf32>
    %260 = arith.mulf %259, %258 : vector<2x256xf32>
    %261 = arith.addf %256, %260 : vector<2x256xf32>
    %c42 = arith.constant 42 : index
    %262 = memref.load %arg2[%c42] : memref<128xf32, #tpu.memory_space<smem>>
    %c0_115 = arith.constant 0 : index
    %c512_116 = arith.constant 512 : index
    %263 = vector.load %arg1[%c0_115, %c512_116] : memref<2x1024xf32, #tpu.memory_space<vmem>>, vector<2x256xf32>
    %264 = vector.broadcast %262 : f32 to vector<2x256xf32>
    %265 = arith.mulf %264, %263 : vector<2x256xf32>
    %266 = arith.addf %261, %265 : vector<2x256xf32>
    %c43 = arith.constant 43 : index
    %267 = memref.load %arg2[%c43] : memref<128xf32, #tpu.memory_space<smem>>
    %c0_117 = arith.constant 0 : index
    %c768_118 = arith.constant 768 : index
    %268 = vector.load %arg1[%c0_117, %c768_118] : memref<2x1024xf32, #tpu.memory_space<vmem>>, vector<2x256xf32>
    %269 = vector.broadcast %267 : f32 to vector<2x256xf32>
    %270 = arith.mulf %269, %268 : vector<2x256xf32>
    %271 = arith.addf %266, %270 : vector<2x256xf32>
    %cst_119 = arith.constant 0.000000e+00 : f32
    %272 = vector.broadcast %cst_119 : f32 to vector<2x256xf32>
    %273 = arith.maximumf %271, %272 : vector<2x256xf32>
    %c0_120 = arith.constant 0 : index
    %c2560 = arith.constant 2560 : index
    %274 = vector.load %arg9[%c0_120, %c2560] : memref<2x8192xf32, #tpu.memory_space<vmem>>, vector<2x256xf32>
    tpu.vector_store %arg9[%c0_120, %c2560], %273 {strides = array<i32>} : memref<2x8192xf32, #tpu.memory_space<vmem>>, vector<2x256xf32>,
    %c11_121 = arith.constant 11 : index
    %275 = memref.load %arg3[%c11_121] : memref<32xf32, #tpu.memory_space<smem>>
    %c44 = arith.constant 44 : index
    %276 = memref.load %arg2[%c44] : memref<128xf32, #tpu.memory_space<smem>>
    %c0_122 = arith.constant 0 : index
    %c0_123 = arith.constant 0 : index
    %277 = vector.load %arg1[%c0_122, %c0_123] : memref<2x1024xf32, #tpu.memory_space<vmem>>, vector<2x256xf32>
    %278 = vector.broadcast %276 : f32 to vector<2x256xf32>
    %279 = arith.mulf %278, %277 : vector<2x256xf32>
    %280 = vector.broadcast %275 : f32 to vector<2x256xf32>
    %281 = arith.addf %280, %279 : vector<2x256xf32>
    %c45 = arith.constant 45 : index
    %282 = memref.load %arg2[%c45] : memref<128xf32, #tpu.memory_space<smem>>
    %c0_124 = arith.constant 0 : index
    %c256_125 = arith.constant 256 : index
    %283 = vector.load %arg1[%c0_124, %c256_125] : memref<2x1024xf32, #tpu.memory_space<vmem>>, vector<2x256xf32>
    %284 = vector.broadcast %282 : f32 to vector<2x256xf32>
    %285 = arith.mulf %284, %283 : vector<2x256xf32>
    %286 = arith.addf %281, %285 : vector<2x256xf32>
    %c46 = arith.constant 46 : index
    %287 = memref.load %arg2[%c46] : memref<128xf32, #tpu.memory_space<smem>>
    %c0_126 = arith.constant 0 : index
    %c512_127 = arith.constant 512 : index
    %288 = vector.load %arg1[%c0_126, %c512_127] : memref<2x1024xf32, #tpu.memory_space<vmem>>, vector<2x256xf32>
    %289 = vector.broadcast %287 : f32 to vector<2x256xf32>
    %290 = arith.mulf %289, %288 : vector<2x256xf32>
    %291 = arith.addf %286, %290 : vector<2x256xf32>
    %c47 = arith.constant 47 : index
    %292 = memref.load %arg2[%c47] : memref<128xf32, #tpu.memory_space<smem>>
    %c0_128 = arith.constant 0 : index
    %c768_129 = arith.constant 768 : index
    %293 = vector.load %arg1[%c0_128, %c768_129] : memref<2x1024xf32, #tpu.memory_space<vmem>>, vector<2x256xf32>
    %294 = vector.broadcast %292 : f32 to vector<2x256xf32>
    %295 = arith.mulf %294, %293 : vector<2x256xf32>
    %296 = arith.addf %291, %295 : vector<2x256xf32>
    %cst_130 = arith.constant 0.000000e+00 : f32
    %297 = vector.broadcast %cst_130 : f32 to vector<2x256xf32>
    %298 = arith.maximumf %296, %297 : vector<2x256xf32>
    %c0_131 = arith.constant 0 : index
    %c2816 = arith.constant 2816 : index
    %299 = vector.load %arg9[%c0_131, %c2816] : memref<2x8192xf32, #tpu.memory_space<vmem>>, vector<2x256xf32>
    tpu.vector_store %arg9[%c0_131, %c2816], %298 {strides = array<i32>} : memref<2x8192xf32, #tpu.memory_space<vmem>>, vector<2x256xf32>,
    %c12_132 = arith.constant 12 : index
    %300 = memref.load %arg3[%c12_132] : memref<32xf32, #tpu.memory_space<smem>>
    %c48 = arith.constant 48 : index
    %301 = memref.load %arg2[%c48] : memref<128xf32, #tpu.memory_space<smem>>
    %c0_133 = arith.constant 0 : index
    %c0_134 = arith.constant 0 : index
    %302 = vector.load %arg1[%c0_133, %c0_134] : memref<2x1024xf32, #tpu.memory_space<vmem>>, vector<2x256xf32>
    %303 = vector.broadcast %301 : f32 to vector<2x256xf32>
    %304 = arith.mulf %303, %302 : vector<2x256xf32>
    %305 = vector.broadcast %300 : f32 to vector<2x256xf32>
    %306 = arith.addf %305, %304 : vector<2x256xf32>
    %c49 = arith.constant 49 : index
    %307 = memref.load %arg2[%c49] : memref<128xf32, #tpu.memory_space<smem>>
    %c0_135 = arith.constant 0 : index
    %c256_136 = arith.constant 256 : index
    %308 = vector.load %arg1[%c0_135, %c256_136] : memref<2x1024xf32, #tpu.memory_space<vmem>>, vector<2x256xf32>
    %309 = vector.broadcast %307 : f32 to vector<2x256xf32>
    %310 = arith.mulf %309, %308 : vector<2x256xf32>
    %311 = arith.addf %306, %310 : vector<2x256xf32>
    %c50 = arith.constant 50 : index
    %312 = memref.load %arg2[%c50] : memref<128xf32, #tpu.memory_space<smem>>
    %c0_137 = arith.constant 0 : index
    %c512_138 = arith.constant 512 : index
    %313 = vector.load %arg1[%c0_137, %c512_138] : memref<2x1024xf32, #tpu.memory_space<vmem>>, vector<2x256xf32>
    %314 = vector.broadcast %312 : f32 to vector<2x256xf32>
    %315 = arith.mulf %314, %313 : vector<2x256xf32>
    %316 = arith.addf %311, %315 : vector<2x256xf32>
    %c51 = arith.constant 51 : index
    %317 = memref.load %arg2[%c51] : memref<128xf32, #tpu.memory_space<smem>>
    %c0_139 = arith.constant 0 : index
    %c768_140 = arith.constant 768 : index
    %318 = vector.load %arg1[%c0_139, %c768_140] : memref<2x1024xf32, #tpu.memory_space<vmem>>, vector<2x256xf32>
    %319 = vector.broadcast %317 : f32 to vector<2x256xf32>
    %320 = arith.mulf %319, %318 : vector<2x256xf32>
    %321 = arith.addf %316, %320 : vector<2x256xf32>
    %cst_141 = arith.constant 0.000000e+00 : f32
    %322 = vector.broadcast %cst_141 : f32 to vector<2x256xf32>
    %323 = arith.maximumf %321, %322 : vector<2x256xf32>
    %c0_142 = arith.constant 0 : index
    %c3072 = arith.constant 3072 : index
    %324 = vector.load %arg9[%c0_142, %c3072] : memref<2x8192xf32, #tpu.memory_space<vmem>>, vector<2x256xf32>
    tpu.vector_store %arg9[%c0_142, %c3072], %323 {strides = array<i32>} : memref<2x8192xf32, #tpu.memory_space<vmem>>, vector<2x256xf32>,
    %c13_143 = arith.constant 13 : index
    %325 = memref.load %arg3[%c13_143] : memref<32xf32, #tpu.memory_space<smem>>
    %c52 = arith.constant 52 : index
    %326 = memref.load %arg2[%c52] : memref<128xf32, #tpu.memory_space<smem>>
    %c0_144 = arith.constant 0 : index
    %c0_145 = arith.constant 0 : index
    %327 = vector.load %arg1[%c0_144, %c0_145] : memref<2x1024xf32, #tpu.memory_space<vmem>>, vector<2x256xf32>
    %328 = vector.broadcast %326 : f32 to vector<2x256xf32>
    %329 = arith.mulf %328, %327 : vector<2x256xf32>
    %330 = vector.broadcast %325 : f32 to vector<2x256xf32>
    %331 = arith.addf %330, %329 : vector<2x256xf32>
    %c53 = arith.constant 53 : index
    %332 = memref.load %arg2[%c53] : memref<128xf32, #tpu.memory_space<smem>>
    %c0_146 = arith.constant 0 : index
    %c256_147 = arith.constant 256 : index
    %333 = vector.load %arg1[%c0_146, %c256_147] : memref<2x1024xf32, #tpu.memory_space<vmem>>, vector<2x256xf32>
    %334 = vector.broadcast %332 : f32 to vector<2x256xf32>
    %335 = arith.mulf %334, %333 : vector<2x256xf32>
    %336 = arith.addf %331, %335 : vector<2x256xf32>
    %c54 = arith.constant 54 : index
    %337 = memref.load %arg2[%c54] : memref<128xf32, #tpu.memory_space<smem>>
    %c0_148 = arith.constant 0 : index
    %c512_149 = arith.constant 512 : index
    %338 = vector.load %arg1[%c0_148, %c512_149] : memref<2x1024xf32, #tpu.memory_space<vmem>>, vector<2x256xf32>
    %339 = vector.broadcast %337 : f32 to vector<2x256xf32>
    %340 = arith.mulf %339, %338 : vector<2x256xf32>
    %341 = arith.addf %336, %340 : vector<2x256xf32>
    %c55 = arith.constant 55 : index
    %342 = memref.load %arg2[%c55] : memref<128xf32, #tpu.memory_space<smem>>
    %c0_150 = arith.constant 0 : index
    %c768_151 = arith.constant 768 : index
    %343 = vector.load %arg1[%c0_150, %c768_151] : memref<2x1024xf32, #tpu.memory_space<vmem>>, vector<2x256xf32>
    %344 = vector.broadcast %342 : f32 to vector<2x256xf32>
    %345 = arith.mulf %344, %343 : vector<2x256xf32>
    %346 = arith.addf %341, %345 : vector<2x256xf32>
    %cst_152 = arith.constant 0.000000e+00 : f32
    %347 = vector.broadcast %cst_152 : f32 to vector<2x256xf32>
    %348 = arith.maximumf %346, %347 : vector<2x256xf32>
    %c0_153 = arith.constant 0 : index
    %c3328 = arith.constant 3328 : index
    %349 = vector.load %arg9[%c0_153, %c3328] : memref<2x8192xf32, #tpu.memory_space<vmem>>, vector<2x256xf32>
    tpu.vector_store %arg9[%c0_153, %c3328], %348 {strides = array<i32>} : memref<2x8192xf32, #tpu.memory_space<vmem>>, vector<2x256xf32>,
    %c14_154 = arith.constant 14 : index
    %350 = memref.load %arg3[%c14_154] : memref<32xf32, #tpu.memory_space<smem>>
    %c56 = arith.constant 56 : index
    %351 = memref.load %arg2[%c56] : memref<128xf32, #tpu.memory_space<smem>>
    %c0_155 = arith.constant 0 : index
    %c0_156 = arith.constant 0 : index
    %352 = vector.load %arg1[%c0_155, %c0_156] : memref<2x1024xf32, #tpu.memory_space<vmem>>, vector<2x256xf32>
    %353 = vector.broadcast %351 : f32 to vector<2x256xf32>
    %354 = arith.mulf %353, %352 : vector<2x256xf32>
    %355 = vector.broadcast %350 : f32 to vector<2x256xf32>
    %356 = arith.addf %355, %354 : vector<2x256xf32>
    %c57 = arith.constant 57 : index
    %357 = memref.load %arg2[%c57] : memref<128xf32, #tpu.memory_space<smem>>
    %c0_157 = arith.constant 0 : index
    %c256_158 = arith.constant 256 : index
    %358 = vector.load %arg1[%c0_157, %c256_158] : memref<2x1024xf32, #tpu.memory_space<vmem>>, vector<2x256xf32>
    %359 = vector.broadcast %357 : f32 to vector<2x256xf32>
    %360 = arith.mulf %359, %358 : vector<2x256xf32>
    %361 = arith.addf %356, %360 : vector<2x256xf32>
    %c58 = arith.constant 58 : index
    %362 = memref.load %arg2[%c58] : memref<128xf32, #tpu.memory_space<smem>>
    %c0_159 = arith.constant 0 : index
    %c512_160 = arith.constant 512 : index
    %363 = vector.load %arg1[%c0_159, %c512_160] : memref<2x1024xf32, #tpu.memory_space<vmem>>, vector<2x256xf32>
    %364 = vector.broadcast %362 : f32 to vector<2x256xf32>
    %365 = arith.mulf %364, %363 : vector<2x256xf32>
    %366 = arith.addf %361, %365 : vector<2x256xf32>
    %c59 = arith.constant 59 : index
    %367 = memref.load %arg2[%c59] : memref<128xf32, #tpu.memory_space<smem>>
    %c0_161 = arith.constant 0 : index
    %c768_162 = arith.constant 768 : index
    %368 = vector.load %arg1[%c0_161, %c768_162] : memref<2x1024xf32, #tpu.memory_space<vmem>>, vector<2x256xf32>
    %369 = vector.broadcast %367 : f32 to vector<2x256xf32>
    %370 = arith.mulf %369, %368 : vector<2x256xf32>
    %371 = arith.addf %366, %370 : vector<2x256xf32>
    %cst_163 = arith.constant 0.000000e+00 : f32
    %372 = vector.broadcast %cst_163 : f32 to vector<2x256xf32>
    %373 = arith.maximumf %371, %372 : vector<2x256xf32>
    %c0_164 = arith.constant 0 : index
    %c3584 = arith.constant 3584 : index
    %374 = vector.load %arg9[%c0_164, %c3584] : memref<2x8192xf32, #tpu.memory_space<vmem>>, vector<2x256xf32>
    tpu.vector_store %arg9[%c0_164, %c3584], %373 {strides = array<i32>} : memref<2x8192xf32, #tpu.memory_space<vmem>>, vector<2x256xf32>,
    %c15_165 = arith.constant 15 : index
    %375 = memref.load %arg3[%c15_165] : memref<32xf32, #tpu.memory_space<smem>>
    %c60 = arith.constant 60 : index
    %376 = memref.load %arg2[%c60] : memref<128xf32, #tpu.memory_space<smem>>
    %c0_166 = arith.constant 0 : index
    %c0_167 = arith.constant 0 : index
    %377 = vector.load %arg1[%c0_166, %c0_167] : memref<2x1024xf32, #tpu.memory_space<vmem>>, vector<2x256xf32>
    %378 = vector.broadcast %376 : f32 to vector<2x256xf32>
    %379 = arith.mulf %378, %377 : vector<2x256xf32>
    %380 = vector.broadcast %375 : f32 to vector<2x256xf32>
    %381 = arith.addf %380, %379 : vector<2x256xf32>
    %c61 = arith.constant 61 : index
    %382 = memref.load %arg2[%c61] : memref<128xf32, #tpu.memory_space<smem>>
    %c0_168 = arith.constant 0 : index
    %c256_169 = arith.constant 256 : index
    %383 = vector.load %arg1[%c0_168, %c256_169] : memref<2x1024xf32, #tpu.memory_space<vmem>>, vector<2x256xf32>
    %384 = vector.broadcast %382 : f32 to vector<2x256xf32>
    %385 = arith.mulf %384, %383 : vector<2x256xf32>
    %386 = arith.addf %381, %385 : vector<2x256xf32>
    %c62 = arith.constant 62 : index
    %387 = memref.load %arg2[%c62] : memref<128xf32, #tpu.memory_space<smem>>
    %c0_170 = arith.constant 0 : index
    %c512_171 = arith.constant 512 : index
    %388 = vector.load %arg1[%c0_170, %c512_171] : memref<2x1024xf32, #tpu.memory_space<vmem>>, vector<2x256xf32>
    %389 = vector.broadcast %387 : f32 to vector<2x256xf32>
    %390 = arith.mulf %389, %388 : vector<2x256xf32>
    %391 = arith.addf %386, %390 : vector<2x256xf32>
    %c63 = arith.constant 63 : index
    %392 = memref.load %arg2[%c63] : memref<128xf32, #tpu.memory_space<smem>>
    %c0_172 = arith.constant 0 : index
    %c768_173 = arith.constant 768 : index
    %393 = vector.load %arg1[%c0_172, %c768_173] : memref<2x1024xf32, #tpu.memory_space<vmem>>, vector<2x256xf32>
    %394 = vector.broadcast %392 : f32 to vector<2x256xf32>
    %395 = arith.mulf %394, %393 : vector<2x256xf32>
    %396 = arith.addf %391, %395 : vector<2x256xf32>
    %cst_174 = arith.constant 0.000000e+00 : f32
    %397 = vector.broadcast %cst_174 : f32 to vector<2x256xf32>
    %398 = arith.maximumf %396, %397 : vector<2x256xf32>
    %c0_175 = arith.constant 0 : index
    %c3840 = arith.constant 3840 : index
    %399 = vector.load %arg9[%c0_175, %c3840] : memref<2x8192xf32, #tpu.memory_space<vmem>>, vector<2x256xf32>
    tpu.vector_store %arg9[%c0_175, %c3840], %398 {strides = array<i32>} : memref<2x8192xf32, #tpu.memory_space<vmem>>, vector<2x256xf32>,
    %c16_176 = arith.constant 16 : index
    %400 = memref.load %arg3[%c16_176] : memref<32xf32, #tpu.memory_space<smem>>
    %c64 = arith.constant 64 : index
    %401 = memref.load %arg2[%c64] : memref<128xf32, #tpu.memory_space<smem>>
    %c0_177 = arith.constant 0 : index
    %c0_178 = arith.constant 0 : index
    %402 = vector.load %arg1[%c0_177, %c0_178] : memref<2x1024xf32, #tpu.memory_space<vmem>>, vector<2x256xf32>
    %403 = vector.broadcast %401 : f32 to vector<2x256xf32>
    %404 = arith.mulf %403, %402 : vector<2x256xf32>
    %405 = vector.broadcast %400 : f32 to vector<2x256xf32>
    %406 = arith.addf %405, %404 : vector<2x256xf32>
    %c65 = arith.constant 65 : index
    %407 = memref.load %arg2[%c65] : memref<128xf32, #tpu.memory_space<smem>>
    %c0_179 = arith.constant 0 : index
    %c256_180 = arith.constant 256 : index
    %408 = vector.load %arg1[%c0_179, %c256_180] : memref<2x1024xf32, #tpu.memory_space<vmem>>, vector<2x256xf32>
    %409 = vector.broadcast %407 : f32 to vector<2x256xf32>
    %410 = arith.mulf %409, %408 : vector<2x256xf32>
    %411 = arith.addf %406, %410 : vector<2x256xf32>
    %c66 = arith.constant 66 : index
    %412 = memref.load %arg2[%c66] : memref<128xf32, #tpu.memory_space<smem>>
    %c0_181 = arith.constant 0 : index
    %c512_182 = arith.constant 512 : index
    %413 = vector.load %arg1[%c0_181, %c512_182] : memref<2x1024xf32, #tpu.memory_space<vmem>>, vector<2x256xf32>
    %414 = vector.broadcast %412 : f32 to vector<2x256xf32>
    %415 = arith.mulf %414, %413 : vector<2x256xf32>
    %416 = arith.addf %411, %415 : vector<2x256xf32>
    %c67 = arith.constant 67 : index
    %417 = memref.load %arg2[%c67] : memref<128xf32, #tpu.memory_space<smem>>
    %c0_183 = arith.constant 0 : index
    %c768_184 = arith.constant 768 : index
    %418 = vector.load %arg1[%c0_183, %c768_184] : memref<2x1024xf32, #tpu.memory_space<vmem>>, vector<2x256xf32>
    %419 = vector.broadcast %417 : f32 to vector<2x256xf32>
    %420 = arith.mulf %419, %418 : vector<2x256xf32>
    %421 = arith.addf %416, %420 : vector<2x256xf32>
    %cst_185 = arith.constant 0.000000e+00 : f32
    %422 = vector.broadcast %cst_185 : f32 to vector<2x256xf32>
    %423 = arith.maximumf %421, %422 : vector<2x256xf32>
    %c0_186 = arith.constant 0 : index
    %c4096 = arith.constant 4096 : index
    %424 = vector.load %arg9[%c0_186, %c4096] : memref<2x8192xf32, #tpu.memory_space<vmem>>, vector<2x256xf32>
    tpu.vector_store %arg9[%c0_186, %c4096], %423 {strides = array<i32>} : memref<2x8192xf32, #tpu.memory_space<vmem>>, vector<2x256xf32>,
    %c17_187 = arith.constant 17 : index
    %425 = memref.load %arg3[%c17_187] : memref<32xf32, #tpu.memory_space<smem>>
    %c68 = arith.constant 68 : index
    %426 = memref.load %arg2[%c68] : memref<128xf32, #tpu.memory_space<smem>>
    %c0_188 = arith.constant 0 : index
    %c0_189 = arith.constant 0 : index
    %427 = vector.load %arg1[%c0_188, %c0_189] : memref<2x1024xf32, #tpu.memory_space<vmem>>, vector<2x256xf32>
    %428 = vector.broadcast %426 : f32 to vector<2x256xf32>
    %429 = arith.mulf %428, %427 : vector<2x256xf32>
    %430 = vector.broadcast %425 : f32 to vector<2x256xf32>
    %431 = arith.addf %430, %429 : vector<2x256xf32>
    %c69 = arith.constant 69 : index
    %432 = memref.load %arg2[%c69] : memref<128xf32, #tpu.memory_space<smem>>
    %c0_190 = arith.constant 0 : index
    %c256_191 = arith.constant 256 : index
    %433 = vector.load %arg1[%c0_190, %c256_191] : memref<2x1024xf32, #tpu.memory_space<vmem>>, vector<2x256xf32>
    %434 = vector.broadcast %432 : f32 to vector<2x256xf32>
    %435 = arith.mulf %434, %433 : vector<2x256xf32>
    %436 = arith.addf %431, %435 : vector<2x256xf32>
    %c70 = arith.constant 70 : index
    %437 = memref.load %arg2[%c70] : memref<128xf32, #tpu.memory_space<smem>>
    %c0_192 = arith.constant 0 : index
    %c512_193 = arith.constant 512 : index
    %438 = vector.load %arg1[%c0_192, %c512_193] : memref<2x1024xf32, #tpu.memory_space<vmem>>, vector<2x256xf32>
    %439 = vector.broadcast %437 : f32 to vector<2x256xf32>
    %440 = arith.mulf %439, %438 : vector<2x256xf32>
    %441 = arith.addf %436, %440 : vector<2x256xf32>
    %c71 = arith.constant 71 : index
    %442 = memref.load %arg2[%c71] : memref<128xf32, #tpu.memory_space<smem>>
    %c0_194 = arith.constant 0 : index
    %c768_195 = arith.constant 768 : index
    %443 = vector.load %arg1[%c0_194, %c768_195] : memref<2x1024xf32, #tpu.memory_space<vmem>>, vector<2x256xf32>
    %444 = vector.broadcast %442 : f32 to vector<2x256xf32>
    %445 = arith.mulf %444, %443 : vector<2x256xf32>
    %446 = arith.addf %441, %445 : vector<2x256xf32>
    %cst_196 = arith.constant 0.000000e+00 : f32
    %447 = vector.broadcast %cst_196 : f32 to vector<2x256xf32>
    %448 = arith.maximumf %446, %447 : vector<2x256xf32>
    %c0_197 = arith.constant 0 : index
    %c4352 = arith.constant 4352 : index
    %449 = vector.load %arg9[%c0_197, %c4352] : memref<2x8192xf32, #tpu.memory_space<vmem>>, vector<2x256xf32>
    tpu.vector_store %arg9[%c0_197, %c4352], %448 {strides = array<i32>} : memref<2x8192xf32, #tpu.memory_space<vmem>>, vector<2x256xf32>,
    %c18_198 = arith.constant 18 : index
    %450 = memref.load %arg3[%c18_198] : memref<32xf32, #tpu.memory_space<smem>>
    %c72 = arith.constant 72 : index
    %451 = memref.load %arg2[%c72] : memref<128xf32, #tpu.memory_space<smem>>
    %c0_199 = arith.constant 0 : index
    %c0_200 = arith.constant 0 : index
    %452 = vector.load %arg1[%c0_199, %c0_200] : memref<2x1024xf32, #tpu.memory_space<vmem>>, vector<2x256xf32>
    %453 = vector.broadcast %451 : f32 to vector<2x256xf32>
    %454 = arith.mulf %453, %452 : vector<2x256xf32>
    %455 = vector.broadcast %450 : f32 to vector<2x256xf32>
    %456 = arith.addf %455, %454 : vector<2x256xf32>
    %c73 = arith.constant 73 : index
    %457 = memref.load %arg2[%c73] : memref<128xf32, #tpu.memory_space<smem>>
    %c0_201 = arith.constant 0 : index
    %c256_202 = arith.constant 256 : index
    %458 = vector.load %arg1[%c0_201, %c256_202] : memref<2x1024xf32, #tpu.memory_space<vmem>>, vector<2x256xf32>
    %459 = vector.broadcast %457 : f32 to vector<2x256xf32>
    %460 = arith.mulf %459, %458 : vector<2x256xf32>
    %461 = arith.addf %456, %460 : vector<2x256xf32>
    %c74 = arith.constant 74 : index
    %462 = memref.load %arg2[%c74] : memref<128xf32, #tpu.memory_space<smem>>
    %c0_203 = arith.constant 0 : index
    %c512_204 = arith.constant 512 : index
    %463 = vector.load %arg1[%c0_203, %c512_204] : memref<2x1024xf32, #tpu.memory_space<vmem>>, vector<2x256xf32>
    %464 = vector.broadcast %462 : f32 to vector<2x256xf32>
    %465 = arith.mulf %464, %463 : vector<2x256xf32>
    %466 = arith.addf %461, %465 : vector<2x256xf32>
    %c75 = arith.constant 75 : index
    %467 = memref.load %arg2[%c75] : memref<128xf32, #tpu.memory_space<smem>>
    %c0_205 = arith.constant 0 : index
    %c768_206 = arith.constant 768 : index
    %468 = vector.load %arg1[%c0_205, %c768_206] : memref<2x1024xf32, #tpu.memory_space<vmem>>, vector<2x256xf32>
    %469 = vector.broadcast %467 : f32 to vector<2x256xf32>
    %470 = arith.mulf %469, %468 : vector<2x256xf32>
    %471 = arith.addf %466, %470 : vector<2x256xf32>
    %cst_207 = arith.constant 0.000000e+00 : f32
    %472 = vector.broadcast %cst_207 : f32 to vector<2x256xf32>
    %473 = arith.maximumf %471, %472 : vector<2x256xf32>
    %c0_208 = arith.constant 0 : index
    %c4608 = arith.constant 4608 : index
    %474 = vector.load %arg9[%c0_208, %c4608] : memref<2x8192xf32, #tpu.memory_space<vmem>>, vector<2x256xf32>
    tpu.vector_store %arg9[%c0_208, %c4608], %473 {strides = array<i32>} : memref<2x8192xf32, #tpu.memory_space<vmem>>, vector<2x256xf32>,
    %c19_209 = arith.constant 19 : index
    %475 = memref.load %arg3[%c19_209] : memref<32xf32, #tpu.memory_space<smem>>
    %c76 = arith.constant 76 : index
    %476 = memref.load %arg2[%c76] : memref<128xf32, #tpu.memory_space<smem>>
    %c0_210 = arith.constant 0 : index
    %c0_211 = arith.constant 0 : index
    %477 = vector.load %arg1[%c0_210, %c0_211] : memref<2x1024xf32, #tpu.memory_space<vmem>>, vector<2x256xf32>
    %478 = vector.broadcast %476 : f32 to vector<2x256xf32>
    %479 = arith.mulf %478, %477 : vector<2x256xf32>
    %480 = vector.broadcast %475 : f32 to vector<2x256xf32>
    %481 = arith.addf %480, %479 : vector<2x256xf32>
    %c77 = arith.constant 77 : index
    %482 = memref.load %arg2[%c77] : memref<128xf32, #tpu.memory_space<smem>>
    %c0_212 = arith.constant 0 : index
    %c256_213 = arith.constant 256 : index
    %483 = vector.load %arg1[%c0_212, %c256_213] : memref<2x1024xf32, #tpu.memory_space<vmem>>, vector<2x256xf32>
    %484 = vector.broadcast %482 : f32 to vector<2x256xf32>
    %485 = arith.mulf %484, %483 : vector<2x256xf32>
    %486 = arith.addf %481, %485 : vector<2x256xf32>
    %c78 = arith.constant 78 : index
    %487 = memref.load %arg2[%c78] : memref<128xf32, #tpu.memory_space<smem>>
    %c0_214 = arith.constant 0 : index
    %c512_215 = arith.constant 512 : index
    %488 = vector.load %arg1[%c0_214, %c512_215] : memref<2x1024xf32, #tpu.memory_space<vmem>>, vector<2x256xf32>
    %489 = vector.broadcast %487 : f32 to vector<2x256xf32>
    %490 = arith.mulf %489, %488 : vector<2x256xf32>
    %491 = arith.addf %486, %490 : vector<2x256xf32>
    %c79 = arith.constant 79 : index
    %492 = memref.load %arg2[%c79] : memref<128xf32, #tpu.memory_space<smem>>
    %c0_216 = arith.constant 0 : index
    %c768_217 = arith.constant 768 : index
    %493 = vector.load %arg1[%c0_216, %c768_217] : memref<2x1024xf32, #tpu.memory_space<vmem>>, vector<2x256xf32>
    %494 = vector.broadcast %492 : f32 to vector<2x256xf32>
    %495 = arith.mulf %494, %493 : vector<2x256xf32>
    %496 = arith.addf %491, %495 : vector<2x256xf32>
    %cst_218 = arith.constant 0.000000e+00 : f32
    %497 = vector.broadcast %cst_218 : f32 to vector<2x256xf32>
    %498 = arith.maximumf %496, %497 : vector<2x256xf32>
    %c0_219 = arith.constant 0 : index
    %c4864 = arith.constant 4864 : index
    %499 = vector.load %arg9[%c0_219, %c4864] : memref<2x8192xf32, #tpu.memory_space<vmem>>, vector<2x256xf32>
    tpu.vector_store %arg9[%c0_219, %c4864], %498 {strides = array<i32>} : memref<2x8192xf32, #tpu.memory_space<vmem>>, vector<2x256xf32>,
    %c20_220 = arith.constant 20 : index
    %500 = memref.load %arg3[%c20_220] : memref<32xf32, #tpu.memory_space<smem>>
    %c80 = arith.constant 80 : index
    %501 = memref.load %arg2[%c80] : memref<128xf32, #tpu.memory_space<smem>>
    %c0_221 = arith.constant 0 : index
    %c0_222 = arith.constant 0 : index
    %502 = vector.load %arg1[%c0_221, %c0_222] : memref<2x1024xf32, #tpu.memory_space<vmem>>, vector<2x256xf32>
    %503 = vector.broadcast %501 : f32 to vector<2x256xf32>
    %504 = arith.mulf %503, %502 : vector<2x256xf32>
    %505 = vector.broadcast %500 : f32 to vector<2x256xf32>
    %506 = arith.addf %505, %504 : vector<2x256xf32>
    %c81 = arith.constant 81 : index
    %507 = memref.load %arg2[%c81] : memref<128xf32, #tpu.memory_space<smem>>
    %c0_223 = arith.constant 0 : index
    %c256_224 = arith.constant 256 : index
    %508 = vector.load %arg1[%c0_223, %c256_224] : memref<2x1024xf32, #tpu.memory_space<vmem>>, vector<2x256xf32>
    %509 = vector.broadcast %507 : f32 to vector<2x256xf32>
    %510 = arith.mulf %509, %508 : vector<2x256xf32>
    %511 = arith.addf %506, %510 : vector<2x256xf32>
    %c82 = arith.constant 82 : index
    %512 = memref.load %arg2[%c82] : memref<128xf32, #tpu.memory_space<smem>>
    %c0_225 = arith.constant 0 : index
    %c512_226 = arith.constant 512 : index
    %513 = vector.load %arg1[%c0_225, %c512_226] : memref<2x1024xf32, #tpu.memory_space<vmem>>, vector<2x256xf32>
    %514 = vector.broadcast %512 : f32 to vector<2x256xf32>
    %515 = arith.mulf %514, %513 : vector<2x256xf32>
    %516 = arith.addf %511, %515 : vector<2x256xf32>
    %c83 = arith.constant 83 : index
    %517 = memref.load %arg2[%c83] : memref<128xf32, #tpu.memory_space<smem>>
    %c0_227 = arith.constant 0 : index
    %c768_228 = arith.constant 768 : index
    %518 = vector.load %arg1[%c0_227, %c768_228] : memref<2x1024xf32, #tpu.memory_space<vmem>>, vector<2x256xf32>
    %519 = vector.broadcast %517 : f32 to vector<2x256xf32>
    %520 = arith.mulf %519, %518 : vector<2x256xf32>
    %521 = arith.addf %516, %520 : vector<2x256xf32>
    %cst_229 = arith.constant 0.000000e+00 : f32
    %522 = vector.broadcast %cst_229 : f32 to vector<2x256xf32>
    %523 = arith.maximumf %521, %522 : vector<2x256xf32>
    %c0_230 = arith.constant 0 : index
    %c5120 = arith.constant 5120 : index
    %524 = vector.load %arg9[%c0_230, %c5120] : memref<2x8192xf32, #tpu.memory_space<vmem>>, vector<2x256xf32>
    tpu.vector_store %arg9[%c0_230, %c5120], %523 {strides = array<i32>} : memref<2x8192xf32, #tpu.memory_space<vmem>>, vector<2x256xf32>,
    %c21_231 = arith.constant 21 : index
    %525 = memref.load %arg3[%c21_231] : memref<32xf32, #tpu.memory_space<smem>>
    %c84 = arith.constant 84 : index
    %526 = memref.load %arg2[%c84] : memref<128xf32, #tpu.memory_space<smem>>
    %c0_232 = arith.constant 0 : index
    %c0_233 = arith.constant 0 : index
    %527 = vector.load %arg1[%c0_232, %c0_233] : memref<2x1024xf32, #tpu.memory_space<vmem>>, vector<2x256xf32>
    %528 = vector.broadcast %526 : f32 to vector<2x256xf32>
    %529 = arith.mulf %528, %527 : vector<2x256xf32>
    %530 = vector.broadcast %525 : f32 to vector<2x256xf32>
    %531 = arith.addf %530, %529 : vector<2x256xf32>
    %c85 = arith.constant 85 : index
    %532 = memref.load %arg2[%c85] : memref<128xf32, #tpu.memory_space<smem>>
    %c0_234 = arith.constant 0 : index
    %c256_235 = arith.constant 256 : index
    %533 = vector.load %arg1[%c0_234, %c256_235] : memref<2x1024xf32, #tpu.memory_space<vmem>>, vector<2x256xf32>
    %534 = vector.broadcast %532 : f32 to vector<2x256xf32>
    %535 = arith.mulf %534, %533 : vector<2x256xf32>
    %536 = arith.addf %531, %535 : vector<2x256xf32>
    %c86 = arith.constant 86 : index
    %537 = memref.load %arg2[%c86] : memref<128xf32, #tpu.memory_space<smem>>
    %c0_236 = arith.constant 0 : index
    %c512_237 = arith.constant 512 : index
    %538 = vector.load %arg1[%c0_236, %c512_237] : memref<2x1024xf32, #tpu.memory_space<vmem>>, vector<2x256xf32>
    %539 = vector.broadcast %537 : f32 to vector<2x256xf32>
    %540 = arith.mulf %539, %538 : vector<2x256xf32>
    %541 = arith.addf %536, %540 : vector<2x256xf32>
    %c87 = arith.constant 87 : index
    %542 = memref.load %arg2[%c87] : memref<128xf32, #tpu.memory_space<smem>>
    %c0_238 = arith.constant 0 : index
    %c768_239 = arith.constant 768 : index
    %543 = vector.load %arg1[%c0_238, %c768_239] : memref<2x1024xf32, #tpu.memory_space<vmem>>, vector<2x256xf32>
    %544 = vector.broadcast %542 : f32 to vector<2x256xf32>
    %545 = arith.mulf %544, %543 : vector<2x256xf32>
    %546 = arith.addf %541, %545 : vector<2x256xf32>
    %cst_240 = arith.constant 0.000000e+00 : f32
    %547 = vector.broadcast %cst_240 : f32 to vector<2x256xf32>
    %548 = arith.maximumf %546, %547 : vector<2x256xf32>
    %c0_241 = arith.constant 0 : index
    %c5376 = arith.constant 5376 : index
    %549 = vector.load %arg9[%c0_241, %c5376] : memref<2x8192xf32, #tpu.memory_space<vmem>>, vector<2x256xf32>
    tpu.vector_store %arg9[%c0_241, %c5376], %548 {strides = array<i32>} : memref<2x8192xf32, #tpu.memory_space<vmem>>, vector<2x256xf32>,
    %c22_242 = arith.constant 22 : index
    %550 = memref.load %arg3[%c22_242] : memref<32xf32, #tpu.memory_space<smem>>
    %c88 = arith.constant 88 : index
    %551 = memref.load %arg2[%c88] : memref<128xf32, #tpu.memory_space<smem>>
    %c0_243 = arith.constant 0 : index
    %c0_244 = arith.constant 0 : index
    %552 = vector.load %arg1[%c0_243, %c0_244] : memref<2x1024xf32, #tpu.memory_space<vmem>>, vector<2x256xf32>
    %553 = vector.broadcast %551 : f32 to vector<2x256xf32>
    %554 = arith.mulf %553, %552 : vector<2x256xf32>
    %555 = vector.broadcast %550 : f32 to vector<2x256xf32>
    %556 = arith.addf %555, %554 : vector<2x256xf32>
    %c89 = arith.constant 89 : index
    %557 = memref.load %arg2[%c89] : memref<128xf32, #tpu.memory_space<smem>>
    %c0_245 = arith.constant 0 : index
    %c256_246 = arith.constant 256 : index
    %558 = vector.load %arg1[%c0_245, %c256_246] : memref<2x1024xf32, #tpu.memory_space<vmem>>, vector<2x256xf32>
    %559 = vector.broadcast %557 : f32 to vector<2x256xf32>
    %560 = arith.mulf %559, %558 : vector<2x256xf32>
    %561 = arith.addf %556, %560 : vector<2x256xf32>
    %c90 = arith.constant 90 : index
    %562 = memref.load %arg2[%c90] : memref<128xf32, #tpu.memory_space<smem>>
    %c0_247 = arith.constant 0 : index
    %c512_248 = arith.constant 512 : index
    %563 = vector.load %arg1[%c0_247, %c512_248] : memref<2x1024xf32, #tpu.memory_space<vmem>>, vector<2x256xf32>
    %564 = vector.broadcast %562 : f32 to vector<2x256xf32>
    %565 = arith.mulf %564, %563 : vector<2x256xf32>
    %566 = arith.addf %561, %565 : vector<2x256xf32>
    %c91 = arith.constant 91 : index
    %567 = memref.load %arg2[%c91] : memref<128xf32, #tpu.memory_space<smem>>
    %c0_249 = arith.constant 0 : index
    %c768_250 = arith.constant 768 : index
    %568 = vector.load %arg1[%c0_249, %c768_250] : memref<2x1024xf32, #tpu.memory_space<vmem>>, vector<2x256xf32>
    %569 = vector.broadcast %567 : f32 to vector<2x256xf32>
    %570 = arith.mulf %569, %568 : vector<2x256xf32>
    %571 = arith.addf %566, %570 : vector<2x256xf32>
    %cst_251 = arith.constant 0.000000e+00 : f32
    %572 = vector.broadcast %cst_251 : f32 to vector<2x256xf32>
    %573 = arith.maximumf %571, %572 : vector<2x256xf32>
    %c0_252 = arith.constant 0 : index
    %c5632 = arith.constant 5632 : index
    %574 = vector.load %arg9[%c0_252, %c5632] : memref<2x8192xf32, #tpu.memory_space<vmem>>, vector<2x256xf32>
    tpu.vector_store %arg9[%c0_252, %c5632], %573 {strides = array<i32>} : memref<2x8192xf32, #tpu.memory_space<vmem>>, vector<2x256xf32>,
    %c23_253 = arith.constant 23 : index
    %575 = memref.load %arg3[%c23_253] : memref<32xf32, #tpu.memory_space<smem>>
    %c92 = arith.constant 92 : index
    %576 = memref.load %arg2[%c92] : memref<128xf32, #tpu.memory_space<smem>>
    %c0_254 = arith.constant 0 : index
    %c0_255 = arith.constant 0 : index
    %577 = vector.load %arg1[%c0_254, %c0_255] : memref<2x1024xf32, #tpu.memory_space<vmem>>, vector<2x256xf32>
    %578 = vector.broadcast %576 : f32 to vector<2x256xf32>
    %579 = arith.mulf %578, %577 : vector<2x256xf32>
    %580 = vector.broadcast %575 : f32 to vector<2x256xf32>
    %581 = arith.addf %580, %579 : vector<2x256xf32>
    %c93 = arith.constant 93 : index
    %582 = memref.load %arg2[%c93] : memref<128xf32, #tpu.memory_space<smem>>
    %c0_256 = arith.constant 0 : index
    %c256_257 = arith.constant 256 : index
    %583 = vector.load %arg1[%c0_256, %c256_257] : memref<2x1024xf32, #tpu.memory_space<vmem>>, vector<2x256xf32>
    %584 = vector.broadcast %582 : f32 to vector<2x256xf32>
    %585 = arith.mulf %584, %583 : vector<2x256xf32>
    %586 = arith.addf %581, %585 : vector<2x256xf32>
    %c94 = arith.constant 94 : index
    %587 = memref.load %arg2[%c94] : memref<128xf32, #tpu.memory_space<smem>>
    %c0_258 = arith.constant 0 : index
    %c512_259 = arith.constant 512 : index
    %588 = vector.load %arg1[%c0_258, %c512_259] : memref<2x1024xf32, #tpu.memory_space<vmem>>, vector<2x256xf32>
    %589 = vector.broadcast %587 : f32 to vector<2x256xf32>
    %590 = arith.mulf %589, %588 : vector<2x256xf32>
    %591 = arith.addf %586, %590 : vector<2x256xf32>
    %c95 = arith.constant 95 : index
    %592 = memref.load %arg2[%c95] : memref<128xf32, #tpu.memory_space<smem>>
    %c0_260 = arith.constant 0 : index
    %c768_261 = arith.constant 768 : index
    %593 = vector.load %arg1[%c0_260, %c768_261] : memref<2x1024xf32, #tpu.memory_space<vmem>>, vector<2x256xf32>
    %594 = vector.broadcast %592 : f32 to vector<2x256xf32>
    %595 = arith.mulf %594, %593 : vector<2x256xf32>
    %596 = arith.addf %591, %595 : vector<2x256xf32>
    %cst_262 = arith.constant 0.000000e+00 : f32
    %597 = vector.broadcast %cst_262 : f32 to vector<2x256xf32>
    %598 = arith.maximumf %596, %597 : vector<2x256xf32>
    %c0_263 = arith.constant 0 : index
    %c5888 = arith.constant 5888 : index
    %599 = vector.load %arg9[%c0_263, %c5888] : memref<2x8192xf32, #tpu.memory_space<vmem>>, vector<2x256xf32>
    tpu.vector_store %arg9[%c0_263, %c5888], %598 {strides = array<i32>} : memref<2x8192xf32, #tpu.memory_space<vmem>>, vector<2x256xf32>,
    %c24_264 = arith.constant 24 : index
    %600 = memref.load %arg3[%c24_264] : memref<32xf32, #tpu.memory_space<smem>>
    %c96 = arith.constant 96 : index
    %601 = memref.load %arg2[%c96] : memref<128xf32, #tpu.memory_space<smem>>
    %c0_265 = arith.constant 0 : index
    %c0_266 = arith.constant 0 : index
    %602 = vector.load %arg1[%c0_265, %c0_266] : memref<2x1024xf32, #tpu.memory_space<vmem>>, vector<2x256xf32>
    %603 = vector.broadcast %601 : f32 to vector<2x256xf32>
    %604 = arith.mulf %603, %602 : vector<2x256xf32>
    %605 = vector.broadcast %600 : f32 to vector<2x256xf32>
    %606 = arith.addf %605, %604 : vector<2x256xf32>
    %c97 = arith.constant 97 : index
    %607 = memref.load %arg2[%c97] : memref<128xf32, #tpu.memory_space<smem>>
    %c0_267 = arith.constant 0 : index
    %c256_268 = arith.constant 256 : index
    %608 = vector.load %arg1[%c0_267, %c256_268] : memref<2x1024xf32, #tpu.memory_space<vmem>>, vector<2x256xf32>
    %609 = vector.broadcast %607 : f32 to vector<2x256xf32>
    %610 = arith.mulf %609, %608 : vector<2x256xf32>
    %611 = arith.addf %606, %610 : vector<2x256xf32>
    %c98 = arith.constant 98 : index
    %612 = memref.load %arg2[%c98] : memref<128xf32, #tpu.memory_space<smem>>
    %c0_269 = arith.constant 0 : index
    %c512_270 = arith.constant 512 : index
    %613 = vector.load %arg1[%c0_269, %c512_270] : memref<2x1024xf32, #tpu.memory_space<vmem>>, vector<2x256xf32>
    %614 = vector.broadcast %612 : f32 to vector<2x256xf32>
    %615 = arith.mulf %614, %613 : vector<2x256xf32>
    %616 = arith.addf %611, %615 : vector<2x256xf32>
    %c99 = arith.constant 99 : index
    %617 = memref.load %arg2[%c99] : memref<128xf32, #tpu.memory_space<smem>>
    %c0_271 = arith.constant 0 : index
    %c768_272 = arith.constant 768 : index
    %618 = vector.load %arg1[%c0_271, %c768_272] : memref<2x1024xf32, #tpu.memory_space<vmem>>, vector<2x256xf32>
    %619 = vector.broadcast %617 : f32 to vector<2x256xf32>
    %620 = arith.mulf %619, %618 : vector<2x256xf32>
    %621 = arith.addf %616, %620 : vector<2x256xf32>
    %cst_273 = arith.constant 0.000000e+00 : f32
    %622 = vector.broadcast %cst_273 : f32 to vector<2x256xf32>
    %623 = arith.maximumf %621, %622 : vector<2x256xf32>
    %c0_274 = arith.constant 0 : index
    %c6144 = arith.constant 6144 : index
    %624 = vector.load %arg9[%c0_274, %c6144] : memref<2x8192xf32, #tpu.memory_space<vmem>>, vector<2x256xf32>
    tpu.vector_store %arg9[%c0_274, %c6144], %623 {strides = array<i32>} : memref<2x8192xf32, #tpu.memory_space<vmem>>, vector<2x256xf32>,
    %c25_275 = arith.constant 25 : index
    %625 = memref.load %arg3[%c25_275] : memref<32xf32, #tpu.memory_space<smem>>
    %c100 = arith.constant 100 : index
    %626 = memref.load %arg2[%c100] : memref<128xf32, #tpu.memory_space<smem>>
    %c0_276 = arith.constant 0 : index
    %c0_277 = arith.constant 0 : index
    %627 = vector.load %arg1[%c0_276, %c0_277] : memref<2x1024xf32, #tpu.memory_space<vmem>>, vector<2x256xf32>
    %628 = vector.broadcast %626 : f32 to vector<2x256xf32>
    %629 = arith.mulf %628, %627 : vector<2x256xf32>
    %630 = vector.broadcast %625 : f32 to vector<2x256xf32>
    %631 = arith.addf %630, %629 : vector<2x256xf32>
    %c101 = arith.constant 101 : index
    %632 = memref.load %arg2[%c101] : memref<128xf32, #tpu.memory_space<smem>>
    %c0_278 = arith.constant 0 : index
    %c256_279 = arith.constant 256 : index
    %633 = vector.load %arg1[%c0_278, %c256_279] : memref<2x1024xf32, #tpu.memory_space<vmem>>, vector<2x256xf32>
    %634 = vector.broadcast %632 : f32 to vector<2x256xf32>
    %635 = arith.mulf %634, %633 : vector<2x256xf32>
    %636 = arith.addf %631, %635 : vector<2x256xf32>
    %c102 = arith.constant 102 : index
    %637 = memref.load %arg2[%c102] : memref<128xf32, #tpu.memory_space<smem>>
    %c0_280 = arith.constant 0 : index
    %c512_281 = arith.constant 512 : index
    %638 = vector.load %arg1[%c0_280, %c512_281] : memref<2x1024xf32, #tpu.memory_space<vmem>>, vector<2x256xf32>
    %639 = vector.broadcast %637 : f32 to vector<2x256xf32>
    %640 = arith.mulf %639, %638 : vector<2x256xf32>
    %641 = arith.addf %636, %640 : vector<2x256xf32>
    %c103 = arith.constant 103 : index
    %642 = memref.load %arg2[%c103] : memref<128xf32, #tpu.memory_space<smem>>
    %c0_282 = arith.constant 0 : index
    %c768_283 = arith.constant 768 : index
    %643 = vector.load %arg1[%c0_282, %c768_283] : memref<2x1024xf32, #tpu.memory_space<vmem>>, vector<2x256xf32>
    %644 = vector.broadcast %642 : f32 to vector<2x256xf32>
    %645 = arith.mulf %644, %643 : vector<2x256xf32>
    %646 = arith.addf %641, %645 : vector<2x256xf32>
    %cst_284 = arith.constant 0.000000e+00 : f32
    %647 = vector.broadcast %cst_284 : f32 to vector<2x256xf32>
    %648 = arith.maximumf %646, %647 : vector<2x256xf32>
    %c0_285 = arith.constant 0 : index
    %c6400 = arith.constant 6400 : index
    %649 = vector.load %arg9[%c0_285, %c6400] : memref<2x8192xf32, #tpu.memory_space<vmem>>, vector<2x256xf32>
    tpu.vector_store %arg9[%c0_285, %c6400], %648 {strides = array<i32>} : memref<2x8192xf32, #tpu.memory_space<vmem>>, vector<2x256xf32>,
    %c26_286 = arith.constant 26 : index
    %650 = memref.load %arg3[%c26_286] : memref<32xf32, #tpu.memory_space<smem>>
    %c104 = arith.constant 104 : index
    %651 = memref.load %arg2[%c104] : memref<128xf32, #tpu.memory_space<smem>>
    %c0_287 = arith.constant 0 : index
    %c0_288 = arith.constant 0 : index
    %652 = vector.load %arg1[%c0_287, %c0_288] : memref<2x1024xf32, #tpu.memory_space<vmem>>, vector<2x256xf32>
    %653 = vector.broadcast %651 : f32 to vector<2x256xf32>
    %654 = arith.mulf %653, %652 : vector<2x256xf32>
    %655 = vector.broadcast %650 : f32 to vector<2x256xf32>
    %656 = arith.addf %655, %654 : vector<2x256xf32>
    %c105 = arith.constant 105 : index
    %657 = memref.load %arg2[%c105] : memref<128xf32, #tpu.memory_space<smem>>
    %c0_289 = arith.constant 0 : index
    %c256_290 = arith.constant 256 : index
    %658 = vector.load %arg1[%c0_289, %c256_290] : memref<2x1024xf32, #tpu.memory_space<vmem>>, vector<2x256xf32>
    %659 = vector.broadcast %657 : f32 to vector<2x256xf32>
    %660 = arith.mulf %659, %658 : vector<2x256xf32>
    %661 = arith.addf %656, %660 : vector<2x256xf32>
    %c106 = arith.constant 106 : index
    %662 = memref.load %arg2[%c106] : memref<128xf32, #tpu.memory_space<smem>>
    %c0_291 = arith.constant 0 : index
    %c512_292 = arith.constant 512 : index
    %663 = vector.load %arg1[%c0_291, %c512_292] : memref<2x1024xf32, #tpu.memory_space<vmem>>, vector<2x256xf32>
    %664 = vector.broadcast %662 : f32 to vector<2x256xf32>
    %665 = arith.mulf %664, %663 : vector<2x256xf32>
    %666 = arith.addf %661, %665 : vector<2x256xf32>
    %c107 = arith.constant 107 : index
    %667 = memref.load %arg2[%c107] : memref<128xf32, #tpu.memory_space<smem>>
    %c0_293 = arith.constant 0 : index
    %c768_294 = arith.constant 768 : index
    %668 = vector.load %arg1[%c0_293, %c768_294] : memref<2x1024xf32, #tpu.memory_space<vmem>>, vector<2x256xf32>
    %669 = vector.broadcast %667 : f32 to vector<2x256xf32>
    %670 = arith.mulf %669, %668 : vector<2x256xf32>
    %671 = arith.addf %666, %670 : vector<2x256xf32>
    %cst_295 = arith.constant 0.000000e+00 : f32
    %672 = vector.broadcast %cst_295 : f32 to vector<2x256xf32>
    %673 = arith.maximumf %671, %672 : vector<2x256xf32>
    %c0_296 = arith.constant 0 : index
    %c6656 = arith.constant 6656 : index
    %674 = vector.load %arg9[%c0_296, %c6656] : memref<2x8192xf32, #tpu.memory_space<vmem>>, vector<2x256xf32>
    tpu.vector_store %arg9[%c0_296, %c6656], %673 {strides = array<i32>} : memref<2x8192xf32, #tpu.memory_space<vmem>>, vector<2x256xf32>,
    %c27_297 = arith.constant 27 : index
    %675 = memref.load %arg3[%c27_297] : memref<32xf32, #tpu.memory_space<smem>>
    %c108 = arith.constant 108 : index
    %676 = memref.load %arg2[%c108] : memref<128xf32, #tpu.memory_space<smem>>
    %c0_298 = arith.constant 0 : index
    %c0_299 = arith.constant 0 : index
    %677 = vector.load %arg1[%c0_298, %c0_299] : memref<2x1024xf32, #tpu.memory_space<vmem>>, vector<2x256xf32>
    %678 = vector.broadcast %676 : f32 to vector<2x256xf32>
    %679 = arith.mulf %678, %677 : vector<2x256xf32>
    %680 = vector.broadcast %675 : f32 to vector<2x256xf32>
    %681 = arith.addf %680, %679 : vector<2x256xf32>
    %c109 = arith.constant 109 : index
    %682 = memref.load %arg2[%c109] : memref<128xf32, #tpu.memory_space<smem>>
    %c0_300 = arith.constant 0 : index
    %c256_301 = arith.constant 256 : index
    %683 = vector.load %arg1[%c0_300, %c256_301] : memref<2x1024xf32, #tpu.memory_space<vmem>>, vector<2x256xf32>
    %684 = vector.broadcast %682 : f32 to vector<2x256xf32>
    %685 = arith.mulf %684, %683 : vector<2x256xf32>
    %686 = arith.addf %681, %685 : vector<2x256xf32>
    %c110 = arith.constant 110 : index
    %687 = memref.load %arg2[%c110] : memref<128xf32, #tpu.memory_space<smem>>
    %c0_302 = arith.constant 0 : index
    %c512_303 = arith.constant 512 : index
    %688 = vector.load %arg1[%c0_302, %c512_303] : memref<2x1024xf32, #tpu.memory_space<vmem>>, vector<2x256xf32>
    %689 = vector.broadcast %687 : f32 to vector<2x256xf32>
    %690 = arith.mulf %689, %688 : vector<2x256xf32>
    %691 = arith.addf %686, %690 : vector<2x256xf32>
    %c111 = arith.constant 111 : index
    %692 = memref.load %arg2[%c111] : memref<128xf32, #tpu.memory_space<smem>>
    %c0_304 = arith.constant 0 : index
    %c768_305 = arith.constant 768 : index
    %693 = vector.load %arg1[%c0_304, %c768_305] : memref<2x1024xf32, #tpu.memory_space<vmem>>, vector<2x256xf32>
    %694 = vector.broadcast %692 : f32 to vector<2x256xf32>
    %695 = arith.mulf %694, %693 : vector<2x256xf32>
    %696 = arith.addf %691, %695 : vector<2x256xf32>
    %cst_306 = arith.constant 0.000000e+00 : f32
    %697 = vector.broadcast %cst_306 : f32 to vector<2x256xf32>
    %698 = arith.maximumf %696, %697 : vector<2x256xf32>
    %c0_307 = arith.constant 0 : index
    %c6912 = arith.constant 6912 : index
    %699 = vector.load %arg9[%c0_307, %c6912] : memref<2x8192xf32, #tpu.memory_space<vmem>>, vector<2x256xf32>
    tpu.vector_store %arg9[%c0_307, %c6912], %698 {strides = array<i32>} : memref<2x8192xf32, #tpu.memory_space<vmem>>, vector<2x256xf32>,
    %c28_308 = arith.constant 28 : index
    %700 = memref.load %arg3[%c28_308] : memref<32xf32, #tpu.memory_space<smem>>
    %c112 = arith.constant 112 : index
    %701 = memref.load %arg2[%c112] : memref<128xf32, #tpu.memory_space<smem>>
    %c0_309 = arith.constant 0 : index
    %c0_310 = arith.constant 0 : index
    %702 = vector.load %arg1[%c0_309, %c0_310] : memref<2x1024xf32, #tpu.memory_space<vmem>>, vector<2x256xf32>
    %703 = vector.broadcast %701 : f32 to vector<2x256xf32>
    %704 = arith.mulf %703, %702 : vector<2x256xf32>
    %705 = vector.broadcast %700 : f32 to vector<2x256xf32>
    %706 = arith.addf %705, %704 : vector<2x256xf32>
    %c113 = arith.constant 113 : index
    %707 = memref.load %arg2[%c113] : memref<128xf32, #tpu.memory_space<smem>>
    %c0_311 = arith.constant 0 : index
    %c256_312 = arith.constant 256 : index
    %708 = vector.load %arg1[%c0_311, %c256_312] : memref<2x1024xf32, #tpu.memory_space<vmem>>, vector<2x256xf32>
    %709 = vector.broadcast %707 : f32 to vector<2x256xf32>
    %710 = arith.mulf %709, %708 : vector<2x256xf32>
    %711 = arith.addf %706, %710 : vector<2x256xf32>
    %c114 = arith.constant 114 : index
    %712 = memref.load %arg2[%c114] : memref<128xf32, #tpu.memory_space<smem>>
    %c0_313 = arith.constant 0 : index
    %c512_314 = arith.constant 512 : index
    %713 = vector.load %arg1[%c0_313, %c512_314] : memref<2x1024xf32, #tpu.memory_space<vmem>>, vector<2x256xf32>
    %714 = vector.broadcast %712 : f32 to vector<2x256xf32>
    %715 = arith.mulf %714, %713 : vector<2x256xf32>
    %716 = arith.addf %711, %715 : vector<2x256xf32>
    %c115 = arith.constant 115 : index
    %717 = memref.load %arg2[%c115] : memref<128xf32, #tpu.memory_space<smem>>
    %c0_315 = arith.constant 0 : index
    %c768_316 = arith.constant 768 : index
    %718 = vector.load %arg1[%c0_315, %c768_316] : memref<2x1024xf32, #tpu.memory_space<vmem>>, vector<2x256xf32>
    %719 = vector.broadcast %717 : f32 to vector<2x256xf32>
    %720 = arith.mulf %719, %718 : vector<2x256xf32>
    %721 = arith.addf %716, %720 : vector<2x256xf32>
    %cst_317 = arith.constant 0.000000e+00 : f32
    %722 = vector.broadcast %cst_317 : f32 to vector<2x256xf32>
    %723 = arith.maximumf %721, %722 : vector<2x256xf32>
    %c0_318 = arith.constant 0 : index
    %c7168 = arith.constant 7168 : index
    %724 = vector.load %arg9[%c0_318, %c7168] : memref<2x8192xf32, #tpu.memory_space<vmem>>, vector<2x256xf32>
    tpu.vector_store %arg9[%c0_318, %c7168], %723 {strides = array<i32>} : memref<2x8192xf32, #tpu.memory_space<vmem>>, vector<2x256xf32>,
    %c29_319 = arith.constant 29 : index
    %725 = memref.load %arg3[%c29_319] : memref<32xf32, #tpu.memory_space<smem>>
    %c116 = arith.constant 116 : index
    %726 = memref.load %arg2[%c116] : memref<128xf32, #tpu.memory_space<smem>>
    %c0_320 = arith.constant 0 : index
    %c0_321 = arith.constant 0 : index
    %727 = vector.load %arg1[%c0_320, %c0_321] : memref<2x1024xf32, #tpu.memory_space<vmem>>, vector<2x256xf32>
    %728 = vector.broadcast %726 : f32 to vector<2x256xf32>
    %729 = arith.mulf %728, %727 : vector<2x256xf32>
    %730 = vector.broadcast %725 : f32 to vector<2x256xf32>
    %731 = arith.addf %730, %729 : vector<2x256xf32>
    %c117 = arith.constant 117 : index
    %732 = memref.load %arg2[%c117] : memref<128xf32, #tpu.memory_space<smem>>
    %c0_322 = arith.constant 0 : index
    %c256_323 = arith.constant 256 : index
    %733 = vector.load %arg1[%c0_322, %c256_323] : memref<2x1024xf32, #tpu.memory_space<vmem>>, vector<2x256xf32>
    %734 = vector.broadcast %732 : f32 to vector<2x256xf32>
    %735 = arith.mulf %734, %733 : vector<2x256xf32>
    %736 = arith.addf %731, %735 : vector<2x256xf32>
    %c118 = arith.constant 118 : index
    %737 = memref.load %arg2[%c118] : memref<128xf32, #tpu.memory_space<smem>>
    %c0_324 = arith.constant 0 : index
    %c512_325 = arith.constant 512 : index
    %738 = vector.load %arg1[%c0_324, %c512_325] : memref<2x1024xf32, #tpu.memory_space<vmem>>, vector<2x256xf32>
    %739 = vector.broadcast %737 : f32 to vector<2x256xf32>
    %740 = arith.mulf %739, %738 : vector<2x256xf32>
    %741 = arith.addf %736, %740 : vector<2x256xf32>
    %c119 = arith.constant 119 : index
    %742 = memref.load %arg2[%c119] : memref<128xf32, #tpu.memory_space<smem>>
    %c0_326 = arith.constant 0 : index
    %c768_327 = arith.constant 768 : index
    %743 = vector.load %arg1[%c0_326, %c768_327] : memref<2x1024xf32, #tpu.memory_space<vmem>>, vector<2x256xf32>
    %744 = vector.broadcast %742 : f32 to vector<2x256xf32>
    %745 = arith.mulf %744, %743 : vector<2x256xf32>
    %746 = arith.addf %741, %745 : vector<2x256xf32>
    %cst_328 = arith.constant 0.000000e+00 : f32
    %747 = vector.broadcast %cst_328 : f32 to vector<2x256xf32>
    %748 = arith.maximumf %746, %747 : vector<2x256xf32>
    %c0_329 = arith.constant 0 : index
    %c7424 = arith.constant 7424 : index
    %749 = vector.load %arg9[%c0_329, %c7424] : memref<2x8192xf32, #tpu.memory_space<vmem>>, vector<2x256xf32>
    tpu.vector_store %arg9[%c0_329, %c7424], %748 {strides = array<i32>} : memref<2x8192xf32, #tpu.memory_space<vmem>>, vector<2x256xf32>,
    %c30_330 = arith.constant 30 : index
    %750 = memref.load %arg3[%c30_330] : memref<32xf32, #tpu.memory_space<smem>>
    %c120 = arith.constant 120 : index
    %751 = memref.load %arg2[%c120] : memref<128xf32, #tpu.memory_space<smem>>
    %c0_331 = arith.constant 0 : index
    %c0_332 = arith.constant 0 : index
    %752 = vector.load %arg1[%c0_331, %c0_332] : memref<2x1024xf32, #tpu.memory_space<vmem>>, vector<2x256xf32>
    %753 = vector.broadcast %751 : f32 to vector<2x256xf32>
    %754 = arith.mulf %753, %752 : vector<2x256xf32>
    %755 = vector.broadcast %750 : f32 to vector<2x256xf32>
    %756 = arith.addf %755, %754 : vector<2x256xf32>
    %c121 = arith.constant 121 : index
    %757 = memref.load %arg2[%c121] : memref<128xf32, #tpu.memory_space<smem>>
    %c0_333 = arith.constant 0 : index
    %c256_334 = arith.constant 256 : index
    %758 = vector.load %arg1[%c0_333, %c256_334] : memref<2x1024xf32, #tpu.memory_space<vmem>>, vector<2x256xf32>
    %759 = vector.broadcast %757 : f32 to vector<2x256xf32>
    %760 = arith.mulf %759, %758 : vector<2x256xf32>
    %761 = arith.addf %756, %760 : vector<2x256xf32>
    %c122 = arith.constant 122 : index
    %762 = memref.load %arg2[%c122] : memref<128xf32, #tpu.memory_space<smem>>
    %c0_335 = arith.constant 0 : index
    %c512_336 = arith.constant 512 : index
    %763 = vector.load %arg1[%c0_335, %c512_336] : memref<2x1024xf32, #tpu.memory_space<vmem>>, vector<2x256xf32>
    %764 = vector.broadcast %762 : f32 to vector<2x256xf32>
    %765 = arith.mulf %764, %763 : vector<2x256xf32>
    %766 = arith.addf %761, %765 : vector<2x256xf32>
    %c123 = arith.constant 123 : index
    %767 = memref.load %arg2[%c123] : memref<128xf32, #tpu.memory_space<smem>>
    %c0_337 = arith.constant 0 : index
    %c768_338 = arith.constant 768 : index
    %768 = vector.load %arg1[%c0_337, %c768_338] : memref<2x1024xf32, #tpu.memory_space<vmem>>, vector<2x256xf32>
    %769 = vector.broadcast %767 : f32 to vector<2x256xf32>
    %770 = arith.mulf %769, %768 : vector<2x256xf32>
    %771 = arith.addf %766, %770 : vector<2x256xf32>
    %cst_339 = arith.constant 0.000000e+00 : f32
    %772 = vector.broadcast %cst_339 : f32 to vector<2x256xf32>
    %773 = arith.maximumf %771, %772 : vector<2x256xf32>
    %c0_340 = arith.constant 0 : index
    %c7680 = arith.constant 7680 : index
    %774 = vector.load %arg9[%c0_340, %c7680] : memref<2x8192xf32, #tpu.memory_space<vmem>>, vector<2x256xf32>
    tpu.vector_store %arg9[%c0_340, %c7680], %773 {strides = array<i32>} : memref<2x8192xf32, #tpu.memory_space<vmem>>, vector<2x256xf32>,
    %c31_341 = arith.constant 31 : index
    %775 = memref.load %arg3[%c31_341] : memref<32xf32, #tpu.memory_space<smem>>
    %c124 = arith.constant 124 : index
    %776 = memref.load %arg2[%c124] : memref<128xf32, #tpu.memory_space<smem>>
    %c0_342 = arith.constant 0 : index
    %c0_343 = arith.constant 0 : index
    %777 = vector.load %arg1[%c0_342, %c0_343] : memref<2x1024xf32, #tpu.memory_space<vmem>>, vector<2x256xf32>
    %778 = vector.broadcast %776 : f32 to vector<2x256xf32>
    %779 = arith.mulf %778, %777 : vector<2x256xf32>
    %780 = vector.broadcast %775 : f32 to vector<2x256xf32>
    %781 = arith.addf %780, %779 : vector<2x256xf32>
    %c125 = arith.constant 125 : index
    %782 = memref.load %arg2[%c125] : memref<128xf32, #tpu.memory_space<smem>>
    %c0_344 = arith.constant 0 : index
    %c256_345 = arith.constant 256 : index
    %783 = vector.load %arg1[%c0_344, %c256_345] : memref<2x1024xf32, #tpu.memory_space<vmem>>, vector<2x256xf32>
    %784 = vector.broadcast %782 : f32 to vector<2x256xf32>
    %785 = arith.mulf %784, %783 : vector<2x256xf32>
    %786 = arith.addf %781, %785 : vector<2x256xf32>
    %c126 = arith.constant 126 : index
    %787 = memref.load %arg2[%c126] : memref<128xf32, #tpu.memory_space<smem>>
    %c0_346 = arith.constant 0 : index
    %c512_347 = arith.constant 512 : index
    %788 = vector.load %arg1[%c0_346, %c512_347] : memref<2x1024xf32, #tpu.memory_space<vmem>>, vector<2x256xf32>
    %789 = vector.broadcast %787 : f32 to vector<2x256xf32>
    %790 = arith.mulf %789, %788 : vector<2x256xf32>
    %791 = arith.addf %786, %790 : vector<2x256xf32>
    %c127 = arith.constant 127 : index
    %792 = memref.load %arg2[%c127] : memref<128xf32, #tpu.memory_space<smem>>
    %c0_348 = arith.constant 0 : index
    %c768_349 = arith.constant 768 : index
    %793 = vector.load %arg1[%c0_348, %c768_349] : memref<2x1024xf32, #tpu.memory_space<vmem>>, vector<2x256xf32>
    %794 = vector.broadcast %792 : f32 to vector<2x256xf32>
    %795 = arith.mulf %794, %793 : vector<2x256xf32>
    %796 = arith.addf %791, %795 : vector<2x256xf32>
    %cst_350 = arith.constant 0.000000e+00 : f32
    %797 = vector.broadcast %cst_350 : f32 to vector<2x256xf32>
    %798 = arith.maximumf %796, %797 : vector<2x256xf32>
    %c0_351 = arith.constant 0 : index
    %c7936 = arith.constant 7936 : index
    %799 = vector.load %arg9[%c0_351, %c7936] : memref<2x8192xf32, #tpu.memory_space<vmem>>, vector<2x256xf32>
    tpu.vector_store %arg9[%c0_351, %c7936], %798 {strides = array<i32>} : memref<2x8192xf32, #tpu.memory_space<vmem>>, vector<2x256xf32>,
    %c0_352 = arith.constant 0 : index
    %c0_353 = arith.constant 0 : index
    %800 = vector.load %arg4[%c0_352, %c0_353] : memref<32x8192xf32, #tpu.memory_space<vmem>>, vector<32x8192xf32>
    %c0_354 = arith.constant 0 : index
    %c0_355 = arith.constant 0 : index
    %801 = vector.load %arg9[%c0_354, %c0_355] : memref<2x8192xf32, #tpu.memory_space<vmem>>, vector<2x8192xf32>
    %cst_356 = arith.constant dense<0.000000e+00> : vector<32x2xf32>
    %802 = tpu.matmul %800, %801, %cst_356 {dimension_numbers = #tpu.dot_dimension_numbers<[1], [1], [0], [0], [0, 0, 1, 0], [], []>} : vector<32x8192xf32>, vector<2x8192xf32>, vector<32x2xf32> -> vector<32x2xf32>
    %c0_357 = arith.constant 0 : index
    %c0_358 = arith.constant 0 : index
    %c0_359 = arith.constant 0 : index
    %803 = vector.load %arg7[%c0_357, %c0_358, %c0_359] : memref<1x32x2xf32, #tpu.memory_space<vmem>>, vector<1x32x2xf32>
    %804 = vector.shape_cast %803 : vector<1x32x2xf32> to vector<32x2xf32>
    %805 = vector.shape_cast %802 : vector<32x2xf32> to vector<1x32x2xf32>
    tpu.vector_store %arg7[%c0_357, %c0_358, %c0_359], %805 {strides = array<i32>} : memref<1x32x2xf32, #tpu.memory_space<vmem>>, vector<1x32x2xf32>,
    %c0_360 = arith.constant 0 : index
    %c0_361 = arith.constant 0 : index
    %806 = vector.load %arg5[%c0_360, %c0_361] : memref<4x32xf32, #tpu.memory_space<vmem>>, vector<4x32xf32>
    %cst_362 = arith.constant dense<0.000000e+00> : vector<4x2xf32>
    %807 = tpu.matmul %806, %802, %cst_362 {dimension_numbers = #tpu.dot_dimension_numbers<[1], [0], [0], [1], [0, 0, 1, 1], [], []>} : vector<4x32xf32>, vector<32x2xf32>, vector<4x2xf32> -> vector<4x2xf32>
    %c0_363 = arith.constant 0 : index
    %c0_364 = arith.constant 0 : index
    %808 = vector.load %arg6[%c0_363, %c0_364] : memref<4x1xf32, #tpu.memory_space<vmem>>, vector<4x1xf32>
    %809 = vector.broadcast %808 : vector<4x1xf32> to vector<4x2xf32>
    %810 = arith.addf %807, %809 : vector<4x2xf32>
    %c0_365 = arith.constant 0 : index
    %c0_366 = arith.constant 0 : index
    %c0_367 = arith.constant 0 : index
    %811 = vector.load %arg8[%c0_365, %c0_366, %c0_367] : memref<1x4x2xf32, #tpu.memory_space<vmem>>, vector<1x4x2xf32>
    %812 = vector.shape_cast %811 : vector<1x4x2xf32> to vector<4x2xf32>
    %813 = vector.shape_cast %810 : vector<4x2xf32> to vector<1x4x2xf32>
    tpu.vector_store %arg8[%c0_365, %c0_366, %c0_367], %813 {strides = array<i32>} : memref<1x4x2xf32, #tpu.memory_space<vmem>>, vector<1x4x2xf32>,
    return
  }
  func.func @transform_0(%arg0: i32) -> (i32, i32) {
    %c0_i32 = arith.constant 0 : i32
    %c0_i32_0 = arith.constant 0 : i32
    return %arg0, %c0_i32 : i32, i32
  }
  func.func @transform_1(%arg0: i32) -> i32 {
    %c0_i32 = arith.constant 0 : i32
    %c0_i32_0 = arith.constant 0 : i32
    return %c0_i32 : i32
  }
  func.func @transform_2(%arg0: i32) -> i32 {
    %c0_i32 = arith.constant 0 : i32
    %c0_i32_0 = arith.constant 0 : i32
    return %c0_i32 : i32
  }
  func.func @transform_3(%arg0: i32) -> (i32, i32) {
    %c0_i32 = arith.constant 0 : i32
    %c0_i32_0 = arith.constant 0 : i32
    %c0_i32_1 = arith.constant 0 : i32
    return %c0_i32, %c0_i32_0 : i32, i32
  }
  func.func @transform_4(%arg0: i32) -> (i32, i32) {
    %c0_i32 = arith.constant 0 : i32
    %c0_i32_0 = arith.constant 0 : i32
    %c0_i32_1 = arith.constant 0 : i32
    return %c0_i32, %c0_i32_0 : i32, i32
  }
  func.func @transform_5(%arg0: i32) -> (i32, i32) {
    %c0_i32 = arith.constant 0 : i32
    %c0_i32_0 = arith.constant 0 : i32
    %c0_i32_1 = arith.constant 0 : i32
    return %c0_i32, %c0_i32_0 : i32, i32
  }
  func.func @transform_6(%arg0: i32) -> (i32, i32, i32) {
    %c0_i32 = arith.constant 0 : i32
    %c0_i32_0 = arith.constant 0 : i32
    %c0_i32_1 = arith.constant 0 : i32
    return %arg0, %c0_i32, %c0_i32_0 : i32, i32, i32
  }
  func.func @transform_7(%arg0: i32) -> (i32, i32, i32) {
    %c0_i32 = arith.constant 0 : i32
    %c0_i32_0 = arith.constant 0 : i32
    %c0_i32_1 = arith.constant 0 : i32
    return %arg0, %c0_i32, %c0_i32_0 : i32, i32, i32
  }
}

</mosaic_0001>

<llo_original>
// kernel: iclassifier_forward.1
$region0: #{iclassifier_forward.1}
  #allocation0 [shape = 'u32[]', space=smem, size = 0x4, offset = 0x4, fixed_abs, tag = 'smem constant byte address 0x4 - core index']
  #allocation1 [shape = 'u32[144,128]{1,0:T(1,128)}', space=vmem, size = 0x12000, scoped, tag = 'internal scratch']
  #allocation2 [shape = 'f32[2,8192]{1,0:T(2,128)}', space=vmem, size = 0x10000, scoped, tag = 'scratch operand']
  %s0 = inlined_call_operand.vmem [shape: f32[2,1024], index: 0, kind: input, shape index: {}]
  %s1 = inlined_call_operand.vmem [shape: f32[128], index: 1, kind: input, shape index: {}]
  %s2 = inlined_call_operand.vmem [shape: f32[32], index: 2, kind: input, shape index: {}]
  %s3 = inlined_call_operand.vmem [shape: f32[32,8192], index: 3, kind: input, shape index: {}]
  %s4 = inlined_call_operand.vmem [shape: f32[4,32], index: 4, kind: input, shape index: {}]
  %s5 = inlined_call_operand.vmem [shape: f32[4,1], index: 5, kind: input, shape index: {}]
  %s6 = inlined_call_operand.vmem [shape: f32[1,32,2], index: 6, kind: output, shape index: {0}]
  %s7 = inlined_call_operand.vmem [shape: f32[1,4,2], index: 7, kind: output, shape index: {1}]
  %8 = xla_tuple %s6, %s7
  %s9 = sld [smem:[#allocation0]]
  $region50: #{iclassifier_forward.1} parent=0
    _
  %s11 = ssub.s32 1, %s9
  %s12 = scalar_select 0, %s11, %s9
  $region1: #{iclassifier_forward.1} parent=0
    #allocation3 [shape = 'u8[512]{0}', space=smem, size = 0x200, scoped, tag = 'input window, operand 1, single buffered']
    #allocation4 [shape = 's32[1]{0}', space=sflag, size = 0x4, scoped, tag = 'scoped memory for iclassifier_forward.1']
    #allocation5 [shape = 'u8[512]{0}', space=smem, size = 0x200, scoped, tag = 'input window, operand 2, single buffered']
    #allocation6 [shape = 's32[1]{0}', space=sflag, size = 0x4, scoped, tag = 'scoped memory for iclassifier_forward.1']
    %13 = vsyncpa [#allocation4], 0
    %14 = vsyncpa [#allocation6], 0
    // Predicated region
    $region2: #{iclassifier_forward.1} parent=1 // pred_check
      _
    $region3: #{iclassifier_forward.1} parent=1 // pred_check_branch
      %16 = sbr.rel (0) target = $region5
    $region4: #{iclassifier_forward.1} parent=1 // pred_region
      _
    $region5: #{iclassifier_forward.1} parent=1 // pred_fallthru
      _
    // Predicated region
    $region6: #{iclassifier_forward.1} parent=1 // pred_check
      _
    $region7: #{iclassifier_forward.1} parent=1 // pred_check_branch
      %18 = sbr.rel (0) target = $region9
    $region8: #{iclassifier_forward.1} parent=1 // pred_region
      %s20 = ssub.s32 16, 16
      %21 = vsyncadd [#allocation4], %s20
      %s23 = sshll.u32 %s1, 4
      %s24 = int_to_ptr.vmem [resolvable:$true] %s23
      %26 = dma.vmem_to_smem %s24, 16, [#allocation3], [#allocation4]
    $region9: #{iclassifier_forward.1} parent=1 // pred_fallthru
      _
    // Predicated region
    $region10: #{iclassifier_forward.1} parent=1 // pred_check
      _
    $region11: #{iclassifier_forward.1} parent=1 // pred_check_branch
      %28 = sbr.rel (0) target = $region13
    $region12: #{iclassifier_forward.1} parent=1 // pred_region
      %s30 = ssub.s32 16, 16
      %31 = vsyncadd [#allocation6], %s30
      %s33 = sshll.u32 %s2, 4
      %s34 = int_to_ptr.vmem [resolvable:$true] %s33
      %36 = dma.vmem_to_smem %s34, 16, [#allocation5], [#allocation6]
    $region13: #{iclassifier_forward.1} parent=1 // pred_fallthru
      _
    // Predicated region
    $region14: #{iclassifier_forward.1} parent=1 // pred_check
      _
    $region15: #{iclassifier_forward.1} parent=1 // pred_check_branch
      %38 = sbr.rel (0) target = $region17
    $region16: #{iclassifier_forward.1} parent=1 // pred_region
      _
    $region17: #{iclassifier_forward.1} parent=1 // pred_fallthru
      _
    // Predicated region
    $region18: #{iclassifier_forward.1} parent=1 // pred_check
      _
    $region19: #{iclassifier_forward.1} parent=1 // pred_check_branch
      %40 = sbr.rel (0) target = $region21
    $region20: #{iclassifier_forward.1} parent=1 // pred_region
      _
    $region21: #{iclassifier_forward.1} parent=1 // pred_fallthru
      _
    // Predicated region
    $region22: #{iclassifier_forward.1} parent=1 // pred_check
      _
    $region23: #{iclassifier_forward.1} parent=1 // pred_check_branch
      %42 = sbr.rel (0) target = $region25
    $region24: #{iclassifier_forward.1} parent=1 // pred_region
      _
    $region25: #{iclassifier_forward.1} parent=1 // pred_fallthru
      _
    // Predicated region
    $region26: #{iclassifier_forward.1} parent=1 // pred_check
      _
    $region27: #{iclassifier_forward.1} parent=1 // pred_check_branch
      %44 = sbr.rel (0) target = $region29
    $region28: #{iclassifier_forward.1} parent=1 // pred_region
      %45 = dma.done [#allocation4], 16
    $region29: #{iclassifier_forward.1} parent=1 // pred_fallthru
      _
    // Predicated region
    $region30: #{iclassifier_forward.1} parent=1 // pred_check
      _
    $region31: #{iclassifier_forward.1} parent=1 // pred_check_branch
      %47 = sbr.rel (0) target = $region33
    $region32: #{iclassifier_forward.1} parent=1 // pred_region
      %48 = dma.done [#allocation6], 16
    $region33: #{iclassifier_forward.1} parent=1 // pred_fallthru
      _
    %49 = sfence
    %s50 = sld [smem:[#allocation5]]
    %s51 = sld [smem:[#allocation3]]
    %v52 = vld [vmem:[%s0] sm:$0xf]
    %v53 = vstv %s51
    %v54 = vmul.f32 %v53, %v52
    %v55 = vstv %s50
    %v56 = vadd.f32 %v55, %v54
    %s57 = sld [smem:[#allocation3 + $0x1]]
    %v58 = vld [vmem:[%s0 + $0x4] sm:$0xf]
    %v59 = vstv %s57
    %v60 = vmul.f32 %v59, %v58
    %v61 = vadd.f32 %v56, %v60
    %s62 = sld [smem:[#allocation3 + $0x2]]
    %v63 = vld [vmem:[%s0 + $0x8] sm:$0xf]
    %v64 = vstv %s62
    %v65 = vmul.f32 %v64, %v63
    %v66 = vadd.f32 %v61, %v65
    %s67 = sld [smem:[#allocation3 + $0x3]]
    %v68 = vld [vmem:[%s0 + $0xc] sm:$0xf]
    %v69 = vstv %s67
    %v70 = vmul.f32 %v69, %v68
    %v71 = vadd.f32 %v66, %v70
    %v72 = vmax.f32 %v71, 0.0
    %73 = vst [vmem:[#allocation2] sm:$0xf] %v72
    %s74 = sld [smem:[#allocation5 + $0x1]]
    %s75 = sld [smem:[#allocation3 + $0x4]]
    %v76 = vld [vmem:[%s0] sm:$0xf]
    %v77 = vstv %s75
    %v78 = vmul.f32 %v77, %v76
    %v79 = vstv %s74
    %v80 = vadd.f32 %v79, %v78
    %s81 = sld [smem:[#allocation3 + $0x5]]
    %v82 = vld [vmem:[%s0 + $0x4] sm:$0xf]
    %v83 = vstv %s81
    %v84 = vmul.f32 %v83, %v82
    %v85 = vadd.f32 %v80, %v84
    %s86 = sld [smem:[#allocation3 + $0x6]]
    %v87 = vld [vmem:[%s0 + $0x8] sm:$0xf]
    %v88 = vstv %s86
    %v89 = vmul.f32 %v88, %v87
    %v90 = vadd.f32 %v85, %v89
    %s91 = sld [smem:[#allocation3 + $0x7]]
    %v92 = vld [vmem:[%s0 + $0xc] sm:$0xf]
    %v93 = vstv %s91
    %v94 = vmul.f32 %v93, %v92
    %v95 = vadd.f32 %v90, %v94
    %v96 = vmax.f32 %v95, 0.0
    %97 = vst [vmem:[#allocation2 + $0x4] sm:$0xf] %v96
    %s98 = sld [smem:[#allocation5 + $0x2]]
    %s99 = sld [smem:[#allocation3 + $0x8]]
    %v100 = vld [vmem:[%s0] sm:$0xf]
    %v101 = vstv %s99
    %v102 = vmul.f32 %v101, %v100
    %v103 = vstv %s98
    %v104 = vadd.f32 %v103, %v102
    %s105 = sld [smem:[#allocation3 + $0x9]]
    %v106 = vld [vmem:[%s0 + $0x4] sm:$0xf]
    %v107 = vstv %s105
    %v108 = vmul.f32 %v107, %v106
    %v109 = vadd.f32 %v104, %v108
    %s110 = sld [smem:[#allocation3 + $0xa]]
    %v111 = vld [vmem:[%s0 + $0x8] sm:$0xf]
    %v112 = vstv %s110
    %v113 = vmul.f32 %v112, %v111
    %v114 = vadd.f32 %v109, %v113
    %s115 = sld [smem:[#allocation3 + $0xb]]
    %v116 = vld [vmem:[%s0 + $0xc] sm:$0xf]
    %v117 = vstv %s115
    %v118 = vmul.f32 %v117, %v116
    %v119 = vadd.f32 %v114, %v118
    %v120 = vmax.f32 %v119, 0.0
    %121 = vst [vmem:[#allocation2 + $0x8] sm:$0xf] %v120
    %s122 = sld [smem:[#allocation5 + $0x3]]
    %s123 = sld [smem:[#allocation3 + $0xc]]
    %v124 = vld [vmem:[%s0] sm:$0xf]
    %v125 = vstv %s123
    %v126 = vmul.f32 %v125, %v124
    %v127 = vstv %s122
    %v128 = vadd.f32 %v127, %v126
    %s129 = sld [smem:[#allocation3 + $0xd]]
    %v130 = vld [vmem:[%s0 + $0x4] sm:$0xf]
    %v131 = vstv %s129
    %v132 = vmul.f32 %v131, %v130
    %v133 = vadd.f32 %v128, %v132
    %s134 = sld [smem:[#allocation3 + $0xe]]
    %v135 = vld [vmem:[%s0 + $0x8] sm:$0xf]
    %v136 = vstv %s134
    %v137 = vmul.f32 %v136, %v135
    %v138 = vadd.f32 %v133, %v137
    %s139 = sld [smem:[#allocation3 + $0xf]]
    %v140 = vld [vmem:[%s0 + $0xc] sm:$0xf]
    %v141 = vstv %s139
    %v142 = vmul.f32 %v141, %v140
    %v143 = vadd.f32 %v138, %v142
    %v144 = vmax.f32 %v143, 0.0
    %145 = vst [vmem:[#allocation2 + $0xc] sm:$0xf] %v144
    %s146 = sld [smem:[#allocation5 + $0x4]]
    %s147 = sld [smem:[#allocation3 + $0x10]]
    %v148 = vld [vmem:[%s0] sm:$0xf]
    %v149 = vstv %s147
    %v150 = vmul.f32 %v149, %v148
    %v151 = vstv %s146
    %v152 = vadd.f32 %v151, %v150
    %s153 = sld [smem:[#allocation3 + $0x11]]
    %v154 = vld [vmem:[%s0 + $0x4] sm:$0xf]
    %v155 = vstv %s153
    %v156 = vmul.f32 %v155, %v154
    %v157 = vadd.f32 %v152, %v156
    %s158 = sld [smem:[#allocation3 + $0x12]]
    %v159 = vld [vmem:[%s0 + $0x8] sm:$0xf]
    %v160 = vstv %s158
    %v161 = vmul.f32 %v160, %v159
    %v162 = vadd.f32 %v157, %v161
    %s163 = sld [smem:[#allocation3 + $0x13]]
    %v164 = vld [vmem:[%s0 + $0xc] sm:$0xf]
    %v165 = vstv %s163
    %v166 = vmul.f32 %v165, %v164
    %v167 = vadd.f32 %v162, %v166
    %v168 = vmax.f32 %v167, 0.0
    %169 = vst [vmem:[#allocation2 + $0x10] sm:$0xf] %v168
    %s170 = sld [smem:[#allocation5 + $0x5]]
    %s171 = sld [smem:[#allocation3 + $0x14]]
    %v172 = vld [vmem:[%s0] sm:$0xf]
    %v173 = vstv %s171
    %v174 = vmul.f32 %v173, %v172
    %v175 = vstv %s170
    %v176 = vadd.f32 %v175, %v174
    %s177 = sld [smem:[#allocation3 + $0x15]]
    %v178 = vld [vmem:[%s0 + $0x4] sm:$0xf]
    %v179 = vstv %s177
    %v180 = vmul.f32 %v179, %v178
    %v181 = vadd.f32 %v176, %v180
    %s182 = sld [smem:[#allocation3 + $0x16]]
    %v183 = vld [vmem:[%s0 + $0x8] sm:$0xf]
    %v184 = vstv %s182
    %v185 = vmul.f32 %v184, %v183
    %v186 = vadd.f32 %v181, %v185
    %s187 = sld [smem:[#allocation3 + $0x17]]
    %v188 = vld [vmem:[%s0 + $0xc] sm:$0xf]
    %v189 = vstv %s187
    %v190 = vmul.f32 %v189, %v188
    %v191 = vadd.f32 %v186, %v190
    %v192 = vmax.f32 %v191, 0.0
    %193 = vst [vmem:[#allocation2 + $0x14] sm:$0xf] %v192
    %s194 = sld [smem:[#allocation5 + $0x6]]
    %s195 = sld [smem:[#allocation3 + $0x18]]
    %v196 = vld [vmem:[%s0] sm:$0xf]
    %v197 = vstv %s195
    %v198 = vmul.f32 %v197, %v196
    %v199 = vstv %s194
    %v200 = vadd.f32 %v199, %v198
    %s201 = sld [smem:[#allocation3 + $0x19]]
    %v202 = vld [vmem:[%s0 + $0x4] sm:$0xf]
    %v203 = vstv %s201
    %v204 = vmul.f32 %v203, %v202
    %v205 = vadd.f32 %v200, %v204
    %s206 = sld [smem:[#allocation3 + $0x1a]]
    %v207 = vld [vmem:[%s0 + $0x8] sm:$0xf]
    %v208 = vstv %s206
    %v209 = vmul.f32 %v208, %v207
    %v210 = vadd.f32 %v205, %v209
    %s211 = sld [smem:[#allocation3 + $0x1b]]
    %v212 = vld [vmem:[%s0 + $0xc] sm:$0xf]
    %v213 = vstv %s211
    %v214 = vmul.f32 %v213, %v212
    %v215 = vadd.f32 %v210, %v214
    %v216 = vmax.f32 %v215, 0.0
    %217 = vst [vmem:[#allocation2 + $0x18] sm:$0xf] %v216
    %s218 = sld [smem:[#allocation5 + $0x7]]
    %s219 = sld [smem:[#allocation3 + $0x1c]]
    %v220 = vld [vmem:[%s0] sm:$0xf]
    %v221 = vstv %s219
    %v222 = vmul.f32 %v221, %v220
    %v223 = vstv %s218
    %v224 = vadd.f32 %v223, %v222
    %s225 = sld [smem:[#allocation3 + $0x1d]]
    %v226 = vld [vmem:[%s0 + $0x4] sm:$0xf]
    %v227 = vstv %s225
    %v228 = vmul.f32 %v227, %v226
    %v229 = vadd.f32 %v224, %v228
    %s230 = sld [smem:[#allocation3 + $0x1e]]
    %v231 = vld [vmem:[%s0 + $0x8] sm:$0xf]
    %v232 = vstv %s230
    %v233 = vmul.f32 %v232, %v231
    %v234 = vadd.f32 %v229, %v233
    %s235 = sld [smem:[#allocation3 + $0x1f]]
    %v236 = vld [vmem:[%s0 + $0xc] sm:$0xf]
    %v237 = vstv %s235
    %v238 = vmul.f32 %v237, %v236
    %v239 = vadd.f32 %v234, %v238
    %v240 = vmax.f32 %v239, 0.0
    %241 = vst [vmem:[#allocation2 + $0x1c] sm:$0xf] %v240
    %s242 = sld [smem:[#allocation5 + $0x8]]
    %s243 = sld [smem:[#allocation3 + $0x20]]
    %v244 = vld [vmem:[%s0] sm:$0xf]
    %v245 = vstv %s243
    %v246 = vmul.f32 %v245, %v244
    %v247 = vstv %s242
    %v248 = vadd.f32 %v247, %v246
    %s249 = sld [smem:[#allocation3 + $0x21]]
    %v250 = vld [vmem:[%s0 + $0x4] sm:$0xf]
    %v251 = vstv %s249
    %v252 = vmul.f32 %v251, %v250
    %v253 = vadd.f32 %v248, %v252
    %s254 = sld [smem:[#allocation3 + $0x22]]
    %v255 = vld [vmem:[%s0 + $0x8] sm:$0xf]
    %v256 = vstv %s254
    %v257 = vmul.f32 %v256, %v255
    %v258 = vadd.f32 %v253, %v257
    %s259 = sld [smem:[#allocation3 + $0x23]]
    %v260 = vld [vmem:[%s0 + $0xc] sm:$0xf]
    %v261 = vstv %s259
    %v262 = vmul.f32 %v261, %v260
    %v263 = vadd.f32 %v258, %v262
    %v264 = vmax.f32 %v263, 0.0
    %265 = vst [vmem:[#allocation2 + $0x20] sm:$0xf] %v264
    %s266 = sld [smem:[#allocation5 + $0x9]]
    %s267 = sld [smem:[#allocation3 + $0x24]]
    %v268 = vld [vmem:[%s0] sm:$0xf]
    %v269 = vstv %s267
    %v270 = vmul.f32 %v269, %v268
    %v271 = vstv %s266
    %v272 = vadd.f32 %v271, %v270
    %s273 = sld [smem:[#allocation3 + $0x25]]
    %v274 = vld [vmem:[%s0 + $0x4] sm:$0xf]
    %v275 = vstv %s273
    %v276 = vmul.f32 %v275, %v274
    %v277 = vadd.f32 %v272, %v276
    %s278 = sld [smem:[#allocation3 + $0x26]]
    %v279 = vld [vmem:[%s0 + $0x8] sm:$0xf]
    %v280 = vstv %s278
    %v281 = vmul.f32 %v280, %v279
    %v282 = vadd.f32 %v277, %v281
    %s283 = sld [smem:[#allocation3 + $0x27]]
    %v284 = vld [vmem:[%s0 + $0xc] sm:$0xf]
    %v285 = vstv %s283
    %v286 = vmul.f32 %v285, %v284
    %v287 = vadd.f32 %v282, %v286
    %v288 = vmax.f32 %v287, 0.0
    %289 = vst [vmem:[#allocation2 + $0x24] sm:$0xf] %v288
    %s290 = sld [smem:[#allocation5 + $0xa]]
    %s291 = sld [smem:[#allocation3 + $0x28]]
    %v292 = vld [vmem:[%s0] sm:$0xf]
    %v293 = vstv %s291
    %v294 = vmul.f32 %v293, %v292
    %v295 = vstv %s290
    %v296 = vadd.f32 %v295, %v294
    %s297 = sld [smem:[#allocation3 + $0x29]]
    %v298 = vld [vmem:[%s0 + $0x4] sm:$0xf]
    %v299 = vstv %s297
    %v300 = vmul.f32 %v299, %v298
    %v301 = vadd.f32 %v296, %v300
    %s302 = sld [smem:[#allocation3 + $0x2a]]
    %v303 = vld [vmem:[%s0 + $0x8] sm:$0xf]
    %v304 = vstv %s302
    %v305 = vmul.f32 %v304, %v303
    %v306 = vadd.f32 %v301, %v305
    %s307 = sld [smem:[#allocation3 + $0x2b]]
    %v308 = vld [vmem:[%s0 + $0xc] sm:$0xf]
    %v309 = vstv %s307
    %v310 = vmul.f32 %v309, %v308
    %v311 = vadd.f32 %v306, %v310
    %v312 = vmax.f32 %v311, 0.0
    %313 = vst [vmem:[#allocation2 + $0x28] sm:$0xf] %v312
    %s314 = sld [smem:[#allocation5 + $0xb]]
    %s315 = sld [smem:[#allocation3 + $0x2c]]
    %v316 = vld [vmem:[%s0] sm:$0xf]
    %v317 = vstv %s315
    %v318 = vmul.f32 %v317, %v316
    %v319 = vstv %s314
    %v320 = vadd.f32 %v319, %v318
    %s321 = sld [smem:[#allocation3 + $0x2d]]
    %v322 = vld [vmem:[%s0 + $0x4] sm:$0xf]
    %v323 = vstv %s321
    %v324 = vmul.f32 %v323, %v322
    %v325 = vadd.f32 %v320, %v324
    %s326 = sld [smem:[#allocation3 + $0x2e]]
    %v327 = vld [vmem:[%s0 + $0x8] sm:$0xf]
    %v328 = vstv %s326
    %v329 = vmul.f32 %v328, %v327
    %v330 = vadd.f32 %v325, %v329
    %s331 = sld [smem:[#allocation3 + $0x2f]]
    %v332 = vld [vmem:[%s0 + $0xc] sm:$0xf]
    %v333 = vstv %s331
    %v334 = vmul.f32 %v333, %v332
    %v335 = vadd.f32 %v330, %v334
    %v336 = vmax.f32 %v335, 0.0
    %337 = vst [vmem:[#allocation2 + $0x2c] sm:$0xf] %v336
    %s338 = sld [smem:[#allocation5 + $0xc]]
    %s339 = sld [smem:[#allocation3 + $0x30]]
    %v340 = vld [vmem:[%s0] sm:$0xf]
    %v341 = vstv %s339
    %v342 = vmul.f32 %v341, %v340
    %v343 = vstv %s338
    %v344 = vadd.f32 %v343, %v342
    %s345 = sld [smem:[#allocation3 + $0x31]]
    %v346 = vld [vmem:[%s0 + $0x4] sm:$0xf]
    %v347 = vstv %s345
    %v348 = vmul.f32 %v347, %v346
    %v349 = vadd.f32 %v344, %v348
    %s350 = sld [smem:[#allocation3 + $0x32]]
    %v351 = vld [vmem:[%s0 + $0x8] sm:$0xf]
    %v352 = vstv %s350
    %v353 = vmul.f32 %v352, %v351
    %v354 = vadd.f32 %v349, %v353
    %s355 = sld [smem:[#allocation3 + $0x33]]
    %v356 = vld [vmem:[%s0 + $0xc] sm:$0xf]
    %v357 = vstv %s355
    %v358 = vmul.f32 %v357, %v356
    %v359 = vadd.f32 %v354, %v358
    %v360 = vmax.f32 %v359, 0.0
    %361 = vst [vmem:[#allocation2 + $0x30] sm:$0xf] %v360
    %s362 = sld [smem:[#allocation5 + $0xd]]
    %s363 = sld [smem:[#allocation3 + $0x34]]
    %v364 = vld [vmem:[%s0] sm:$0xf]
    %v365 = vstv %s363
    %v366 = vmul.f32 %v365, %v364
    %v367 = vstv %s362
    %v368 = vadd.f32 %v367, %v366
    %s369 = sld [smem:[#allocation3 + $0x35]]
    %v370 = vld [vmem:[%s0 + $0x4] sm:$0xf]
    %v371 = vstv %s369
    %v372 = vmul.f32 %v371, %v370
    %v373 = vadd.f32 %v368, %v372
    %s374 = sld [smem:[#allocation3 + $0x36]]
    %v375 = vld [vmem:[%s0 + $0x8] sm:$0xf]
    %v376 = vstv %s374
    %v377 = vmul.f32 %v376, %v375
    %v378 = vadd.f32 %v373, %v377
    %s379 = sld [smem:[#allocation3 + $0x37]]
    %v380 = vld [vmem:[%s0 + $0xc] sm:$0xf]
    %v381 = vstv %s379
    %v382 = vmul.f32 %v381, %v380
    %v383 = vadd.f32 %v378, %v382
    %v384 = vmax.f32 %v383, 0.0
    %385 = vst [vmem:[#allocation2 + $0x34] sm:$0xf] %v384
    %s386 = sld [smem:[#allocation5 + $0xe]]
    %s387 = sld [smem:[#allocation3 + $0x38]]
    %v388 = vld [vmem:[%s0] sm:$0xf]
    %v389 = vstv %s387
    %v390 = vmul.f32 %v389, %v388
    %v391 = vstv %s386
    %v392 = vadd.f32 %v391, %v390
    %s393 = sld [smem:[#allocation3 + $0x39]]
    %v394 = vld [vmem:[%s0 + $0x4] sm:$0xf]
    %v395 = vstv %s393
    %v396 = vmul.f32 %v395, %v394
    %v397 = vadd.f32 %v392, %v396
    %s398 = sld [smem:[#allocation3 + $0x3a]]
    %v399 = vld [vmem:[%s0 + $0x8] sm:$0xf]
    %v400 = vstv %s398
    %v401 = vmul.f32 %v400, %v399
    %v402 = vadd.f32 %v397, %v401
    %s403 = sld [smem:[#allocation3 + $0x3b]]
    %v404 = vld [vmem:[%s0 + $0xc] sm:$0xf]
    %v405 = vstv %s403
    %v406 = vmul.f32 %v405, %v404
    %v407 = vadd.f32 %v402, %v406
    %v408 = vmax.f32 %v407, 0.0
    %409 = vst [vmem:[#allocation2 + $0x38] sm:$0xf] %v408
    %s410 = sld [smem:[#allocation5 + $0xf]]
    %s411 = sld [smem:[#allocation3 + $0x3c]]
    %v412 = vld [vmem:[%s0] sm:$0xf]
    %v413 = vstv %s411
    %v414 = vmul.f32 %v413, %v412
    %v415 = vstv %s410
    %v416 = vadd.f32 %v415, %v414
    %s417 = sld [smem:[#allocation3 + $0x3d]]
    %v418 = vld [vmem:[%s0 + $0x4] sm:$0xf]
    %v419 = vstv %s417
    %v420 = vmul.f32 %v419, %v418
    %v421 = vadd.f32 %v416, %v420
    %s422 = sld [smem:[#allocation3 + $0x3e]]
    %v423 = vld [vmem:[%s0 + $0x8] sm:$0xf]
    %v424 = vstv %s422
    %v425 = vmul.f32 %v424, %v423
    %v426 = vadd.f32 %v421, %v425
    %s427 = sld [smem:[#allocation3 + $0x3f]]
    %v428 = vld [vmem:[%s0 + $0xc] sm:$0xf]
    %v429 = vstv %s427
    %v430 = vmul.f32 %v429, %v428
    %v431 = vadd.f32 %v426, %v430
    %v432 = vmax.f32 %v431, 0.0
    %433 = vst [vmem:[#allocation2 + $0x3c] sm:$0xf] %v432
    %s434 = sld [smem:[#allocation5 + $0x10]]
    %s435 = sld [smem:[#allocation3 + $0x40]]
    %v436 = vld [vmem:[%s0] sm:$0xf]
    %v437 = vstv %s435
    %v438 = vmul.f32 %v437, %v436
    %v439 = vstv %s434
    %v440 = vadd.f32 %v439, %v438
    %s441 = sld [smem:[#allocation3 + $0x41]]
    %v442 = vld [vmem:[%s0 + $0x4] sm:$0xf]
    %v443 = vstv %s441
    %v444 = vmul.f32 %v443, %v442
    %v445 = vadd.f32 %v440, %v444
    %s446 = sld [smem:[#allocation3 + $0x42]]
    %v447 = vld [vmem:[%s0 + $0x8] sm:$0xf]
    %v448 = vstv %s446
    %v449 = vmul.f32 %v448, %v447
    %v450 = vadd.f32 %v445, %v449
    %s451 = sld [smem:[#allocation3 + $0x43]]
    %v452 = vld [vmem:[%s0 + $0xc] sm:$0xf]
    %v453 = vstv %s451
    %v454 = vmul.f32 %v453, %v452
    %v455 = vadd.f32 %v450, %v454
    %v456 = vmax.f32 %v455, 0.0
    %457 = vst [vmem:[#allocation2 + $0x40] sm:$0xf] %v456
    %s458 = sld [smem:[#allocation5 + $0x11]]
    %s459 = sld [smem:[#allocation3 + $0x44]]
    %v460 = vld [vmem:[%s0] sm:$0xf]
    %v461 = vstv %s459
    %v462 = vmul.f32 %v461, %v460
    %v463 = vstv %s458
    %v464 = vadd.f32 %v463, %v462
    %s465 = sld [smem:[#allocation3 + $0x45]]
    %v466 = vld [vmem:[%s0 + $0x4] sm:$0xf]
    %v467 = vstv %s465
    %v468 = vmul.f32 %v467, %v466
    %v469 = vadd.f32 %v464, %v468
    %s470 = sld [smem:[#allocation3 + $0x46]]
    %v471 = vld [vmem:[%s0 + $0x8] sm:$0xf]
    %v472 = vstv %s470
    %v473 = vmul.f32 %v472, %v471
    %v474 = vadd.f32 %v469, %v473
    %s475 = sld [smem:[#allocation3 + $0x47]]
    %v476 = vld [vmem:[%s0 + $0xc] sm:$0xf]
    %v477 = vstv %s475
    %v478 = vmul.f32 %v477, %v476
    %v479 = vadd.f32 %v474, %v478
    %v480 = vmax.f32 %v479, 0.0
    %481 = vst [vmem:[#allocation2 + $0x44] sm:$0xf] %v480
    %s482 = sld [smem:[#allocation5 + $0x12]]
    %s483 = sld [smem:[#allocation3 + $0x48]]
    %v484 = vld [vmem:[%s0] sm:$0xf]
    %v485 = vstv %s483
    %v486 = vmul.f32 %v485, %v484
    %v487 = vstv %s482
    %v488 = vadd.f32 %v487, %v486
    %s489 = sld [smem:[#allocation3 + $0x49]]
    %v490 = vld [vmem:[%s0 + $0x4] sm:$0xf]
    %v491 = vstv %s489
    %v492 = vmul.f32 %v491, %v490
    %v493 = vadd.f32 %v488, %v492
    %s494 = sld [smem:[#allocation3 + $0x4a]]
    %v495 = vld [vmem:[%s0 + $0x8] sm:$0xf]
    %v496 = vstv %s494
    %v497 = vmul.f32 %v496, %v495
    %v498 = vadd.f32 %v493, %v497
    %s499 = sld [smem:[#allocation3 + $0x4b]]
    %v500 = vld [vmem:[%s0 + $0xc] sm:$0xf]
    %v501 = vstv %s499
    %v502 = vmul.f32 %v501, %v500
    %v503 = vadd.f32 %v498, %v502
    %v504 = vmax.f32 %v503, 0.0
    %505 = vst [vmem:[#allocation2 + $0x48] sm:$0xf] %v504
    %s506 = sld [smem:[#allocation5 + $0x13]]
    %s507 = sld [smem:[#allocation3 + $0x4c]]
    %v508 = vld [vmem:[%s0] sm:$0xf]
    %v509 = vstv %s507
    %v510 = vmul.f32 %v509, %v508
    %v511 = vstv %s506
    %v512 = vadd.f32 %v511, %v510
    %s513 = sld [smem:[#allocation3 + $0x4d]]
    %v514 = vld [vmem:[%s0 + $0x4] sm:$0xf]
    %v515 = vstv %s513
    %v516 = vmul.f32 %v515, %v514
    %v517 = vadd.f32 %v512, %v516
    %s518 = sld [smem:[#allocation3 + $0x4e]]
    %v519 = vld [vmem:[%s0 + $0x8] sm:$0xf]
    %v520 = vstv %s518
    %v521 = vmul.f32 %v520, %v519
    %v522 = vadd.f32 %v517, %v521
    %s523 = sld [smem:[#allocation3 + $0x4f]]
    %v524 = vld [vmem:[%s0 + $0xc] sm:$0xf]
    %v525 = vstv %s523
    %v526 = vmul.f32 %v525, %v524
    %v527 = vadd.f32 %v522, %v526
    %v528 = vmax.f32 %v527, 0.0
    %529 = vst [vmem:[#allocation2 + $0x4c] sm:$0xf] %v528
    %s530 = sld [smem:[#allocation5 + $0x14]]
    %s531 = sld [smem:[#allocation3 + $0x50]]
    %v532 = vld [vmem:[%s0] sm:$0xf]
    %v533 = vstv %s531
    %v534 = vmul.f32 %v533, %v532
    %v535 = vstv %s530
    %v536 = vadd.f32 %v535, %v534
    %s537 = sld [smem:[#allocation3 + $0x51]]
    %v538 = vld [vmem:[%s0 + $0x4] sm:$0xf]
    %v539 = vstv %s537
    %v540 = vmul.f32 %v539, %v538
    %v541 = vadd.f32 %v536, %v540
    %s542 = sld [smem:[#allocation3 + $0x52]]
    %v543 = vld [vmem:[%s0 + $0x8] sm:$0xf]
    %v544 = vstv %s542
    %v545 = vmul.f32 %v544, %v543
    %v546 = vadd.f32 %v541, %v545
    %s547 = sld [smem:[#allocation3 + $0x53]]
    %v548 = vld [vmem:[%s0 + $0xc] sm:$0xf]
    %v549 = vstv %s547
    %v550 = vmul.f32 %v549, %v548
    %v551 = vadd.f32 %v546, %v550
    %v552 = vmax.f32 %v551, 0.0
    %553 = vst [vmem:[#allocation2 + $0x50] sm:$0xf] %v552
    %s554 = sld [smem:[#allocation5 + $0x15]]
    %s555 = sld [smem:[#allocation3 + $0x54]]
    %v556 = vld [vmem:[%s0] sm:$0xf]
    %v557 = vstv %s555
    %v558 = vmul.f32 %v557, %v556
    %v559 = vstv %s554
    %v560 = vadd.f32 %v559, %v558
    %s561 = sld [smem:[#allocation3 + $0x55]]
    %v562 = vld [vmem:[%s0 + $0x4] sm:$0xf]
    %v563 = vstv %s561
    %v564 = vmul.f32 %v563, %v562
    %v565 = vadd.f32 %v560, %v564
    %s566 = sld [smem:[#allocation3 + $0x56]]
    %v567 = vld [vmem:[%s0 + $0x8] sm:$0xf]
    %v568 = vstv %s566
    %v569 = vmul.f32 %v568, %v567
    %v570 = vadd.f32 %v565, %v569
    %s571 = sld [smem:[#allocation3 + $0x57]]
    %v572 = vld [vmem:[%s0 + $0xc] sm:$0xf]
    %v573 = vstv %s571
    %v574 = vmul.f32 %v573, %v572
    %v575 = vadd.f32 %v570, %v574
    %v576 = vmax.f32 %v575, 0.0
    %577 = vst [vmem:[#allocation2 + $0x54] sm:$0xf] %v576
    %s578 = sld [smem:[#allocation5 + $0x16]]
    %s579 = sld [smem:[#allocation3 + $0x58]]
    %v580 = vld [vmem:[%s0] sm:$0xf]
    %v581 = vstv %s579
    %v582 = vmul.f32 %v581, %v580
    %v583 = vstv %s578
    %v584 = vadd.f32 %v583, %v582
    %s585 = sld [smem:[#allocation3 + $0x59]]
    %v586 = vld [vmem:[%s0 + $0x4] sm:$0xf]
    %v587 = vstv %s585
    %v588 = vmul.f32 %v587, %v586
    %v589 = vadd.f32 %v584, %v588
    %s590 = sld [smem:[#allocation3 + $0x5a]]
    %v591 = vld [vmem:[%s0 + $0x8] sm:$0xf]
    %v592 = vstv %s590
    %v593 = vmul.f32 %v592, %v591
    %v594 = vadd.f32 %v589, %v593
    %s595 = sld [smem:[#allocation3 + $0x5b]]
    %v596 = vld [vmem:[%s0 + $0xc] sm:$0xf]
    %v597 = vstv %s595
    %v598 = vmul.f32 %v597, %v596
    %v599 = vadd.f32 %v594, %v598
    %v600 = vmax.f32 %v599, 0.0
    %601 = vst [vmem:[#allocation2 + $0x58] sm:$0xf] %v600
    %s602 = sld [smem:[#allocation5 + $0x17]]
    %s603 = sld [smem:[#allocation3 + $0x5c]]
    %v604 = vld [vmem:[%s0] sm:$0xf]
    %v605 = vstv %s603
    %v606 = vmul.f32 %v605, %v604
    %v607 = vstv %s602
    %v608 = vadd.f32 %v607, %v606
    %s609 = sld [smem:[#allocation3 + $0x5d]]
    %v610 = vld [vmem:[%s0 + $0x4] sm:$0xf]
    %v611 = vstv %s609
    %v612 = vmul.f32 %v611, %v610
    %v613 = vadd.f32 %v608, %v612
    %s614 = sld [smem:[#allocation3 + $0x5e]]
    %v615 = vld [vmem:[%s0 + $0x8] sm:$0xf]
    %v616 = vstv %s614
    %v617 = vmul.f32 %v616, %v615
    %v618 = vadd.f32 %v613, %v617
    %s619 = sld [smem:[#allocation3 + $0x5f]]
    %v620 = vld [vmem:[%s0 + $0xc] sm:$0xf]
    %v621 = vstv %s619
    %v622 = vmul.f32 %v621, %v620
    %v623 = vadd.f32 %v618, %v622
    %v624 = vmax.f32 %v623, 0.0
    %625 = vst [vmem:[#allocation2 + $0x5c] sm:$0xf] %v624
    %s626 = sld [smem:[#allocation5 + $0x18]]
    %s627 = sld [smem:[#allocation3 + $0x60]]
    %v628 = vld [vmem:[%s0] sm:$0xf]
    %v629 = vstv %s627
    %v630 = vmul.f32 %v629, %v628
    %v631 = vstv %s626
    %v632 = vadd.f32 %v631, %v630
    %s633 = sld [smem:[#allocation3 + $0x61]]
    %v634 = vld [vmem:[%s0 + $0x4] sm:$0xf]
    %v635 = vstv %s633
    %v636 = vmul.f32 %v635, %v634
    %v637 = vadd.f32 %v632, %v636
    %s638 = sld [smem:[#allocation3 + $0x62]]
    %v639 = vld [vmem:[%s0 + $0x8] sm:$0xf]
    %v640 = vstv %s638
    %v641 = vmul.f32 %v640, %v639
    %v642 = vadd.f32 %v637, %v641
    %s643 = sld [smem:[#allocation3 + $0x63]]
    %v644 = vld [vmem:[%s0 + $0xc] sm:$0xf]
    %v645 = vstv %s643
    %v646 = vmul.f32 %v645, %v644
    %v647 = vadd.f32 %v642, %v646
    %v648 = vmax.f32 %v647, 0.0
    %649 = vst [vmem:[#allocation2 + $0x60] sm:$0xf] %v648
    %s650 = sld [smem:[#allocation5 + $0x19]]
    %s651 = sld [smem:[#allocation3 + $0x64]]
    %v652 = vld [vmem:[%s0] sm:$0xf]
    %v653 = vstv %s651
    %v654 = vmul.f32 %v653, %v652
    %v655 = vstv %s650
    %v656 = vadd.f32 %v655, %v654
    %s657 = sld [smem:[#allocation3 + $0x65]]
    %v658 = vld [vmem:[%s0 + $0x4] sm:$0xf]
    %v659 = vstv %s657
    %v660 = vmul.f32 %v659, %v658
    %v661 = vadd.f32 %v656, %v660
    %s662 = sld [smem:[#allocation3 + $0x66]]
    %v663 = vld [vmem:[%s0 + $0x8] sm:$0xf]
    %v664 = vstv %s662
    %v665 = vmul.f32 %v664, %v663
    %v666 = vadd.f32 %v661, %v665
    %s667 = sld [smem:[#allocation3 + $0x67]]
    %v668 = vld [vmem:[%s0 + $0xc] sm:$0xf]
    %v669 = vstv %s667
    %v670 = vmul.f32 %v669, %v668
    %v671 = vadd.f32 %v666, %v670
    %v672 = vmax.f32 %v671, 0.0
    %673 = vst [vmem:[#allocation2 + $0x64] sm:$0xf] %v672
    %s674 = sld [smem:[#allocation5 + $0x1a]]
    %s675 = sld [smem:[#allocation3 + $0x68]]
    %v676 = vld [vmem:[%s0] sm:$0xf]
    %v677 = vstv %s675
    %v678 = vmul.f32 %v677, %v676
    %v679 = vstv %s674
    %v680 = vadd.f32 %v679, %v678
    %s681 = sld [smem:[#allocation3 + $0x69]]
    %v682 = vld [vmem:[%s0 + $0x4] sm:$0xf]
    %v683 = vstv %s681
    %v684 = vmul.f32 %v683, %v682
    %v685 = vadd.f32 %v680, %v684
    %s686 = sld [smem:[#allocation3 + $0x6a]]
    %v687 = vld [vmem:[%s0 + $0x8] sm:$0xf]
    %v688 = vstv %s686
    %v689 = vmul.f32 %v688, %v687
    %v690 = vadd.f32 %v685, %v689
    %s691 = sld [smem:[#allocation3 + $0x6b]]
    %v692 = vld [vmem:[%s0 + $0xc] sm:$0xf]
    %v693 = vstv %s691
    %v694 = vmul.f32 %v693, %v692
    %v695 = vadd.f32 %v690, %v694
    %v696 = vmax.f32 %v695, 0.0
    %697 = vst [vmem:[#allocation2 + $0x68] sm:$0xf] %v696
    %s698 = sld [smem:[#allocation5 + $0x1b]]
    %s699 = sld [smem:[#allocation3 + $0x6c]]
    %v700 = vld [vmem:[%s0] sm:$0xf]
    %v701 = vstv %s699
    %v702 = vmul.f32 %v701, %v700
    %v703 = vstv %s698
    %v704 = vadd.f32 %v703, %v702
    %s705 = sld [smem:[#allocation3 + $0x6d]]
    %v706 = vld [vmem:[%s0 + $0x4] sm:$0xf]
    %v707 = vstv %s705
    %v708 = vmul.f32 %v707, %v706
    %v709 = vadd.f32 %v704, %v708
    %s710 = sld [smem:[#allocation3 + $0x6e]]
    %v711 = vld [vmem:[%s0 + $0x8] sm:$0xf]
    %v712 = vstv %s710
    %v713 = vmul.f32 %v712, %v711
    %v714 = vadd.f32 %v709, %v713
    %s715 = sld [smem:[#allocation3 + $0x6f]]
    %v716 = vld [vmem:[%s0 + $0xc] sm:$0xf]
    %v717 = vstv %s715
    %v718 = vmul.f32 %v717, %v716
    %v719 = vadd.f32 %v714, %v718
    %v720 = vmax.f32 %v719, 0.0
    %721 = vst [vmem:[#allocation2 + $0x6c] sm:$0xf] %v720
    %s722 = sld [smem:[#allocation5 + $0x1c]]
    %s723 = sld [smem:[#allocation3 + $0x70]]
    %v724 = vld [vmem:[%s0] sm:$0xf]
    %v725 = vstv %s723
    %v726 = vmul.f32 %v725, %v724
    %v727 = vstv %s722
    %v728 = vadd.f32 %v727, %v726
    %s729 = sld [smem:[#allocation3 + $0x71]]
    %v730 = vld [vmem:[%s0 + $0x4] sm:$0xf]
    %v731 = vstv %s729
    %v732 = vmul.f32 %v731, %v730
    %v733 = vadd.f32 %v728, %v732
    %s734 = sld [smem:[#allocation3 + $0x72]]
    %v735 = vld [vmem:[%s0 + $0x8] sm:$0xf]
    %v736 = vstv %s734
    %v737 = vmul.f32 %v736, %v735
    %v738 = vadd.f32 %v733, %v737
    %s739 = sld [smem:[#allocation3 + $0x73]]
    %v740 = vld [vmem:[%s0 + $0xc] sm:$0xf]
    %v741 = vstv %s739
    %v742 = vmul.f32 %v741, %v740
    %v743 = vadd.f32 %v738, %v742
    %v744 = vmax.f32 %v743, 0.0
    %745 = vst [vmem:[#allocation2 + $0x70] sm:$0xf] %v744
    %s746 = sld [smem:[#allocation5 + $0x1d]]
    %s747 = sld [smem:[#allocation3 + $0x74]]
    %v748 = vld [vmem:[%s0] sm:$0xf]
    %v749 = vstv %s747
    %v750 = vmul.f32 %v749, %v748
    %v751 = vstv %s746
    %v752 = vadd.f32 %v751, %v750
    %s753 = sld [smem:[#allocation3 + $0x75]]
    %v754 = vld [vmem:[%s0 + $0x4] sm:$0xf]
    %v755 = vstv %s753
    %v756 = vmul.f32 %v755, %v754
    %v757 = vadd.f32 %v752, %v756
    %s758 = sld [smem:[#allocation3 + $0x76]]
    %v759 = vld [vmem:[%s0 + $0x8] sm:$0xf]
    %v760 = vstv %s758
    %v761 = vmul.f32 %v760, %v759
    %v762 = vadd.f32 %v757, %v761
    %s763 = sld [smem:[#allocation3 + $0x77]]
    %v764 = vld [vmem:[%s0 + $0xc] sm:$0xf]
    %v765 = vstv %s763
    %v766 = vmul.f32 %v765, %v764
    %v767 = vadd.f32 %v762, %v766
    %v768 = vmax.f32 %v767, 0.0
    %769 = vst [vmem:[#allocation2 + $0x74] sm:$0xf] %v768
    %s770 = sld [smem:[#allocation5 + $0x1e]]
    %s771 = sld [smem:[#allocation3 + $0x78]]
    %v772 = vld [vmem:[%s0] sm:$0xf]
    %v773 = vstv %s771
    %v774 = vmul.f32 %v773, %v772
    %v775 = vstv %s770
    %v776 = vadd.f32 %v775, %v774
    %s777 = sld [smem:[#allocation3 + $0x79]]
    %v778 = vld [vmem:[%s0 + $0x4] sm:$0xf]
    %v779 = vstv %s777
    %v780 = vmul.f32 %v779, %v778
    %v781 = vadd.f32 %v776, %v780
    %s782 = sld [smem:[#allocation3 + $0x7a]]
    %v783 = vld [vmem:[%s0 + $0x8] sm:$0xf]
    %v784 = vstv %s782
    %v785 = vmul.f32 %v784, %v783
    %v786 = vadd.f32 %v781, %v785
    %s787 = sld [smem:[#allocation3 + $0x7b]]
    %v788 = vld [vmem:[%s0 + $0xc] sm:$0xf]
    %v789 = vstv %s787
    %v790 = vmul.f32 %v789, %v788
    %v791 = vadd.f32 %v786, %v790
    %v792 = vmax.f32 %v791, 0.0
    %793 = vst [vmem:[#allocation2 + $0x78] sm:$0xf] %v792
    %s794 = sld [smem:[#allocation5 + $0x1f]]
    %s795 = sld [smem:[#allocation3 + $0x7c]]
    %v796 = vld [vmem:[%s0] sm:$0xf]
    %v797 = vstv %s795
    %v798 = vmul.f32 %v797, %v796
    %v799 = vstv %s794
    %v800 = vadd.f32 %v799, %v798
    %s801 = sld [smem:[#allocation3 + $0x7d]]
    %v802 = vld [vmem:[%s0 + $0x4] sm:$0xf]
    %v803 = vstv %s801
    %v804 = vmul.f32 %v803, %v802
    %v805 = vadd.f32 %v800, %v804
    %s806 = sld [smem:[#allocation3 + $0x7e]]
    %v807 = vld [vmem:[%s0 + $0x8] sm:$0xf]
    %v808 = vstv %s806
    %v809 = vmul.f32 %v808, %v807
    %v810 = vadd.f32 %v805, %v809
    %s811 = sld [smem:[#allocation3 + $0x7f]]
    %v812 = vld [vmem:[%s0 + $0xc] sm:$0xf]
    %v813 = vstv %s811
    %v814 = vmul.f32 %v813, %v812
    %v815 = vadd.f32 %v810, %v814
    %v816 = vmax.f32 %v815, 0.0
    %817 = vst [vmem:[#allocation2 + $0x7c] sm:$0xf] %v816
    %v818 = vld [vmem:[%s3] sm:$0xff]
    %v819 = vld [vmem:[%s3 + $0x8] sm:$0xff]
    %v820 = vld [vmem:[%s3 + $0x10] sm:$0xff]
    %v821 = vld [vmem:[%s3 + $0x18] sm:$0xff]
    %v822 = vld [vmem:[%s3 + $0x20] sm:$0xff]
    %v823 = vld [vmem:[%s3 + $0x28] sm:$0xff]
    %v824 = vld [vmem:[%s3 + $0x30] sm:$0xff]
    %v825 = vld [vmem:[%s3 + $0x38] sm:$0xff]
    %v826 = vld [vmem:[%s3 + $0x40] sm:$0xff]
    %v827 = vld [vmem:[%s3 + $0x48] sm:$0xff]
    %v828 = vld [vmem:[%s3 + $0x50] sm:$0xff]
    %v829 = vld [vmem:[%s3 + $0x58] sm:$0xff]
    %v830 = vld [vmem:[%s3 + $0x60] sm:$0xff]
    %v831 = vld [vmem:[%s3 + $0x68] sm:$0xff]
    %v832 = vld [vmem:[%s3 + $0x70] sm:$0xff]
    %v833 = vld [vmem:[%s3 + $0x78] sm:$0xff]
    %v834 = vld [vmem:[%s3 + $0x80] sm:$0xff]
    %v835 = vld [vmem:[%s3 + $0x88] sm:$0xff]
    %v836 = vld [vmem:[%s3 + $0x90] sm:$0xff]
    %v837 = vld [vmem:[%s3 + $0x98] sm:$0xff]
    %v838 = vld [vmem:[%s3 + $0xa0] sm:$0xff]
    %v839 = vld [vmem:[%s3 + $0xa8] sm:$0xff]
    %v840 = vld [vmem:[%s3 + $0xb0] sm:$0xff]
    %v841 = vld [vmem:[%s3 + $0xb8] sm:$0xff]
    %v842 = vld [vmem:[%s3 + $0xc0] sm:$0xff]
    %v843 = vld [vmem:[%s3 + $0xc8] sm:$0xff]
    %v844 = vld [vmem:[%s3 + $0xd0] sm:$0xff]
    %v845 = vld [vmem:[%s3 + $0xd8] sm:$0xff]
    %v846 = vld [vmem:[%s3 + $0xe0] sm:$0xff]
    %v847 = vld [vmem:[%s3 + $0xe8] sm:$0xff]
    %v848 = vld [vmem:[%s3 + $0xf0] sm:$0xff]
    %v849 = vld [vmem:[%s3 + $0xf8] sm:$0xff]
    %v850 = vld [vmem:[%s3 + $0x100] sm:$0xff]
    %v851 = vld [vmem:[%s3 + $0x108] sm:$0xff]
    %v852 = vld [vmem:[%s3 + $0x110] sm:$0xff]
    %v853 = vld [vmem:[%s3 + $0x118] sm:$0xff]
    %v854 = vld [vmem:[%s3 + $0x120] sm:$0xff]
    %v855 = vld [vmem:[%s3 + $0x128] sm:$0xff]
    %v856 = vld [vmem:[%s3 + $0x130] sm:$0xff]
    %v857 = vld [vmem:[%s3 + $0x138] sm:$0xff]
    %v858 = vld [vmem:[%s3 + $0x140] sm:$0xff]
    %v859 = vld [vmem:[%s3 + $0x148] sm:$0xff]
    %v860 = vld [vmem:[%s3 + $0x150] sm:$0xff]
    %v861 = vld [vmem:[%s3 + $0x158] sm:$0xff]
    %v862 = vld [vmem:[%s3 + $0x160] sm:$0xff]
    %v863 = vld [vmem:[%s3 + $0x168] sm:$0xff]
    %v864 = vld [vmem:[%s3 + $0x170] sm:$0xff]
    %v865 = vld [vmem:[%s3 + $0x178] sm:$0xff]
    %v866 = vld [vmem:[%s3 + $0x180] sm:$0xff]
    %v867 = vld [vmem:[%s3 + $0x188] sm:$0xff]
    %v868 = vld [vmem:[%s3 + $0x190] sm:$0xff]
    %v869 = vld [vmem:[%s3 + $0x198] sm:$0xff]
    %v870 = vld [vmem:[%s3 + $0x1a0] sm:$0xff]
    %v871 = vld [vmem:[%s3 + $0x1a8] sm:$0xff]
    %v872 = vld [vmem:[%s3 + $0x1b0] sm:$0xff]
    %v873 = vld [vmem:[%s3 + $0x1b8] sm:$0xff]
    %v874 = vld [vmem:[%s3 + $0x1c0] sm:$0xff]
    %v875 = vld [vmem:[%s3 + $0x1c8] sm:$0xff]
    %v876 = vld [vmem:[%s3 + $0x1d0] sm:$0xff]
    %v877 = vld [vmem:[%s3 + $0x1d8] sm:$0xff]
    %v878 = vld [vmem:[%s3 + $0x1e0] sm:$0xff]
    %v879 = vld [vmem:[%s3 + $0x1e8] sm:$0xff]
    %v880 = vld [vmem:[%s3 + $0x1f0] sm:$0xff]
    %v881 = vld [vmem:[%s3 + $0x1f8] sm:$0xff]
    %v882 = vld [vmem:[%s3 + $0x200] sm:$0xff]
    %v883 = vld [vmem:[%s3 + $0x208] sm:$0xff]
    %v884 = vld [vmem:[%s3 + $0x210] sm:$0xff]
    %v885 = vld [vmem:[%s3 + $0x218] sm:$0xff]
    %v886 = vld [vmem:[%s3 + $0x220] sm:$0xff]
    %v887 = vld [vmem:[%s3 + $0x228] sm:$0xff]
    %v888 = vld [vmem:[%s3 + $0x230] sm:$0xff]
    %v889 = vld [vmem:[%s3 + $0x238] sm:$0xff]
    %v890 = vld [vmem:[%s3 + $0x240] sm:$0xff]
    %v891 = vld [vmem:[%s3 + $0x248] sm:$0xff]
    %v892 = vld [vmem:[%s3 + $0x250] sm:$0xff]
    %v893 = vld [vmem:[%s3 + $0x258] sm:$0xff]
    %v894 = vld [vmem:[%s3 + $0x260] sm:$0xff]
    %v895 = vld [vmem:[%s3 + $0x268] sm:$0xff]
    %v896 = vld [vmem:[%s3 + $0x270] sm:$0xff]
    %v897 = vld [vmem:[%s3 + $0x278] sm:$0xff]
    %v898 = vld [vmem:[%s3 + $0x280] sm:$0xff]
    %v899 = vld [vmem:[%s3 + $0x288] sm:$0xff]
    %v900 = vld [vmem:[%s3 + $0x290] sm:$0xff]
    %v901 = vld [vmem:[%s3 + $0x298] sm:$0xff]
    %v902 = vld [vmem:[%s3 + $0x2a0] sm:$0xff]
    %v903 = vld [vmem:[%s3 + $0x2a8] sm:$0xff]
    %v904 = vld [vmem:[%s3 + $0x2b0] sm:$0xff]
    %v905 = vld [vmem:[%s3 + $0x2b8] sm:$0xff]
    %v906 = vld [vmem:[%s3 + $0x2c0] sm:$0xff]
    %v907 = vld [vmem:[%s3 + $0x2c8] sm:$0xff]
    %v908 = vld [vmem:[%s3 + $0x2d0] sm:$0xff]
    %v909 = vld [vmem:[%s3 + $0x2d8] sm:$0xff]
    %v910 = vld [vmem:[%s3 + $0x2e0] sm:$0xff]
    %v911 = vld [vmem:[%s3 + $0x2e8] sm:$0xff]
    %v912 = vld [vmem:[%s3 + $0x2f0] sm:$0xff]
    %v913 = vld [vmem:[%s3 + $0x2f8] sm:$0xff]
    %v914 = vld [vmem:[%s3 + $0x300] sm:$0xff]
    %v915 = vld [vmem:[%s3 + $0x308] sm:$0xff]
    %v916 = vld [vmem:[%s3 + $0x310] sm:$0xff]
    %v917 = vld [vmem:[%s3 + $0x318] sm:$0xff]
    %v918 = vld [vmem:[%s3 + $0x320] sm:$0xff]
    %v919 = vld [vmem:[%s3 + $0x328] sm:$0xff]
    %v920 = vld [vmem:[%s3 + $0x330] sm:$0xff]
    %v921 = vld [vmem:[%s3 + $0x338] sm:$0xff]
    %v922 = vld [vmem:[%s3 + $0x340] sm:$0xff]
    %v923 = vld [vmem:[%s3 + $0x348] sm:$0xff]
    %v924 = vld [vmem:[%s3 + $0x350] sm:$0xff]
    %v925 = vld [vmem:[%s3 + $0x358] sm:$0xff]
    %v926 = vld [vmem:[%s3 + $0x360] sm:$0xff]
    %v927 = vld [vmem:[%s3 + $0x368] sm:$0xff]
    %v928 = vld [vmem:[%s3 + $0x370] sm:$0xff]
    %v929 = vld [vmem:[%s3 + $0x378] sm:$0xff]
    %v930 = vld [vmem:[%s3 + $0x380] sm:$0xff]
    %v931 = vld [vmem:[%s3 + $0x388] sm:$0xff]
    %v932 = vld [vmem:[%s3 + $0x390] sm:$0xff]
    %v933 = vld [vmem:[%s3 + $0x398] sm:$0xff]
    %v934 = vld [vmem:[%s3 + $0x3a0] sm:$0xff]
    %v935 = vld [vmem:[%s3 + $0x3a8] sm:$0xff]
    %v936 = vld [vmem:[%s3 + $0x3b0] sm:$0xff]
    %v937 = vld [vmem:[%s3 + $0x3b8] sm:$0xff]
    %v938 = vld [vmem:[%s3 + $0x3c0] sm:$0xff]
    %v939 = vld [vmem:[%s3 + $0x3c8] sm:$0xff]
    %v940 = vld [vmem:[%s3 + $0x3d0] sm:$0xff]
    %v941 = vld [vmem:[%s3 + $0x3d8] sm:$0xff]
    %v942 = vld [vmem:[%s3 + $0x3e0] sm:$0xff]
    %v943 = vld [vmem:[%s3 + $0x3e8] sm:$0xff]
    %v944 = vld [vmem:[%s3 + $0x3f0] sm:$0xff]
    %v945 = vld [vmem:[%s3 + $0x3f8] sm:$0xff]
    %v946 = vld [vmem:[%s3 + $0x400] sm:$0xff]
    %v947 = vld [vmem:[%s3 + $0x408] sm:$0xff]
    %v948 = vld [vmem:[%s3 + $0x410] sm:$0xff]
    %v949 = vld [vmem:[%s3 + $0x418] sm:$0xff]
    %v950 = vld [vmem:[%s3 + $0x420] sm:$0xff]
    %v951 = vld [vmem:[%s3 + $0x428] sm:$0xff]
    %v952 = vld [vmem:[%s3 + $0x430] sm:$0xff]
    %v953 = vld [vmem:[%s3 + $0x438] sm:$0xff]
    %v954 = vld [vmem:[%s3 + $0x440] sm:$0xff]
    %v955 = vld [vmem:[%s3 + $0x448] sm:$0xff]
    %v956 = vld [vmem:[%s3 + $0x450] sm:$0xff]
    %v957 = vld [vmem:[%s3 + $0x458] sm:$0xff]
    %v958 = vld [vmem:[%s3 + $0x460] sm:$0xff]
    %v959 = vld [vmem:[%s3 + $0x468] sm:$0xff]
    %v960 = vld [vmem:[%s3 + $0x470] sm:$0xff]
    %v961 = vld [vmem:[%s3 + $0x478] sm:$0xff]
    %v962 = vld [vmem:[%s3 + $0x480] sm:$0xff]
    %v963 = vld [vmem:[%s3 + $0x488] sm:$0xff]
    %v964 = vld [vmem:[%s3 + $0x490] sm:$0xff]
    %v965 = vld [vmem:[%s3 + $0x498] sm:$0xff]
    %v966 = vld [vmem:[%s3 + $0x4a0] sm:$0xff]
    %v967 = vld [vmem:[%s3 + $0x4a8] sm:$0xff]
    %v968 = vld [vmem:[%s3 + $0x4b0] sm:$0xff]
    %v969 = vld [vmem:[%s3 + $0x4b8] sm:$0xff]
    %v970 = vld [vmem:[%s3 + $0x4c0] sm:$0xff]
    %v971 = vld [vmem:[%s3 + $0x4c8] sm:$0xff]
    %v972 = vld [vmem:[%s3 + $0x4d0] sm:$0xff]
    %v973 = vld [vmem:[%s3 + $0x4d8] sm:$0xff]
    %v974 = vld [vmem:[%s3 + $0x4e0] sm:$0xff]
    %v975 = vld [vmem:[%s3 + $0x4e8] sm:$0xff]
    %v976 = vld [vmem:[%s3 + $0x4f0] sm:$0xff]
    %v977 = vld [vmem:[%s3 + $0x4f8] sm:$0xff]
    %v978 = vld [vmem:[%s3 + $0x500] sm:$0xff]
    %v979 = vld [vmem:[%s3 + $0x508] sm:$0xff]
    %v980 = vld [vmem:[%s3 + $0x510] sm:$0xff]
    %v981 = vld [vmem:[%s3 + $0x518] sm:$0xff]
    %v982 = vld [vmem:[%s3 + $0x520] sm:$0xff]
    %v983 = vld [vmem:[%s3 + $0x528] sm:$0xff]
    %v984 = vld [vmem:[%s3 + $0x530] sm:$0xff]
    %v985 = vld [vmem:[%s3 + $0x538] sm:$0xff]
    %v986 = vld [vmem:[%s3 + $0x540] sm:$0xff]
    %v987 = vld [vmem:[%s3 + $0x548] sm:$0xff]
    %v988 = vld [vmem:[%s3 + $0x550] sm:$0xff]
    %v989 = vld [vmem:[%s3 + $0x558] sm:$0xff]
    %v990 = vld [vmem:[%s3 + $0x560] sm:$0xff]
    %v991 = vld [vmem:[%s3 + $0x568] sm:$0xff]
    %v992 = vld [vmem:[%s3 + $0x570] sm:$0xff]
    %v993 = vld [vmem:[%s3 + $0x578] sm:$0xff]
    %v994 = vld [vmem:[%s3 + $0x580] sm:$0xff]
    %v995 = vld [vmem:[%s3 + $0x588] sm:$0xff]
    %v996 = vld [vmem:[%s3 + $0x590] sm:$0xff]
    %v997 = vld [vmem:[%s3 + $0x598] sm:$0xff]
    %v998 = vld [vmem:[%s3 + $0x5a0] sm:$0xff]
    %v999 = vld [vmem:[%s3 + $0x5a8] sm:$0xff]
    %v1000 = vld [vmem:[%s3 + $0x5b0] sm:$0xff]
    %v1001 = vld [vmem:[%s3 + $0x5b8] sm:$0xff]
    %v1002 = vld [vmem:[%s3 + $0x5c0] sm:$0xff]
    %v1003 = vld [vmem:[%s3 + $0x5c8] sm:$0xff]
    %v1004 = vld [vmem:[%s3 + $0x5d0] sm:$0xff]
    %v1005 = vld [vmem:[%s3 + $0x5d8] sm:$0xff]
    %v1006 = vld [vmem:[%s3 + $0x5e0] sm:$0xff]
    %v1007 = vld [vmem:[%s3 + $0x5e8] sm:$0xff]
    %v1008 = vld [vmem:[%s3 + $0x5f0] sm:$0xff]
    %v1009 = vld [vmem:[%s3 + $0x5f8] sm:$0xff]
    %v1010 = vld [vmem:[%s3 + $0x600] sm:$0xff]
    %v1011 = vld [vmem:[%s3 + $0x608] sm:$0xff]
    %v1012 = vld [vmem:[%s3 + $0x610] sm:$0xff]
    %v1013 = vld [vmem:[%s3 + $0x618] sm:$0xff]
    %v1014 = vld [vmem:[%s3 + $0x620] sm:$0xff]
    %v1015 = vld [vmem:[%s3 + $0x628] sm:$0xff]
    %v1016 = vld [vmem:[%s3 + $0x630] sm:$0xff]
    %v1017 = vld [vmem:[%s3 + $0x638] sm:$0xff]
    %v1018 = vld [vmem:[%s3 + $0x640] sm:$0xff]
    %v1019 = vld [vmem:[%s3 + $0x648] sm:$0xff]
    %v1020 = vld [vmem:[%s3 + $0x650] sm:$0xff]
    %v1021 = vld [vmem:[%s3 + $0x658] sm:$0xff]
    %v1022 = vld [vmem:[%s3 + $0x660] sm:$0xff]
    %v1023 = vld [vmem:[%s3 + $0x668] sm:$0xff]
    %v1024 = vld [vmem:[%s3 + $0x670] sm:$0xff]
    %v1025 = vld [vmem:[%s3 + $0x678] sm:$0xff]
    %v1026 = vld [vmem:[%s3 + $0x680] sm:$0xff]
    %v1027 = vld [vmem:[%s3 + $0x688] sm:$0xff]
    %v1028 = vld [vmem:[%s3 + $0x690] sm:$0xff]
    %v1029 = vld [vmem:[%s3 + $0x698] sm:$0xff]
    %v1030 = vld [vmem:[%s3 + $0x6a0] sm:$0xff]
    %v1031 = vld [vmem:[%s3 + $0x6a8] sm:$0xff]
    %v1032 = vld [vmem:[%s3 + $0x6b0] sm:$0xff]
    %v1033 = vld [vmem:[%s3 + $0x6b8] sm:$0xff]
    %v1034 = vld [vmem:[%s3 + $0x6c0] sm:$0xff]
    %v1035 = vld [vmem:[%s3 + $0x6c8] sm:$0xff]
    %v1036 = vld [vmem:[%s3 + $0x6d0] sm:$0xff]
    %v1037 = vld [vmem:[%s3 + $0x6d8] sm:$0xff]
    %v1038 = vld [vmem:[%s3 + $0x6e0] sm:$0xff]
    %v1039 = vld [vmem:[%s3 + $0x6e8] sm:$0xff]
    %v1040 = vld [vmem:[%s3 + $0x6f0] sm:$0xff]
    %v1041 = vld [vmem:[%s3 + $0x6f8] sm:$0xff]
    %v1042 = vld [vmem:[%s3 + $0x700] sm:$0xff]
    %v1043 = vld [vmem:[%s3 + $0x708] sm:$0xff]
    %v1044 = vld [vmem:[%s3 + $0x710] sm:$0xff]
    %v1045 = vld [vmem:[%s3 + $0x718] sm:$0xff]
    %v1046 = vld [vmem:[%s3 + $0x720] sm:$0xff]
    %v1047 = vld [vmem:[%s3 + $0x728] sm:$0xff]
    %v1048 = vld [vmem:[%s3 + $0x730] sm:$0xff]
    %v1049 = vld [vmem:[%s3 + $0x738] sm:$0xff]
    %v1050 = vld [vmem:[%s3 + $0x740] sm:$0xff]
    %v1051 = vld [vmem:[%s3 + $0x748] sm:$0xff]
    %v1052 = vld [vmem:[%s3 + $0x750] sm:$0xff]
    %v1053 = vld [vmem:[%s3 + $0x758] sm:$0xff]
    %v1054 = vld [vmem:[%s3 + $0x760] sm:$0xff]
    %v1055 = vld [vmem:[%s3 + $0x768] sm:$0xff]
    %v1056 = vld [vmem:[%s3 + $0x770] sm:$0xff]
    %v1057 = vld [vmem:[%s3 + $0x778] sm:$0xff]
    %v1058 = vld [vmem:[%s3 + $0x780] sm:$0xff]
    %v1059 = vld [vmem:[%s3 + $0x788] sm:$0xff]
    %v1060 = vld [vmem:[%s3 + $0x790] sm:$0xff]
    %v1061 = vld [vmem:[%s3 + $0x798] sm:$0xff]
    %v1062 = vld [vmem:[%s3 + $0x7a0] sm:$0xff]
    %v1063 = vld [vmem:[%s3 + $0x7a8] sm:$0xff]
    %v1064 = vld [vmem:[%s3 + $0x7b0] sm:$0xff]
    %v1065 = vld [vmem:[%s3 + $0x7b8] sm:$0xff]
    %v1066 = vld [vmem:[%s3 + $0x7c0] sm:$0xff]
    %v1067 = vld [vmem:[%s3 + $0x7c8] sm:$0xff]
    %v1068 = vld [vmem:[%s3 + $0x7d0] sm:$0xff]
    %v1069 = vld [vmem:[%s3 + $0x7d8] sm:$0xff]
    %v1070 = vld [vmem:[%s3 + $0x7e0] sm:$0xff]
    %v1071 = vld [vmem:[%s3 + $0x7e8] sm:$0xff]
    %v1072 = vld [vmem:[%s3 + $0x7f0] sm:$0xff]
    %v1073 = vld [vmem:[%s3 + $0x7f8] sm:$0xff]
    %v1074 = vld [vmem:[#allocation2] sm:$0xff]
    %v1075 = vld [vmem:[#allocation2 + $0x8] sm:$0xff]
    %v1076 = vld [vmem:[#allocation2 + $0x10] sm:$0xff]
    %v1077 = vld [vmem:[#allocation2 + $0x18] sm:$0xff]
    %v1078 = vld [vmem:[#allocation2 + $0x20] sm:$0xff]
    %v1079 = vld [vmem:[#allocation2 + $0x28] sm:$0xff]
    %v1080 = vld [vmem:[#allocation2 + $0x30] sm:$0xff]
    %v1081 = vld [vmem:[#allocation2 + $0x38] sm:$0xff]
    %v1082 = vld [vmem:[#allocation2 + $0x40] sm:$0xff]
    %v1083 = vld [vmem:[#allocation2 + $0x48] sm:$0xff]
    %v1084 = vld [vmem:[#allocation2 + $0x50] sm:$0xff]
    %v1085 = vld [vmem:[#allocation2 + $0x58] sm:$0xff]
    %v1086 = vld [vmem:[#allocation2 + $0x60] sm:$0xff]
    %v1087 = vld [vmem:[#allocation2 + $0x68] sm:$0xff]
    %v1088 = vld [vmem:[#allocation2 + $0x70] sm:$0xff]
    %v1089 = vld [vmem:[#allocation2 + $0x78] sm:$0xff]
    %v1106 = vcombine.high %v1074, %v1074
    %v1108 = vunpack.c.l.s4 1983009808
    %v1109 = vunpack.c.0.s8 %v1108
    %v1110 = vlaneseq
    %v1111 = vshrl.u32 %v1110, 7
    %v1112 = vsub.s32 %v1109, %v1111
    %v1113 = vrot.slane %v1074, %v1112
    %v1115 = vunpack.c.l.s4 1983009808
    %v1116 = vunpack.c.0.s8 %v1115
    %v1117 = vlaneseq
    %v1118 = vshrl.u32 %v1117, 7
    %v1119 = vsub.s32 %v1116, %v1118
    %v1120 = vrot.slane %v1106, %v1119
    %v1121 = vcombine.high %v1113, %v1113
    %v1122 = vcombine.high %v1120, %v1120
    %v1123 = vcombine.high %v1075, %v1075
    %v1125 = vunpack.c.l.s4 1983009808
    %v1126 = vunpack.c.0.s8 %v1125
    %v1127 = vlaneseq
    %v1128 = vshrl.u32 %v1127, 7
    %v1129 = vsub.s32 %v1126, %v1128
    %v1130 = vrot.slane %v1075, %v1129
    %v1132 = vunpack.c.l.s4 1983009808
    %v1133 = vunpack.c.0.s8 %v1132
    %v1134 = vlaneseq
    %v1135 = vshrl.u32 %v1134, 7
    %v1136 = vsub.s32 %v1133, %v1135
    %v1137 = vrot.slane %v1123, %v1136
    %v1138 = vcombine.high %v1130, %v1130
    %v1139 = vcombine.high %v1137, %v1137
    %v1140 = vcombine.high %v1076, %v1076
    %v1142 = vunpack.c.l.s4 1983009808
    %v1143 = vunpack.c.0.s8 %v1142
    %v1144 = vlaneseq
    %v1145 = vshrl.u32 %v1144, 7
    %v1146 = vsub.s32 %v1143, %v1145
    %v1147 = vrot.slane %v1076, %v1146
    %v1149 = vunpack.c.l.s4 1983009808
    %v1150 = vunpack.c.0.s8 %v1149
    %v1151 = vlaneseq
    %v1152 = vshrl.u32 %v1151, 7
    %v1153 = vsub.s32 %v1150, %v1152
    %v1154 = vrot.slane %v1140, %v1153
    %v1155 = vcombine.high %v1147, %v1147
    %v1156 = vcombine.high %v1154, %v1154
    %v1157 = vcombine.high %v1077, %v1077
    %v1159 = vunpack.c.l.s4 1983009808
    %v1160 = vunpack.c.0.s8 %v1159
    %v1161 = vlaneseq
    %v1162 = vshrl.u32 %v1161, 7
    %v1163 = vsub.s32 %v1160, %v1162
    %v1164 = vrot.slane %v1077, %v1163
    %v1166 = vunpack.c.l.s4 1983009808
    %v1167 = vunpack.c.0.s8 %v1166
    %v1168 = vlaneseq
    %v1169 = vshrl.u32 %v1168, 7
    %v1170 = vsub.s32 %v1167, %v1169
    %v1171 = vrot.slane %v1157, %v1170
    %v1172 = vcombine.high %v1164, %v1164
    %v1173 = vcombine.high %v1171, %v1171
    %v1174 = vcombine.high %v1078, %v1078
    %v1176 = vunpack.c.l.s4 1983009808
    %v1177 = vunpack.c.0.s8 %v1176
    %v1178 = vlaneseq
    %v1179 = vshrl.u32 %v1178, 7
    %v1180 = vsub.s32 %v1177, %v1179
    %v1181 = vrot.slane %v1078, %v1180
    %v1183 = vunpack.c.l.s4 1983009808
    %v1184 = vunpack.c.0.s8 %v1183
    %v1185 = vlaneseq
    %v1186 = vshrl.u32 %v1185, 7
    %v1187 = vsub.s32 %v1184, %v1186
    %v1188 = vrot.slane %v1174, %v1187
    %v1189 = vcombine.high %v1181, %v1181
    %v1190 = vcombine.high %v1188, %v1188
    %v1191 = vcombine.high %v1079, %v1079
    %v1193 = vunpack.c.l.s4 1983009808
    %v1194 = vunpack.c.0.s8 %v1193
    %v1195 = vlaneseq
    %v1196 = vshrl.u32 %v1195, 7
    %v1197 = vsub.s32 %v1194, %v1196
    %v1198 = vrot.slane %v1079, %v1197
    %v1200 = vunpack.c.l.s4 1983009808
    %v1201 = vunpack.c.0.s8 %v1200
    %v1202 = vlaneseq
    %v1203 = vshrl.u32 %v1202, 7
    %v1204 = vsub.s32 %v1201, %v1203
    %v1205 = vrot.slane %v1191, %v1204
    %v1206 = vcombine.high %v1198, %v1198
    %v1207 = vcombine.high %v1205, %v1205
    %v1208 = vcombine.high %v1080, %v1080
    %v1210 = vunpack.c.l.s4 1983009808
    %v1211 = vunpack.c.0.s8 %v1210
    %v1212 = vlaneseq
    %v1213 = vshrl.u32 %v1212, 7
    %v1214 = vsub.s32 %v1211, %v1213
    %v1215 = vrot.slane %v1080, %v1214
    %v1217 = vunpack.c.l.s4 1983009808
    %v1218 = vunpack.c.0.s8 %v1217
    %v1219 = vlaneseq
    %v1220 = vshrl.u32 %v1219, 7
    %v1221 = vsub.s32 %v1218, %v1220
    %v1222 = vrot.slane %v1208, %v1221
    %v1223 = vcombine.high %v1215, %v1215
    %v1224 = vcombine.high %v1222, %v1222
    %v1225 = vcombine.high %v1081, %v1081
    %v1227 = vunpack.c.l.s4 1983009808
    %v1228 = vunpack.c.0.s8 %v1227
    %v1229 = vlaneseq
    %v1230 = vshrl.u32 %v1229, 7
    %v1231 = vsub.s32 %v1228, %v1230
    %v1232 = vrot.slane %v1081, %v1231
    %v1234 = vunpack.c.l.s4 1983009808
    %v1235 = vunpack.c.0.s8 %v1234
    %v1236 = vlaneseq
    %v1237 = vshrl.u32 %v1236, 7
    %v1238 = vsub.s32 %v1235, %v1237
    %v1239 = vrot.slane %v1225, %v1238
    %v1240 = vcombine.high %v1232, %v1232
    %v1241 = vcombine.high %v1239, %v1239
    %v1242 = vcombine.high %v1082, %v1082
    %v1244 = vunpack.c.l.s4 1983009808
    %v1245 = vunpack.c.0.s8 %v1244
    %v1246 = vlaneseq
    %v1247 = vshrl.u32 %v1246, 7
    %v1248 = vsub.s32 %v1245, %v1247
    %v1249 = vrot.slane %v1082, %v1248
    %v1251 = vunpack.c.l.s4 1983009808
    %v1252 = vunpack.c.0.s8 %v1251
    %v1253 = vlaneseq
    %v1254 = vshrl.u32 %v1253, 7
    %v1255 = vsub.s32 %v1252, %v1254
    %v1256 = vrot.slane %v1242, %v1255
    %v1257 = vcombine.high %v1249, %v1249
    %v1258 = vcombine.high %v1256, %v1256
    %v1259 = vcombine.high %v1083, %v1083
    %v1261 = vunpack.c.l.s4 1983009808
    %v1262 = vunpack.c.0.s8 %v1261
    %v1263 = vlaneseq
    %v1264 = vshrl.u32 %v1263, 7
    %v1265 = vsub.s32 %v1262, %v1264
    %v1266 = vrot.slane %v1083, %v1265
    %v1268 = vunpack.c.l.s4 1983009808
    %v1269 = vunpack.c.0.s8 %v1268
    %v1270 = vlaneseq
    %v1271 = vshrl.u32 %v1270, 7
    %v1272 = vsub.s32 %v1269, %v1271
    %v1273 = vrot.slane %v1259, %v1272
    %v1274 = vcombine.high %v1266, %v1266
    %v1275 = vcombine.high %v1273, %v1273
    %v1276 = vcombine.high %v1084, %v1084
    %v1278 = vunpack.c.l.s4 1983009808
    %v1279 = vunpack.c.0.s8 %v1278
    %v1280 = vlaneseq
    %v1281 = vshrl.u32 %v1280, 7
    %v1282 = vsub.s32 %v1279, %v1281
    %v1283 = vrot.slane %v1084, %v1282
    %v1285 = vunpack.c.l.s4 1983009808
    %v1286 = vunpack.c.0.s8 %v1285
    %v1287 = vlaneseq
    %v1288 = vshrl.u32 %v1287, 7
    %v1289 = vsub.s32 %v1286, %v1288
    %v1290 = vrot.slane %v1276, %v1289
    %v1291 = vcombine.high %v1283, %v1283
    %v1292 = vcombine.high %v1290, %v1290
    %v1293 = vcombine.high %v1085, %v1085
    %v1295 = vunpack.c.l.s4 1983009808
    %v1296 = vunpack.c.0.s8 %v1295
    %v1297 = vlaneseq
    %v1298 = vshrl.u32 %v1297, 7
    %v1299 = vsub.s32 %v1296, %v1298
    %v1300 = vrot.slane %v1085, %v1299
    %v1302 = vunpack.c.l.s4 1983009808
    %v1303 = vunpack.c.0.s8 %v1302
    %v1304 = vlaneseq
    %v1305 = vshrl.u32 %v1304, 7
    %v1306 = vsub.s32 %v1303, %v1305
    %v1307 = vrot.slane %v1293, %v1306
    %v1308 = vcombine.high %v1300, %v1300
    %v1309 = vcombine.high %v1307, %v1307
    %v1310 = vcombine.high %v1086, %v1086
    %v1312 = vunpack.c.l.s4 1983009808
    %v1313 = vunpack.c.0.s8 %v1312
    %v1314 = vlaneseq
    %v1315 = vshrl.u32 %v1314, 7
    %v1316 = vsub.s32 %v1313, %v1315
    %v1317 = vrot.slane %v1086, %v1316
    %v1319 = vunpack.c.l.s4 1983009808
    %v1320 = vunpack.c.0.s8 %v1319
    %v1321 = vlaneseq
    %v1322 = vshrl.u32 %v1321, 7
    %v1323 = vsub.s32 %v1320, %v1322
    %v1324 = vrot.slane %v1310, %v1323
    %v1325 = vcombine.high %v1317, %v1317
    %v1326 = vcombine.high %v1324, %v1324
    %v1327 = vcombine.high %v1087, %v1087
    %v1329 = vunpack.c.l.s4 1983009808
    %v1330 = vunpack.c.0.s8 %v1329
    %v1331 = vlaneseq
    %v1332 = vshrl.u32 %v1331, 7
    %v1333 = vsub.s32 %v1330, %v1332
    %v1334 = vrot.slane %v1087, %v1333
    %v1336 = vunpack.c.l.s4 1983009808
    %v1337 = vunpack.c.0.s8 %v1336
    %v1338 = vlaneseq
    %v1339 = vshrl.u32 %v1338, 7
    %v1340 = vsub.s32 %v1337, %v1339
    %v1341 = vrot.slane %v1327, %v1340
    %v1342 = vcombine.high %v1334, %v1334
    %v1343 = vcombine.high %v1341, %v1341
    %v1344 = vcombine.high %v1088, %v1088
    %v1346 = vunpack.c.l.s4 1983009808
    %v1347 = vunpack.c.0.s8 %v1346
    %v1348 = vlaneseq
    %v1349 = vshrl.u32 %v1348, 7
    %v1350 = vsub.s32 %v1347, %v1349
    %v1351 = vrot.slane %v1088, %v1350
    %v1353 = vunpack.c.l.s4 1983009808
    %v1354 = vunpack.c.0.s8 %v1353
    %v1355 = vlaneseq
    %v1356 = vshrl.u32 %v1355, 7
    %v1357 = vsub.s32 %v1354, %v1356
    %v1358 = vrot.slane %v1344, %v1357
    %v1359 = vcombine.high %v1351, %v1351
    %v1360 = vcombine.high %v1358, %v1358
    %v1361 = vcombine.high %v1089, %v1089
    %v1363 = vunpack.c.l.s4 1983009808
    %v1364 = vunpack.c.0.s8 %v1363
    %v1365 = vlaneseq
    %v1366 = vshrl.u32 %v1365, 7
    %v1367 = vsub.s32 %v1364, %v1366
    %v1368 = vrot.slane %v1089, %v1367
    %v1370 = vunpack.c.l.s4 1983009808
    %v1371 = vunpack.c.0.s8 %v1370
    %v1372 = vlaneseq
    %v1373 = vshrl.u32 %v1372, 7
    %v1374 = vsub.s32 %v1371, %v1373
    %v1375 = vrot.slane %v1361, %v1374
    %v1376 = vcombine.high %v1368, %v1368
    %v1377 = vcombine.high %v1375, %v1375
    %1442 = vmatprep.subr.mxu0 %v1121
    %1443 = vmatpush1.xpose.msra.mxu0 %v1113
    %1444 = vmatprep.subr.mxu0 0.0
    %1445 = vmatpush1.xpose.msra.mxu0 0.0
    %1446 = vmatprep.subr.mxu0 0.0
    %1447 = vmatpush1.xpose.msra.mxu0 0.0
    %1448 = vmatprep.subr.mxu0 0.0
    %1449 = vmatpush1.xpose.msra.mxu0 0.0
    %1450 = vmatprep.subr.mxu0 0.0
    %1451 = vmatpush1.xpose.msra.mxu0 0.0
    %1452 = vmatprep.subr.mxu0 0.0
    %1453 = vmatpush1.xpose.msra.mxu0 0.0
    %1454 = vmatprep.subr.mxu0 0.0
    %1455 = vmatpush1.xpose.msra.mxu0 0.0
    %1456 = vmatprep.subr.mxu0 0.0
    %1457 = vmatpush1.xpose.msra.mxu0 0.0
    %1458 = vmatprep.subr.mxu0 0.0
    %1459 = vmatpush1.xpose.msra.mxu0 0.0
    %1460 = vmatprep.subr.mxu0 0.0
    %1461 = vmatpush1.xpose.msra.mxu0 0.0
    %1462 = vmatprep.subr.mxu0 0.0
    %1463 = vmatpush1.xpose.msra.mxu0 0.0
    %1464 = vmatprep.subr.mxu0 0.0
    %1465 = vmatpush1.xpose.msra.mxu0 0.0
    %1466 = vmatprep.subr.mxu0 0.0
    %1467 = vmatpush1.xpose.msra.mxu0 0.0
    %1468 = vmatprep.subr.mxu0 0.0
    %1469 = vmatpush1.xpose.msra.mxu0 0.0
    %1470 = vmatprep.subr.mxu0 0.0
    %1471 = vmatpush1.xpose.msra.mxu0 0.0
    %1472 = vmatprep.subr.mxu0 0.0
    %1473 = vmatpush1.xpose.msra.mxu0 0.0
    %1474 = vmatprep.subr.mxu0 0.0
    %1475 = vmatpush1.xpose.msra.mxu0 0.0
    %1476 = vmatprep.subr.mxu0 0.0
    %1477 = vmatpush1.xpose.msra.mxu0 0.0
    %1478 = vmatprep.subr.mxu0 0.0
    %1479 = vmatpush1.xpose.msra.mxu0 0.0
    %1480 = vmatprep.subr.mxu0 0.0
    %1481 = vmatpush1.xpose.msra.mxu0 0.0
    %1482 = vmatprep.subr.mxu0 0.0
    %1483 = vmatpush1.xpose.msra.mxu0 0.0
    %1484 = vmatprep.subr.mxu0 0.0
    %1485 = vmatpush1.xpose.msra.mxu0 0.0
    %1486 = vmatprep.subr.mxu0 0.0
    %1487 = vmatpush1.xpose.msra.mxu0 0.0
    %1488 = vmatprep.subr.mxu0 0.0
    %1489 = vmatpush1.xpose.msra.mxu0 0.0
    %1490 = vmatprep.subr.mxu0 0.0
    %1491 = vmatpush1.xpose.msra.mxu0 0.0
    %1492 = vmatprep.subr.mxu0 0.0
    %1493 = vmatpush1.xpose.msra.mxu0 0.0
    %1494 = vmatprep.subr.mxu0 0.0
    %1495 = vmatpush1.xpose.msra.mxu0 0.0
    %1496 = vmatprep.subr.mxu0 0.0
    %1497 = vmatpush1.xpose.msra.mxu0 0.0
    %1498 = vmatprep.subr.mxu0 0.0
    %1499 = vmatpush1.xpose.msra.mxu0 0.0
    %1500 = vmatprep.subr.mxu0 0.0
    %1501 = vmatpush1.xpose.msra.mxu0 0.0
    %1502 = vmatprep.subr.mxu0 0.0
    %1503 = vmatpush1.xpose.msra.mxu0 0.0
    %1504 = vmatprep.subr.mxu0 0.0
    %1505 = vmatpush1.xpose.msra.mxu0 0.0
    %1506 = vmatprep.mubr.f32.mxu0 %v819
    %1507 = vmatmul.mubr.f32.gmra.mrb[0].mxu0 %v818
    %v1508 = vpop.f32.mrb[0].mxu0
    %v1509 = vadd.f32 0.0, %v1508
    %v1510 = vpop.f32.mrb[0].mxu0
    %1511 = vmatprep.mubr.f32.mxu0 %v883
    %1512 = vmatmul.mubr.f32.gmra.mrb[0].mxu0 %v882
    %v1513 = vpop.f32.mrb[0].mxu0
    %v1514 = vadd.f32 0.0, %v1513
    %v1515 = vpop.f32.mrb[0].mxu0
    %1516 = vmatprep.mubr.f32.mxu0 %v947
    %1517 = vmatmul.mubr.f32.gmra.mrb[0].mxu0 %v946
    %v1518 = vpop.f32.mrb[0].mxu0
    %v1519 = vadd.f32 0.0, %v1518
    %v1520 = vpop.f32.mrb[0].mxu0
    %1521 = vmatprep.mubr.f32.mxu0 %v1011
    %1522 = vmatmul.mubr.f32.gmra.mrb[0].mxu0 %v1010
    %v1523 = vpop.f32.mrb[0].mxu0
    %v1524 = vadd.f32 0.0, %v1523
    %v1525 = vpop.f32.mrb[0].mxu0
    %1526 = vdwg.mxu0
    %1527 = vmatprep.subr.mxu0 %v1122
    %1528 = vmatpush1.xpose.msra.mxu0 %v1120
    %1529 = vmatprep.subr.mxu0 0.0
    %1530 = vmatpush1.xpose.msra.mxu0 0.0
    %1531 = vmatprep.subr.mxu0 0.0
    %1532 = vmatpush1.xpose.msra.mxu0 0.0
    %1533 = vmatprep.subr.mxu0 0.0
    %1534 = vmatpush1.xpose.msra.mxu0 0.0
    %1535 = vmatprep.subr.mxu0 0.0
    %1536 = vmatpush1.xpose.msra.mxu0 0.0
    %1537 = vmatprep.subr.mxu0 0.0
    %1538 = vmatpush1.xpose.msra.mxu0 0.0
    %1539 = vmatprep.subr.mxu0 0.0
    %1540 = vmatpush1.xpose.msra.mxu0 0.0
    %1541 = vmatprep.subr.mxu0 0.0
    %1542 = vmatpush1.xpose.msra.mxu0 0.0
    %1543 = vmatprep.subr.mxu0 0.0
    %1544 = vmatpush1.xpose.msra.mxu0 0.0
    %1545 = vmatprep.subr.mxu0 0.0
    %1546 = vmatpush1.xpose.msra.mxu0 0.0
    %1547 = vmatprep.subr.mxu0 0.0
    %1548 = vmatpush1.xpose.msra.mxu0 0.0
    %1549 = vmatprep.subr.mxu0 0.0
    %1550 = vmatpush1.xpose.msra.mxu0 0.0
    %1551 = vmatprep.subr.mxu0 0.0
    %1552 = vmatpush1.xpose.msra.mxu0 0.0
    %1553 = vmatprep.subr.mxu0 0.0
    %1554 = vmatpush1.xpose.msra.mxu0 0.0
    %1555 = vmatprep.subr.mxu0 0.0
    %1556 = vmatpush1.xpose.msra.mxu0 0.0
    %1557 = vmatprep.subr.mxu0 0.0
    %1558 = vmatpush1.xpose.msra.mxu0 0.0
    %1559 = vmatprep.subr.mxu0 0.0
    %1560 = vmatpush1.xpose.msra.mxu0 0.0
    %1561 = vmatprep.subr.mxu0 0.0
    %1562 = vmatpush1.xpose.msra.mxu0 0.0
    %1563 = vmatprep.subr.mxu0 0.0
    %1564 = vmatpush1.xpose.msra.mxu0 0.0
    %1565 = vmatprep.subr.mxu0 0.0
    %1566 = vmatpush1.xpose.msra.mxu0 0.0
    %1567 = vmatprep.subr.mxu0 0.0
    %1568 = vmatpush1.xpose.msra.mxu0 0.0
    %1569 = vmatprep.subr.mxu0 0.0
    %1570 = vmatpush1.xpose.msra.mxu0 0.0
    %1571 = vmatprep.subr.mxu0 0.0
    %1572 = vmatpush1.xpose.msra.mxu0 0.0
    %1573 = vmatprep.subr.mxu0 0.0
    %1574 = vmatpush1.xpose.msra.mxu0 0.0
    %1575 = vmatprep.subr.mxu0 0.0
    %1576 = vmatpush1.xpose.msra.mxu0 0.0
    %1577 = vmatprep.subr.mxu0 0.0
    %1578 = vmatpush1.xpose.msra.mxu0 0.0
    %1579 = vmatprep.subr.mxu0 0.0
    %1580 = vmatpush1.xpose.msra.mxu0 0.0
    %1581 = vmatprep.subr.mxu0 0.0
    %1582 = vmatpush1.xpose.msra.mxu0 0.0
    %1583 = vmatprep.subr.mxu0 0.0
    %1584 = vmatpush1.xpose.msra.mxu0 0.0
    %1585 = vmatprep.subr.mxu0 0.0
    %1586 = vmatpush1.xpose.msra.mxu0 0.0
    %1587 = vmatprep.subr.mxu0 0.0
    %1588 = vmatpush1.xpose.msra.mxu0 0.0
    %1589 = vmatprep.subr.mxu0 0.0
    %1590 = vmatpush1.xpose.msra.mxu0 0.0
    %1591 = vmatprep.mubr.f32.mxu0 %v821
    %1592 = vmatmul.mubr.f32.gmra.mrb[0].mxu0 %v820
    %v1593 = vpop.f32.mrb[0].mxu0
    %v1594 = vadd.f32 %v1509, %v1593
    %v1595 = vpop.f32.mrb[0].mxu0
    %1596 = vmatprep.mubr.f32.mxu0 %v885
    %1597 = vmatmul.mubr.f32.gmra.mrb[0].mxu0 %v884
    %v1598 = vpop.f32.mrb[0].mxu0
    %v1599 = vadd.f32 %v1514, %v1598
    %v1600 = vpop.f32.mrb[0].mxu0
    %1601 = vmatprep.mubr.f32.mxu0 %v949
    %1602 = vmatmul.mubr.f32.gmra.mrb[0].mxu0 %v948
    %v1603 = vpop.f32.mrb[0].mxu0
    %v1604 = vadd.f32 %v1519, %v1603
    %v1605 = vpop.f32.mrb[0].mxu0
    %1606 = vmatprep.mubr.f32.mxu0 %v1013
    %1607 = vmatmul.mubr.f32.gmra.mrb[0].mxu0 %v1012
    %v1608 = vpop.f32.mrb[0].mxu0
    %v1609 = vadd.f32 %v1524, %v1608
    %v1610 = vpop.f32.mrb[0].mxu0
    %1611 = vdwg.mxu0
    %1612 = vmatprep.subr.mxu0 %v1138
    %1613 = vmatpush1.xpose.msra.mxu0 %v1130
    %1614 = vmatprep.subr.mxu0 0.0
    %1615 = vmatpush1.xpose.msra.mxu0 0.0
    %1616 = vmatprep.subr.mxu0 0.0
    %1617 = vmatpush1.xpose.msra.mxu0 0.0
    %1618 = vmatprep.subr.mxu0 0.0
    %1619 = vmatpush1.xpose.msra.mxu0 0.0
    %1620 = vmatprep.subr.mxu0 0.0
    %1621 = vmatpush1.xpose.msra.mxu0 0.0
    %1622 = vmatprep.subr.mxu0 0.0
    %1623 = vmatpush1.xpose.msra.mxu0 0.0
    %1624 = vmatprep.subr.mxu0 0.0
    %1625 = vmatpush1.xpose.msra.mxu0 0.0
    %1626 = vmatprep.subr.mxu0 0.0
    %1627 = vmatpush1.xpose.msra.mxu0 0.0
    %1628 = vmatprep.subr.mxu0 0.0
    %1629 = vmatpush1.xpose.msra.mxu0 0.0
    %1630 = vmatprep.subr.mxu0 0.0
    %1631 = vmatpush1.xpose.msra.mxu0 0.0
    %1632 = vmatprep.subr.mxu0 0.0
    %1633 = vmatpush1.xpose.msra.mxu0 0.0
    %1634 = vmatprep.subr.mxu0 0.0
    %1635 = vmatpush1.xpose.msra.mxu0 0.0
    %1636 = vmatprep.subr.mxu0 0.0
    %1637 = vmatpush1.xpose.msra.mxu0 0.0
    %1638 = vmatprep.subr.mxu0 0.0
    %1639 = vmatpush1.xpose.msra.mxu0 0.0
    %1640 = vmatprep.subr.mxu0 0.0
    %1641 = vmatpush1.xpose.msra.mxu0 0.0
    %1642 = vmatprep.subr.mxu0 0.0
    %1643 = vmatpush1.xpose.msra.mxu0 0.0
    %1644 = vmatprep.subr.mxu0 0.0
    %1645 = vmatpush1.xpose.msra.mxu0 0.0
    %1646 = vmatprep.subr.mxu0 0.0
    %1647 = vmatpush1.xpose.msra.mxu0 0.0
    %1648 = vmatprep.subr.mxu0 0.0
    %1649 = vmatpush1.xpose.msra.mxu0 0.0
    %1650 = vmatprep.subr.mxu0 0.0
    %1651 = vmatpush1.xpose.msra.mxu0 0.0
    %1652 = vmatprep.subr.mxu0 0.0
    %1653 = vmatpush1.xpose.msra.mxu0 0.0
    %1654 = vmatprep.subr.mxu0 0.0
    %1655 = vmatpush1.xpose.msra.mxu0 0.0
    %1656 = vmatprep.subr.mxu0 0.0
    %1657 = vmatpush1.xpose.msra.mxu0 0.0
    %1658 = vmatprep.subr.mxu0 0.0
    %1659 = vmatpush1.xpose.msra.mxu0 0.0
    %1660 = vmatprep.subr.mxu0 0.0
    %1661 = vmatpush1.xpose.msra.mxu0 0.0
    %1662 = vmatprep.subr.mxu0 0.0
    %1663 = vmatpush1.xpose.msra.mxu0 0.0
    %1664 = vmatprep.subr.mxu0 0.0
    %1665 = vmatpush1.xpose.msra.mxu0 0.0
    %1666 = vmatprep.subr.mxu0 0.0
    %1667 = vmatpush1.xpose.msra.mxu0 0.0
    %1668 = vmatprep.subr.mxu0 0.0
    %1669 = vmatpush1.xpose.msra.mxu0 0.0
    %1670 = vmatprep.subr.mxu0 0.0
    %1671 = vmatpush1.xpose.msra.mxu0 0.0
    %1672 = vmatprep.subr.mxu0 0.0
    %1673 = vmatpush1.xpose.msra.mxu0 0.0
    %1674 = vmatprep.subr.mxu0 0.0
    %1675 = vmatpush1.xpose.msra.mxu0 0.0
    %1676 = vmatprep.mubr.f32.mxu0 %v823
    %1677 = vmatmul.mubr.f32.gmra.mrb[0].mxu0 %v822
    %v1678 = vpop.f32.mrb[0].mxu0
    %v1679 = vadd.f32 %v1594, %v1678
    %v1680 = vpop.f32.mrb[0].mxu0
    %1681 = vmatprep.mubr.f32.mxu0 %v887
    %1682 = vmatmul.mubr.f32.gmra.mrb[0].mxu0 %v886
    %v1683 = vpop.f32.mrb[0].mxu0
    %v1684 = vadd.f32 %v1599, %v1683
    %v1685 = vpop.f32.mrb[0].mxu0
    %1686 = vmatprep.mubr.f32.mxu0 %v951
    %1687 = vmatmul.mubr.f32.gmra.mrb[0].mxu0 %v950
    %v1688 = vpop.f32.mrb[0].mxu0
    %v1689 = vadd.f32 %v1604, %v1688
    %v1690 = vpop.f32.mrb[0].mxu0
    %1691 = vmatprep.mubr.f32.mxu0 %v1015
    %1692 = vmatmul.mubr.f32.gmra.mrb[0].mxu0 %v1014
    %v1693 = vpop.f32.mrb[0].mxu0
    %v1694 = vadd.f32 %v1609, %v1693
    %v1695 = vpop.f32.mrb[0].mxu0
    %1696 = vdwg.mxu0
    %1697 = vmatprep.subr.mxu0 %v1139
    %1698 = vmatpush1.xpose.msra.mxu0 %v1137
    %1699 = vmatprep.subr.mxu0 0.0
    %1700 = vmatpush1.xpose.msra.mxu0 0.0
    %1701 = vmatprep.subr.mxu0 0.0
    %1702 = vmatpush1.xpose.msra.mxu0 0.0
    %1703 = vmatprep.subr.mxu0 0.0
    %1704 = vmatpush1.xpose.msra.mxu0 0.0
    %1705 = vmatprep.subr.mxu0 0.0
    %1706 = vmatpush1.xpose.msra.mxu0 0.0
    %1707 = vmatprep.subr.mxu0 0.0
    %1708 = vmatpush1.xpose.msra.mxu0 0.0
    %1709 = vmatprep.subr.mxu0 0.0
    %1710 = vmatpush1.xpose.msra.mxu0 0.0
    %1711 = vmatprep.subr.mxu0 0.0
    %1712 = vmatpush1.xpose.msra.mxu0 0.0
    %1713 = vmatprep.subr.mxu0 0.0
    %1714 = vmatpush1.xpose.msra.mxu0 0.0
    %1715 = vmatprep.subr.mxu0 0.0
    %1716 = vmatpush1.xpose.msra.mxu0 0.0
    %1717 = vmatprep.subr.mxu0 0.0
    %1718 = vmatpush1.xpose.msra.mxu0 0.0
    %1719 = vmatprep.subr.mxu0 0.0
    %1720 = vmatpush1.xpose.msra.mxu0 0.0
    %1721 = vmatprep.subr.mxu0 0.0
    %1722 = vmatpush1.xpose.msra.mxu0 0.0
    %1723 = vmatprep.subr.mxu0 0.0
    %1724 = vmatpush1.xpose.msra.mxu0 0.0
    %1725 = vmatprep.subr.mxu0 0.0
    %1726 = vmatpush1.xpose.msra.mxu0 0.0
    %1727 = vmatprep.subr.mxu0 0.0
    %1728 = vmatpush1.xpose.msra.mxu0 0.0
    %1729 = vmatprep.subr.mxu0 0.0
    %1730 = vmatpush1.xpose.msra.mxu0 0.0
    %1731 = vmatprep.subr.mxu0 0.0
    %1732 = vmatpush1.xpose.msra.mxu0 0.0
    %1733 = vmatprep.subr.mxu0 0.0
    %1734 = vmatpush1.xpose.msra.mxu0 0.0
    %1735 = vmatprep.subr.mxu0 0.0
    %1736 = vmatpush1.xpose.msra.mxu0 0.0
    %1737 = vmatprep.subr.mxu0 0.0
    %1738 = vmatpush1.xpose.msra.mxu0 0.0
    %1739 = vmatprep.subr.mxu0 0.0
    %1740 = vmatpush1.xpose.msra.mxu0 0.0
    %1741 = vmatprep.subr.mxu0 0.0
    %1742 = vmatpush1.xpose.msra.mxu0 0.0
    %1743 = vmatprep.subr.mxu0 0.0
    %1744 = vmatpush1.xpose.msra.mxu0 0.0
    %1745 = vmatprep.subr.mxu0 0.0
    %1746 = vmatpush1.xpose.msra.mxu0 0.0
    %1747 = vmatprep.subr.mxu0 0.0
    %1748 = vmatpush1.xpose.msra.mxu0 0.0
    %1749 = vmatprep.subr.mxu0 0.0
    %1750 = vmatpush1.xpose.msra.mxu0 0.0
    %1751 = vmatprep.subr.mxu0 0.0
    %1752 = vmatpush1.xpose.msra.mxu0 0.0
    %1753 = vmatprep.subr.mxu0 0.0
    %1754 = vmatpush1.xpose.msra.mxu0 0.0
    %1755 = vmatprep.subr.mxu0 0.0
    %1756 = vmatpush1.xpose.msra.mxu0 0.0
    %1757 = vmatprep.subr.mxu0 0.0
    %1758 = vmatpush1.xpose.msra.mxu0 0.0
    %1759 = vmatprep.subr.mxu0 0.0
    %1760 = vmatpush1.xpose.msra.mxu0 0.0
    %1761 = vmatprep.mubr.f32.mxu0 %v825
    %1762 = vmatmul.mubr.f32.gmra.mrb[0].mxu0 %v824
    %v1763 = vpop.f32.mrb[0].mxu0
    %v1764 = vadd.f32 %v1679, %v1763
    %v1765 = vpop.f32.mrb[0].mxu0
    %1766 = vmatprep.mubr.f32.mxu0 %v889
    %1767 = vmatmul.mubr.f32.gmra.mrb[0].mxu0 %v888
    %v1768 = vpop.f32.mrb[0].mxu0
    %v1769 = vadd.f32 %v1684, %v1768
    %v1770 = vpop.f32.mrb[0].mxu0
    %1771 = vmatprep.mubr.f32.mxu0 %v953
    %1772 = vmatmul.mubr.f32.gmra.mrb[0].mxu0 %v952
    %v1773 = vpop.f32.mrb[0].mxu0
    %v1774 = vadd.f32 %v1689, %v1773
    %v1775 = vpop.f32.mrb[0].mxu0
    %1776 = vmatprep.mubr.f32.mxu0 %v1017
    %1777 = vmatmul.mubr.f32.gmra.mrb[0].mxu0 %v1016
    %v1778 = vpop.f32.mrb[0].mxu0
    %v1779 = vadd.f32 %v1694, %v1778
    %v1780 = vpop.f32.mrb[0].mxu0
    %1781 = vdwg.mxu0
    %1782 = vmatprep.subr.mxu0 %v1155
    %1783 = vmatpush1.xpose.msra.mxu0 %v1147
    %1784 = vmatprep.subr.mxu0 0.0
    %1785 = vmatpush1.xpose.msra.mxu0 0.0
    %1786 = vmatprep.subr.mxu0 0.0
    %1787 = vmatpush1.xpose.msra.mxu0 0.0
    %1788 = vmatprep.subr.mxu0 0.0
    %1789 = vmatpush1.xpose.msra.mxu0 0.0
    %1790 = vmatprep.subr.mxu0 0.0
    %1791 = vmatpush1.xpose.msra.mxu0 0.0
    %1792 = vmatprep.subr.mxu0 0.0
    %1793 = vmatpush1.xpose.msra.mxu0 0.0
    %1794 = vmatprep.subr.mxu0 0.0
    %1795 = vmatpush1.xpose.msra.mxu0 0.0
    %1796 = vmatprep.subr.mxu0 0.0
    %1797 = vmatpush1.xpose.msra.mxu0 0.0
    %1798 = vmatprep.subr.mxu0 0.0
    %1799 = vmatpush1.xpose.msra.mxu0 0.0
    %1800 = vmatprep.subr.mxu0 0.0
    %1801 = vmatpush1.xpose.msra.mxu0 0.0
    %1802 = vmatprep.subr.mxu0 0.0
    %1803 = vmatpush1.xpose.msra.mxu0 0.0
    %1804 = vmatprep.subr.mxu0 0.0
    %1805 = vmatpush1.xpose.msra.mxu0 0.0
    %1806 = vmatprep.subr.mxu0 0.0
    %1807 = vmatpush1.xpose.msra.mxu0 0.0
    %1808 = vmatprep.subr.mxu0 0.0
    %1809 = vmatpush1.xpose.msra.mxu0 0.0
    %1810 = vmatprep.subr.mxu0 0.0
    %1811 = vmatpush1.xpose.msra.mxu0 0.0
    %1812 = vmatprep.subr.mxu0 0.0
    %1813 = vmatpush1.xpose.msra.mxu0 0.0
    %1814 = vmatprep.subr.mxu0 0.0
    %1815 = vmatpush1.xpose.msra.mxu0 0.0
    %1816 = vmatprep.subr.mxu0 0.0
    %1817 = vmatpush1.xpose.msra.mxu0 0.0
    %1818 = vmatprep.subr.mxu0 0.0
    %1819 = vmatpush1.xpose.msra.mxu0 0.0
    %1820 = vmatprep.subr.mxu0 0.0
    %1821 = vmatpush1.xpose.msra.mxu0 0.0
    %1822 = vmatprep.subr.mxu0 0.0
    %1823 = vmatpush1.xpose.msra.mxu0 0.0
    %1824 = vmatprep.subr.mxu0 0.0
    %1825 = vmatpush1.xpose.msra.mxu0 0.0
    %1826 = vmatprep.subr.mxu0 0.0
    %1827 = vmatpush1.xpose.msra.mxu0 0.0
    %1828 = vmatprep.subr.mxu0 0.0
    %1829 = vmatpush1.xpose.msra.mxu0 0.0
    %1830 = vmatprep.subr.mxu0 0.0
    %1831 = vmatpush1.xpose.msra.mxu0 0.0
    %1832 = vmatprep.subr.mxu0 0.0
    %1833 = vmatpush1.xpose.msra.mxu0 0.0
    %1834 = vmatprep.subr.mxu0 0.0
    %1835 = vmatpush1.xpose.msra.mxu0 0.0
    %1836 = vmatprep.subr.mxu0 0.0
    %1837 = vmatpush1.xpose.msra.mxu0 0.0
    %1838 = vmatprep.subr.mxu0 0.0
    %1839 = vmatpush1.xpose.msra.mxu0 0.0
    %1840 = vmatprep.subr.mxu0 0.0
    %1841 = vmatpush1.xpose.msra.mxu0 0.0
    %1842 = vmatprep.subr.mxu0 0.0
    %1843 = vmatpush1.xpose.msra.mxu0 0.0
    %1844 = vmatprep.subr.mxu0 0.0
    %1845 = vmatpush1.xpose.msra.mxu0 0.0
    %1846 = vmatprep.mubr.f32.mxu0 %v827
    %1847 = vmatmul.mubr.f32.gmra.mrb[0].mxu0 %v826
    %v1848 = vpop.f32.mrb[0].mxu0
    %v1849 = vadd.f32 %v1764, %v1848
    %v1850 = vpop.f32.mrb[0].mxu0
    %1851 = vmatprep.mubr.f32.mxu0 %v891
    %1852 = vmatmul.mubr.f32.gmra.mrb[0].mxu0 %v890
    %v1853 = vpop.f32.mrb[0].mxu0
    %v1854 = vadd.f32 %v1769, %v1853
    %v1855 = vpop.f32.mrb[0].mxu0
    %1856 = vmatprep.mubr.f32.mxu0 %v955
    %1857 = vmatmul.mubr.f32.gmra.mrb[0].mxu0 %v954
    %v1858 = vpop.f32.mrb[0].mxu0
    %v1859 = vadd.f32 %v1774, %v1858
    %v1860 = vpop.f32.mrb[0].mxu0
    %1861 = vmatprep.mubr.f32.mxu0 %v1019
    %1862 = vmatmul.mubr.f32.gmra.mrb[0].mxu0 %v1018
    %v1863 = vpop.f32.mrb[0].mxu0
    %v1864 = vadd.f32 %v1779, %v1863
    %v1865 = vpop.f32.mrb[0].mxu0
    %1866 = vdwg.mxu0
    %1867 = vmatprep.subr.mxu0 %v1156
    %1868 = vmatpush1.xpose.msra.mxu0 %v1154
    %1869 = vmatprep.subr.mxu0 0.0
    %1870 = vmatpush1.xpose.msra.mxu0 0.0
    %1871 = vmatprep.subr.mxu0 0.0
    %1872 = vmatpush1.xpose.msra.mxu0 0.0
    %1873 = vmatprep.subr.mxu0 0.0
    %1874 = vmatpush1.xpose.msra.mxu0 0.0
    %1875 = vmatprep.subr.mxu0 0.0
    %1876 = vmatpush1.xpose.msra.mxu0 0.0
    %1877 = vmatprep.subr.mxu0 0.0
    %1878 = vmatpush1.xpose.msra.mxu0 0.0
    %1879 = vmatprep.subr.mxu0 0.0
    %1880 = vmatpush1.xpose.msra.mxu0 0.0
    %1881 = vmatprep.subr.mxu0 0.0
    %1882 = vmatpush1.xpose.msra.mxu0 0.0
    %1883 = vmatprep.subr.mxu0 0.0
    %1884 = vmatpush1.xpose.msra.mxu0 0.0
    %1885 = vmatprep.subr.mxu0 0.0
    %1886 = vmatpush1.xpose.msra.mxu0 0.0
    %1887 = vmatprep.subr.mxu0 0.0
    %1888 = vmatpush1.xpose.msra.mxu0 0.0
    %1889 = vmatprep.subr.mxu0 0.0
    %1890 = vmatpush1.xpose.msra.mxu0 0.0
    %1891 = vmatprep.subr.mxu0 0.0
    %1892 = vmatpush1.xpose.msra.mxu0 0.0
    %1893 = vmatprep.subr.mxu0 0.0
    %1894 = vmatpush1.xpose.msra.mxu0 0.0
    %1895 = vmatprep.subr.mxu0 0.0
    %1896 = vmatpush1.xpose.msra.mxu0 0.0
    %1897 = vmatprep.subr.mxu0 0.0
    %1898 = vmatpush1.xpose.msra.mxu0 0.0
    %1899 = vmatprep.subr.mxu0 0.0
    %1900 = vmatpush1.xpose.msra.mxu0 0.0
    %1901 = vmatprep.subr.mxu0 0.0
    %1902 = vmatpush1.xpose.msra.mxu0 0.0
    %1903 = vmatprep.subr.mxu0 0.0
    %1904 = vmatpush1.xpose.msra.mxu0 0.0
    %1905 = vmatprep.subr.mxu0 0.0
    %1906 = vmatpush1.xpose.msra.mxu0 0.0
    %1907 = vmatprep.subr.mxu0 0.0
    %1908 = vmatpush1.xpose.msra.mxu0 0.0
    %1909 = vmatprep.subr.mxu0 0.0
    %1910 = vmatpush1.xpose.msra.mxu0 0.0
    %1911 = vmatprep.subr.mxu0 0.0
    %1912 = vmatpush1.xpose.msra.mxu0 0.0
    %1913 = vmatprep.subr.mxu0 0.0
    %1914 = vmatpush1.xpose.msra.mxu0 0.0
    %1915 = vmatprep.subr.mxu0 0.0
    %1916 = vmatpush1.xpose.msra.mxu0 0.0
    %1917 = vmatprep.subr.mxu0 0.0
    %1918 = vmatpush1.xpose.msra.mxu0 0.0
    %1919 = vmatprep.subr.mxu0 0.0
    %1920 = vmatpush1.xpose.msra.mxu0 0.0
    %1921 = vmatprep.subr.mxu0 0.0
    %1922 = vmatpush1.xpose.msra.mxu0 0.0
    %1923 = vmatprep.subr.mxu0 0.0
    %1924 = vmatpush1.xpose.msra.mxu0 0.0
    %1925 = vmatprep.subr.mxu0 0.0
    %1926 = vmatpush1.xpose.msra.mxu0 0.0
    %1927 = vmatprep.subr.mxu0 0.0
    %1928 = vmatpush1.xpose.msra.mxu0 0.0
    %1929 = vmatprep.subr.mxu0 0.0
    %1930 = vmatpush1.xpose.msra.mxu0 0.0
    %1931 = vmatprep.mubr.f32.mxu0 %v829
    %1932 = vmatmul.mubr.f32.gmra.mrb[0].mxu0 %v828
    %v1933 = vpop.f32.mrb[0].mxu0
    %v1934 = vadd.f32 %v1849, %v1933
    %v1935 = vpop.f32.mrb[0].mxu0
    %1936 = vmatprep.mubr.f32.mxu0 %v893
    %1937 = vmatmul.mubr.f32.gmra.mrb[0].mxu0 %v892
    %v1938 = vpop.f32.mrb[0].mxu0
    %v1939 = vadd.f32 %v1854, %v1938
    %v1940 = vpop.f32.mrb[0].mxu0
    %1941 = vmatprep.mubr.f32.mxu0 %v957
    %1942 = vmatmul.mubr.f32.gmra.mrb[0].mxu0 %v956
    %v1943 = vpop.f32.mrb[0].mxu0
    %v1944 = vadd.f32 %v1859, %v1943
    %v1945 = vpop.f32.mrb[0].mxu0
    %1946 = vmatprep.mubr.f32.mxu0 %v1021
    %1947 = vmatmul.mubr.f32.gmra.mrb[0].mxu0 %v1020
    %v1948 = vpop.f32.mrb[0].mxu0
    %v1949 = vadd.f32 %v1864, %v1948
    %v1950 = vpop.f32.mrb[0].mxu0
    %1951 = vdwg.mxu0
    %1952 = vmatprep.subr.mxu0 %v1172
    %1953 = vmatpush1.xpose.msra.mxu0 %v1164
    %1954 = vmatprep.subr.mxu0 0.0
    %1955 = vmatpush1.xpose.msra.mxu0 0.0
    %1956 = vmatprep.subr.mxu0 0.0
    %1957 = vmatpush1.xpose.msra.mxu0 0.0
    %1958 = vmatprep.subr.mxu0 0.0
    %1959 = vmatpush1.xpose.msra.mxu0 0.0
    %1960 = vmatprep.subr.mxu0 0.0
    %1961 = vmatpush1.xpose.msra.mxu0 0.0
    %1962 = vmatprep.subr.mxu0 0.0
    %1963 = vmatpush1.xpose.msra.mxu0 0.0
    %1964 = vmatprep.subr.mxu0 0.0
    %1965 = vmatpush1.xpose.msra.mxu0 0.0
    %1966 = vmatprep.subr.mxu0 0.0
    %1967 = vmatpush1.xpose.msra.mxu0 0.0
    %1968 = vmatprep.subr.mxu0 0.0
    %1969 = vmatpush1.xpose.msra.mxu0 0.0
    %1970 = vmatprep.subr.mxu0 0.0
    %1971 = vmatpush1.xpose.msra.mxu0 0.0
    %1972 = vmatprep.subr.mxu0 0.0
    %1973 = vmatpush1.xpose.msra.mxu0 0.0
    %1974 = vmatprep.subr.mxu0 0.0
    %1975 = vmatpush1.xpose.msra.mxu0 0.0
    %1976 = vmatprep.subr.mxu0 0.0
    %1977 = vmatpush1.xpose.msra.mxu0 0.0
    %1978 = vmatprep.subr.mxu0 0.0
    %1979 = vmatpush1.xpose.msra.mxu0 0.0
    %1980 = vmatprep.subr.mxu0 0.0
    %1981 = vmatpush1.xpose.msra.mxu0 0.0
    %1982 = vmatprep.subr.mxu0 0.0
    %1983 = vmatpush1.xpose.msra.mxu0 0.0
    %1984 = vmatprep.subr.mxu0 0.0
    %1985 = vmatpush1.xpose.msra.mxu0 0.0
    %1986 = vmatprep.subr.mxu0 0.0
    %1987 = vmatpush1.xpose.msra.mxu0 0.0
    %1988 = vmatprep.subr.mxu0 0.0
    %1989 = vmatpush1.xpose.msra.mxu0 0.0
    %1990 = vmatprep.subr.mxu0 0.0
    %1991 = vmatpush1.xpose.msra.mxu0 0.0
    %1992 = vmatprep.subr.mxu0 0.0
    %1993 = vmatpush1.xpose.msra.mxu0 0.0
    %1994 = vmatprep.subr.mxu0 0.0
    %1995 = vmatpush1.xpose.msra.mxu0 0.0
    %1996 = vmatprep.subr.mxu0 0.0
    %1997 = vmatpush1.xpose.msra.mxu0 0.0
    %1998 = vmatprep.subr.mxu0 0.0
    %1999 = vmatpush1.xpose.msra.mxu0 0.0
    %2000 = vmatprep.subr.mxu0 0.0
    %2001 = vmatpush1.xpose.msra.mxu0 0.0
    %2002 = vmatprep.subr.mxu0 0.0
    %2003 = vmatpush1.xpose.msra.mxu0 0.0
    %2004 = vmatprep.subr.mxu0 0.0
    %2005 = vmatpush1.xpose.msra.mxu0 0.0
    %2006 = vmatprep.subr.mxu0 0.0
    %2007 = vmatpush1.xpose.msra.mxu0 0.0
    %2008 = vmatprep.subr.mxu0 0.0
    %2009 = vmatpush1.xpose.msra.mxu0 0.0
    %2010 = vmatprep.subr.mxu0 0.0
    %2011 = vmatpush1.xpose.msra.mxu0 0.0
    %2012 = vmatprep.subr.mxu0 0.0
    %2013 = vmatpush1.xpose.msra.mxu0 0.0
    %2014 = vmatprep.subr.mxu0 0.0
    %2015 = vmatpush1.xpose.msra.mxu0 0.0
    %2016 = vmatprep.mubr.f32.mxu0 %v831
    %2017 = vmatmul.mubr.f32.gmra.mrb[0].mxu0 %v830
    %v2018 = vpop.f32.mrb[0].mxu0
    %v2019 = vadd.f32 %v1934, %v2018
    %v2020 = vpop.f32.mrb[0].mxu0
    %2021 = vmatprep.mubr.f32.mxu0 %v895
    %2022 = vmatmul.mubr.f32.gmra.mrb[0].mxu0 %v894
    %v2023 = vpop.f32.mrb[0].mxu0
    %v2024 = vadd.f32 %v1939, %v2023
    %v2025 = vpop.f32.mrb[0].mxu0
    %2026 = vmatprep.mubr.f32.mxu0 %v959
    %2027 = vmatmul.mubr.f32.gmra.mrb[0].mxu0 %v958
    %v2028 = vpop.f32.mrb[0].mxu0
    %v2029 = vadd.f32 %v1944, %v2028
    %v2030 = vpop.f32.mrb[0].mxu0
    %2031 = vmatprep.mubr.f32.mxu0 %v1023
    %2032 = vmatmul.mubr.f32.gmra.mrb[0].mxu0 %v1022
    %v2033 = vpop.f32.mrb[0].mxu0
    %v2034 = vadd.f32 %v1949, %v2033
    %v2035 = vpop.f32.mrb[0].mxu0
    %2036 = vdwg.mxu0
    %2037 = vmatprep.subr.mxu0 %v1173
    %2038 = vmatpush1.xpose.msra.mxu0 %v1171
    %2039 = vmatprep.subr.mxu0 0.0
    %2040 = vmatpush1.xpose.msra.mxu0 0.0
    %2041 = vmatprep.subr.mxu0 0.0
    %2042 = vmatpush1.xpose.msra.mxu0 0.0
    %2043 = vmatprep.subr.mxu0 0.0
    %2044 = vmatpush1.xpose.msra.mxu0 0.0
    %2045 = vmatprep.subr.mxu0 0.0
    %2046 = vmatpush1.xpose.msra.mxu0 0.0
    %2047 = vmatprep.subr.mxu0 0.0
    %2048 = vmatpush1.xpose.msra.mxu0 0.0
    %2049 = vmatprep.subr.mxu0 0.0
    %2050 = vmatpush1.xpose.msra.mxu0 0.0
    %2051 = vmatprep.subr.mxu0 0.0
    %2052 = vmatpush1.xpose.msra.mxu0 0.0
    %2053 = vmatprep.subr.mxu0 0.0
    %2054 = vmatpush1.xpose.msra.mxu0 0.0
    %2055 = vmatprep.subr.mxu0 0.0
    %2056 = vmatpush1.xpose.msra.mxu0 0.0
    %2057 = vmatprep.subr.mxu0 0.0
    %2058 = vmatpush1.xpose.msra.mxu0 0.0
    %2059 = vmatprep.subr.mxu0 0.0
    %2060 = vmatpush1.xpose.msra.mxu0 0.0
    %2061 = vmatprep.subr.mxu0 0.0
    %2062 = vmatpush1.xpose.msra.mxu0 0.0
    %2063 = vmatprep.subr.mxu0 0.0
    %2064 = vmatpush1.xpose.msra.mxu0 0.0
    %2065 = vmatprep.subr.mxu0 0.0
    %2066 = vmatpush1.xpose.msra.mxu0 0.0
    %2067 = vmatprep.subr.mxu0 0.0
    %2068 = vmatpush1.xpose.msra.mxu0 0.0
    %2069 = vmatprep.subr.mxu0 0.0
    %2070 = vmatpush1.xpose.msra.mxu0 0.0
    %2071 = vmatprep.subr.mxu0 0.0
    %2072 = vmatpush1.xpose.msra.mxu0 0.0
    %2073 = vmatprep.subr.mxu0 0.0
    %2074 = vmatpush1.xpose.msra.mxu0 0.0
    %2075 = vmatprep.subr.mxu0 0.0
    %2076 = vmatpush1.xpose.msra.mxu0 0.0
    %2077 = vmatprep.subr.mxu0 0.0
    %2078 = vmatpush1.xpose.msra.mxu0 0.0
    %2079 = vmatprep.subr.mxu0 0.0
    %2080 = vmatpush1.xpose.msra.mxu0 0.0
    %2081 = vmatprep.subr.mxu0 0.0
    %2082 = vmatpush1.xpose.msra.mxu0 0.0
    %2083 = vmatprep.subr.mxu0 0.0
    %2084 = vmatpush1.xpose.msra.mxu0 0.0
    %2085 = vmatprep.subr.mxu0 0.0
    %2086 = vmatpush1.xpose.msra.mxu0 0.0
    %2087 = vmatprep.subr.mxu0 0.0
    %2088 = vmatpush1.xpose.msra.mxu0 0.0
    %2089 = vmatprep.subr.mxu0 0.0
    %2090 = vmatpush1.xpose.msra.mxu0 0.0
    %2091 = vmatprep.subr.mxu0 0.0
    %2092 = vmatpush1.xpose.msra.mxu0 0.0
    %2093 = vmatprep.subr.mxu0 0.0
    %2094 = vmatpush1.xpose.msra.mxu0 0.0
    %2095 = vmatprep.subr.mxu0 0.0
    %2096 = vmatpush1.xpose.msra.mxu0 0.0
    %2097 = vmatprep.subr.mxu0 0.0
    %2098 = vmatpush1.xpose.msra.mxu0 0.0
    %2099 = vmatprep.subr.mxu0 0.0
    %2100 = vmatpush1.xpose.msra.mxu0 0.0
    %2101 = vmatprep.mubr.f32.mxu0 %v833
    %2102 = vmatmul.mubr.f32.gmra.mrb[0].mxu0 %v832
    %v2103 = vpop.f32.mrb[0].mxu0
    %v2104 = vadd.f32 %v2019, %v2103
    %v2105 = vpop.f32.mrb[0].mxu0
    %2106 = vmatprep.mubr.f32.mxu0 %v897
    %2107 = vmatmul.mubr.f32.gmra.mrb[0].mxu0 %v896
    %v2108 = vpop.f32.mrb[0].mxu0
    %v2109 = vadd.f32 %v2024, %v2108
    %v2110 = vpop.f32.mrb[0].mxu0
    %2111 = vmatprep.mubr.f32.mxu0 %v961
    %2112 = vmatmul.mubr.f32.gmra.mrb[0].mxu0 %v960
    %v2113 = vpop.f32.mrb[0].mxu0
    %v2114 = vadd.f32 %v2029, %v2113
    %v2115 = vpop.f32.mrb[0].mxu0
    %2116 = vmatprep.mubr.f32.mxu0 %v1025
    %2117 = vmatmul.mubr.f32.gmra.mrb[0].mxu0 %v1024
    %v2118 = vpop.f32.mrb[0].mxu0
    %v2119 = vadd.f32 %v2034, %v2118
    %v2120 = vpop.f32.mrb[0].mxu0
    %2121 = vdwg.mxu0
    %2122 = vmatprep.subr.mxu0 %v1189
    %2123 = vmatpush1.xpose.msra.mxu0 %v1181
    %2124 = vmatprep.subr.mxu0 0.0
    %2125 = vmatpush1.xpose.msra.mxu0 0.0
    %2126 = vmatprep.subr.mxu0 0.0
    %2127 = vmatpush1.xpose.msra.mxu0 0.0
    %2128 = vmatprep.subr.mxu0 0.0
    %2129 = vmatpush1.xpose.msra.mxu0 0.0
    %2130 = vmatprep.subr.mxu0 0.0
    %2131 = vmatpush1.xpose.msra.mxu0 0.0
    %2132 = vmatprep.subr.mxu0 0.0
    %2133 = vmatpush1.xpose.msra.mxu0 0.0
    %2134 = vmatprep.subr.mxu0 0.0
    %2135 = vmatpush1.xpose.msra.mxu0 0.0
    %2136 = vmatprep.subr.mxu0 0.0
    %2137 = vmatpush1.xpose.msra.mxu0 0.0
    %2138 = vmatprep.subr.mxu0 0.0
    %2139 = vmatpush1.xpose.msra.mxu0 0.0
    %2140 = vmatprep.subr.mxu0 0.0
    %2141 = vmatpush1.xpose.msra.mxu0 0.0
    %2142 = vmatprep.subr.mxu0 0.0
    %2143 = vmatpush1.xpose.msra.mxu0 0.0
    %2144 = vmatprep.subr.mxu0 0.0
    %2145 = vmatpush1.xpose.msra.mxu0 0.0
    %2146 = vmatprep.subr.mxu0 0.0
    %2147 = vmatpush1.xpose.msra.mxu0 0.0
    %2148 = vmatprep.subr.mxu0 0.0
    %2149 = vmatpush1.xpose.msra.mxu0 0.0
    %2150 = vmatprep.subr.mxu0 0.0
    %2151 = vmatpush1.xpose.msra.mxu0 0.0
    %2152 = vmatprep.subr.mxu0 0.0
    %2153 = vmatpush1.xpose.msra.mxu0 0.0
    %2154 = vmatprep.subr.mxu0 0.0
    %2155 = vmatpush1.xpose.msra.mxu0 0.0
    %2156 = vmatprep.subr.mxu0 0.0
    %2157 = vmatpush1.xpose.msra.mxu0 0.0
    %2158 = vmatprep.subr.mxu0 0.0
    %2159 = vmatpush1.xpose.msra.mxu0 0.0
    %2160 = vmatprep.subr.mxu0 0.0
    %2161 = vmatpush1.xpose.msra.mxu0 0.0
    %2162 = vmatprep.subr.mxu0 0.0
    %2163 = vmatpush1.xpose.msra.mxu0 0.0
    %2164 = vmatprep.subr.mxu0 0.0
    %2165 = vmatpush1.xpose.msra.mxu0 0.0
    %2166 = vmatprep.subr.mxu0 0.0
    %2167 = vmatpush1.xpose.msra.mxu0 0.0
    %2168 = vmatprep.subr.mxu0 0.0
    %2169 = vmatpush1.xpose.msra.mxu0 0.0
    %2170 = vmatprep.subr.mxu0 0.0
    %2171 = vmatpush1.xpose.msra.mxu0 0.0
    %2172 = vmatprep.subr.mxu0 0.0
    %2173 = vmatpush1.xpose.msra.mxu0 0.0
    %2174 = vmatprep.subr.mxu0 0.0
    %2175 = vmatpush1.xpose.msra.mxu0 0.0
    %2176 = vmatprep.subr.mxu0 0.0
    %2177 = vmatpush1.xpose.msra.mxu0 0.0
    %2178 = vmatprep.subr.mxu0 0.0
    %2179 = vmatpush1.xpose.msra.mxu0 0.0
    %2180 = vmatprep.subr.mxu0 0.0
    %2181 = vmatpush1.xpose.msra.mxu0 0.0
    %2182 = vmatprep.subr.mxu0 0.0
    %2183 = vmatpush1.xpose.msra.mxu0 0.0
    %2184 = vmatprep.subr.mxu0 0.0
    %2185 = vmatpush1.xpose.msra.mxu0 0.0
    %2186 = vmatprep.mubr.f32.mxu0 %v835
    %2187 = vmatmul.mubr.f32.gmra.mrb[0].mxu0 %v834
    %v2188 = vpop.f32.mrb[0].mxu0
    %v2189 = vadd.f32 %v2104, %v2188
    %v2190 = vpop.f32.mrb[0].mxu0
    %2191 = vmatprep.mubr.f32.mxu0 %v899
    %2192 = vmatmul.mubr.f32.gmra.mrb[0].mxu0 %v898
    %v2193 = vpop.f32.mrb[0].mxu0
    %v2194 = vadd.f32 %v2109, %v2193
    %v2195 = vpop.f32.mrb[0].mxu0
    %2196 = vmatprep.mubr.f32.mxu0 %v963
    %2197 = vmatmul.mubr.f32.gmra.mrb[0].mxu0 %v962
    %v2198 = vpop.f32.mrb[0].mxu0
    %v2199 = vadd.f32 %v2114, %v2198
    %v2200 = vpop.f32.mrb[0].mxu0
    %2201 = vmatprep.mubr.f32.mxu0 %v1027
    %2202 = vmatmul.mubr.f32.gmra.mrb[0].mxu0 %v1026
    %v2203 = vpop.f32.mrb[0].mxu0
    %v2204 = vadd.f32 %v2119, %v2203
    %v2205 = vpop.f32.mrb[0].mxu0
    %2206 = vdwg.mxu0
    %2207 = vmatprep.subr.mxu0 %v1190
    %2208 = vmatpush1.xpose.msra.mxu0 %v1188
    %2209 = vmatprep.subr.mxu0 0.0
    %2210 = vmatpush1.xpose.msra.mxu0 0.0
    %2211 = vmatprep.subr.mxu0 0.0
    %2212 = vmatpush1.xpose.msra.mxu0 0.0
    %2213 = vmatprep.subr.mxu0 0.0
    %2214 = vmatpush1.xpose.msra.mxu0 0.0
    %2215 = vmatprep.subr.mxu0 0.0
    %2216 = vmatpush1.xpose.msra.mxu0 0.0
    %2217 = vmatprep.subr.mxu0 0.0
    %2218 = vmatpush1.xpose.msra.mxu0 0.0
    %2219 = vmatprep.subr.mxu0 0.0
    %2220 = vmatpush1.xpose.msra.mxu0 0.0
    %2221 = vmatprep.subr.mxu0 0.0
    %2222 = vmatpush1.xpose.msra.mxu0 0.0
    %2223 = vmatprep.subr.mxu0 0.0
    %2224 = vmatpush1.xpose.msra.mxu0 0.0
    %2225 = vmatprep.subr.mxu0 0.0
    %2226 = vmatpush1.xpose.msra.mxu0 0.0
    %2227 = vmatprep.subr.mxu0 0.0
    %2228 = vmatpush1.xpose.msra.mxu0 0.0
    %2229 = vmatprep.subr.mxu0 0.0
    %2230 = vmatpush1.xpose.msra.mxu0 0.0
    %2231 = vmatprep.subr.mxu0 0.0
    %2232 = vmatpush1.xpose.msra.mxu0 0.0
    %2233 = vmatprep.subr.mxu0 0.0
    %2234 = vmatpush1.xpose.msra.mxu0 0.0
    %2235 = vmatprep.subr.mxu0 0.0
    %2236 = vmatpush1.xpose.msra.mxu0 0.0
    %2237 = vmatprep.subr.mxu0 0.0
    %2238 = vmatpush1.xpose.msra.mxu0 0.0
    %2239 = vmatprep.subr.mxu0 0.0
    %2240 = vmatpush1.xpose.msra.mxu0 0.0
    %2241 = vmatprep.subr.mxu0 0.0
    %2242 = vmatpush1.xpose.msra.mxu0 0.0
    %2243 = vmatprep.subr.mxu0 0.0
    %2244 = vmatpush1.xpose.msra.mxu0 0.0
    %2245 = vmatprep.subr.mxu0 0.0
    %2246 = vmatpush1.xpose.msra.mxu0 0.0
    %2247 = vmatprep.subr.mxu0 0.0
    %2248 = vmatpush1.xpose.msra.mxu0 0.0
    %2249 = vmatprep.subr.mxu0 0.0
    %2250 = vmatpush1.xpose.msra.mxu0 0.0
    %2251 = vmatprep.subr.mxu0 0.0
    %2252 = vmatpush1.xpose.msra.mxu0 0.0
    %2253 = vmatprep.subr.mxu0 0.0
    %2254 = vmatpush1.xpose.msra.mxu0 0.0
    %2255 = vmatprep.subr.mxu0 0.0
    %2256 = vmatpush1.xpose.msra.mxu0 0.0
    %2257 = vmatprep.subr.mxu0 0.0
    %2258 = vmatpush1.xpose.msra.mxu0 0.0
    %2259 = vmatprep.subr.mxu0 0.0
    %2260 = vmatpush1.xpose.msra.mxu0 0.0
    %2261 = vmatprep.subr.mxu0 0.0
    %2262 = vmatpush1.xpose.msra.mxu0 0.0
    %2263 = vmatprep.subr.mxu0 0.0
    %2264 = vmatpush1.xpose.msra.mxu0 0.0
    %2265 = vmatprep.subr.mxu0 0.0
    %2266 = vmatpush1.xpose.msra.mxu0 0.0
    %2267 = vmatprep.subr.mxu0 0.0
    %2268 = vmatpush1.xpose.msra.mxu0 0.0
    %2269 = vmatprep.subr.mxu0 0.0
    %2270 = vmatpush1.xpose.msra.mxu0 0.0
    %2271 = vmatprep.mubr.f32.mxu0 %v837
    %2272 = vmatmul.mubr.f32.gmra.mrb[0].mxu0 %v836
    %v2273 = vpop.f32.mrb[0].mxu0
    %v2274 = vadd.f32 %v2189, %v2273
    %v2275 = vpop.f32.mrb[0].mxu0
    %2276 = vmatprep.mubr.f32.mxu0 %v901
    %2277 = vmatmul.mubr.f32.gmra.mrb[0].mxu0 %v900
    %v2278 = vpop.f32.mrb[0].mxu0
    %v2279 = vadd.f32 %v2194, %v2278
    %v2280 = vpop.f32.mrb[0].mxu0
    %2281 = vmatprep.mubr.f32.mxu0 %v965
    %2282 = vmatmul.mubr.f32.gmra.mrb[0].mxu0 %v964
    %v2283 = vpop.f32.mrb[0].mxu0
    %v2284 = vadd.f32 %v2199, %v2283
    %v2285 = vpop.f32.mrb[0].mxu0
    %2286 = vmatprep.mubr.f32.mxu0 %v1029
    %2287 = vmatmul.mubr.f32.gmra.mrb[0].mxu0 %v1028
    %v2288 = vpop.f32.mrb[0].mxu0
    %v2289 = vadd.f32 %v2204, %v2288
    %v2290 = vpop.f32.mrb[0].mxu0
    %2291 = vdwg.mxu0
    %2292 = vmatprep.subr.mxu0 %v1206
    %2293 = vmatpush1.xpose.msra.mxu0 %v1198
    %2294 = vmatprep.subr.mxu0 0.0
    %2295 = vmatpush1.xpose.msra.mxu0 0.0
    %2296 = vmatprep.subr.mxu0 0.0
    %2297 = vmatpush1.xpose.msra.mxu0 0.0
    %2298 = vmatprep.subr.mxu0 0.0
    %2299 = vmatpush1.xpose.msra.mxu0 0.0
    %2300 = vmatprep.subr.mxu0 0.0
    %2301 = vmatpush1.xpose.msra.mxu0 0.0
    %2302 = vmatprep.subr.mxu0 0.0
    %2303 = vmatpush1.xpose.msra.mxu0 0.0
    %2304 = vmatprep.subr.mxu0 0.0
    %2305 = vmatpush1.xpose.msra.mxu0 0.0
    %2306 = vmatprep.subr.mxu0 0.0
    %2307 = vmatpush1.xpose.msra.mxu0 0.0
    %2308 = vmatprep.subr.mxu0 0.0
    %2309 = vmatpush1.xpose.msra.mxu0 0.0
    %2310 = vmatprep.subr.mxu0 0.0
    %2311 = vmatpush1.xpose.msra.mxu0 0.0
    %2312 = vmatprep.subr.mxu0 0.0
    %2313 = vmatpush1.xpose.msra.mxu0 0.0
    %2314 = vmatprep.subr.mxu0 0.0
    %2315 = vmatpush1.xpose.msra.mxu0 0.0
    %2316 = vmatprep.subr.mxu0 0.0
    %2317 = vmatpush1.xpose.msra.mxu0 0.0
    %2318 = vmatprep.subr.mxu0 0.0
    %2319 = vmatpush1.xpose.msra.mxu0 0.0
    %2320 = vmatprep.subr.mxu0 0.0
    %2321 = vmatpush1.xpose.msra.mxu0 0.0
    %2322 = vmatprep.subr.mxu0 0.0
    %2323 = vmatpush1.xpose.msra.mxu0 0.0
    %2324 = vmatprep.subr.mxu0 0.0
    %2325 = vmatpush1.xpose.msra.mxu0 0.0
    %2326 = vmatprep.subr.mxu0 0.0
    %2327 = vmatpush1.xpose.msra.mxu0 0.0
    %2328 = vmatprep.subr.mxu0 0.0
    %2329 = vmatpush1.xpose.msra.mxu0 0.0
    %2330 = vmatprep.subr.mxu0 0.0
    %2331 = vmatpush1.xpose.msra.mxu0 0.0
    %2332 = vmatprep.subr.mxu0 0.0
    %2333 = vmatpush1.xpose.msra.mxu0 0.0
    %2334 = vmatprep.subr.mxu0 0.0
    %2335 = vmatpush1.xpose.msra.mxu0 0.0
    %2336 = vmatprep.subr.mxu0 0.0
    %2337 = vmatpush1.xpose.msra.mxu0 0.0
    %2338 = vmatprep.subr.mxu0 0.0
    %2339 = vmatpush1.xpose.msra.mxu0 0.0
    %2340 = vmatprep.subr.mxu0 0.0
    %2341 = vmatpush1.xpose.msra.mxu0 0.0
    %2342 = vmatprep.subr.mxu0 0.0
    %2343 = vmatpush1.xpose.msra.mxu0 0.0
    %2344 = vmatprep.subr.mxu0 0.0
    %2345 = vmatpush1.xpose.msra.mxu0 0.0
    %2346 = vmatprep.subr.mxu0 0.0
    %2347 = vmatpush1.xpose.msra.mxu0 0.0
    %2348 = vmatprep.subr.mxu0 0.0
    %2349 = vmatpush1.xpose.msra.mxu0 0.0
    %2350 = vmatprep.subr.mxu0 0.0
    %2351 = vmatpush1.xpose.msra.mxu0 0.0
    %2352 = vmatprep.subr.mxu0 0.0
    %2353 = vmatpush1.xpose.msra.mxu0 0.0
    %2354 = vmatprep.subr.mxu0 0.0
    %2355 = vmatpush1.xpose.msra.mxu0 0.0
    %2356 = vmatprep.mubr.f32.mxu0 %v839
    %2357 = vmatmul.mubr.f32.gmra.mrb[0].mxu0 %v838
    %v2358 = vpop.f32.mrb[0].mxu0
    %v2359 = vadd.f32 %v2274, %v2358
    %v2360 = vpop.f32.mrb[0].mxu0
    %2361 = vmatprep.mubr.f32.mxu0 %v903
    %2362 = vmatmul.mubr.f32.gmra.mrb[0].mxu0 %v902
    %v2363 = vpop.f32.mrb[0].mxu0
    %v2364 = vadd.f32 %v2279, %v2363
    %v2365 = vpop.f32.mrb[0].mxu0
    %2366 = vmatprep.mubr.f32.mxu0 %v967
    %2367 = vmatmul.mubr.f32.gmra.mrb[0].mxu0 %v966
    %v2368 = vpop.f32.mrb[0].mxu0
    %v2369 = vadd.f32 %v2284, %v2368
    %v2370 = vpop.f32.mrb[0].mxu0
    %2371 = vmatprep.mubr.f32.mxu0 %v1031
    %2372 = vmatmul.mubr.f32.gmra.mrb[0].mxu0 %v1030
    %v2373 = vpop.f32.mrb[0].mxu0
    %v2374 = vadd.f32 %v2289, %v2373
    %v2375 = vpop.f32.mrb[0].mxu0
    %2376 = vdwg.mxu0
    %2377 = vmatprep.subr.mxu0 %v1207
    %2378 = vmatpush1.xpose.msra.mxu0 %v1205
    %2379 = vmatprep.subr.mxu0 0.0
    %2380 = vmatpush1.xpose.msra.mxu0 0.0
    %2381 = vmatprep.subr.mxu0 0.0
    %2382 = vmatpush1.xpose.msra.mxu0 0.0
    %2383 = vmatprep.subr.mxu0 0.0
    %2384 = vmatpush1.xpose.msra.mxu0 0.0
    %2385 = vmatprep.subr.mxu0 0.0
    %2386 = vmatpush1.xpose.msra.mxu0 0.0
    %2387 = vmatprep.subr.mxu0 0.0
    %2388 = vmatpush1.xpose.msra.mxu0 0.0
    %2389 = vmatprep.subr.mxu0 0.0
    %2390 = vmatpush1.xpose.msra.mxu0 0.0
    %2391 = vmatprep.subr.mxu0 0.0
    %2392 = vmatpush1.xpose.msra.mxu0 0.0
    %2393 = vmatprep.subr.mxu0 0.0
    %2394 = vmatpush1.xpose.msra.mxu0 0.0
    %2395 = vmatprep.subr.mxu0 0.0
    %2396 = vmatpush1.xpose.msra.mxu0 0.0
    %2397 = vmatprep.subr.mxu0 0.0
    %2398 = vmatpush1.xpose.msra.mxu0 0.0
    %2399 = vmatprep.subr.mxu0 0.0
    %2400 = vmatpush1.xpose.msra.mxu0 0.0
    %2401 = vmatprep.subr.mxu0 0.0
    %2402 = vmatpush1.xpose.msra.mxu0 0.0
    %2403 = vmatprep.subr.mxu0 0.0
    %2404 = vmatpush1.xpose.msra.mxu0 0.0
    %2405 = vmatprep.subr.mxu0 0.0
    %2406 = vmatpush1.xpose.msra.mxu0 0.0
    %2407 = vmatprep.subr.mxu0 0.0
    %2408 = vmatpush1.xpose.msra.mxu0 0.0
    %2409 = vmatprep.subr.mxu0 0.0
    %2410 = vmatpush1.xpose.msra.mxu0 0.0
    %2411 = vmatprep.subr.mxu0 0.0
    %2412 = vmatpush1.xpose.msra.mxu0 0.0
    %2413 = vmatprep.subr.mxu0 0.0
    %2414 = vmatpush1.xpose.msra.mxu0 0.0
    %2415 = vmatprep.subr.mxu0 0.0
    %2416 = vmatpush1.xpose.msra.mxu0 0.0
    %2417 = vmatprep.subr.mxu0 0.0
    %2418 = vmatpush1.xpose.msra.mxu0 0.0
    %2419 = vmatprep.subr.mxu0 0.0
    %2420 = vmatpush1.xpose.msra.mxu0 0.0
    %2421 = vmatprep.subr.mxu0 0.0
    %2422 = vmatpush1.xpose.msra.mxu0 0.0
    %2423 = vmatprep.subr.mxu0 0.0
    %2424 = vmatpush1.xpose.msra.mxu0 0.0
    %2425 = vmatprep.subr.mxu0 0.0
    %2426 = vmatpush1.xpose.msra.mxu0 0.0
    %2427 = vmatprep.subr.mxu0 0.0
    %2428 = vmatpush1.xpose.msra.mxu0 0.0
    %2429 = vmatprep.subr.mxu0 0.0
    %2430 = vmatpush1.xpose.msra.mxu0 0.0
    %2431 = vmatprep.subr.mxu0 0.0
    %2432 = vmatpush1.xpose.msra.mxu0 0.0
    %2433 = vmatprep.subr.mxu0 0.0
    %2434 = vmatpush1.xpose.msra.mxu0 0.0
    %2435 = vmatprep.subr.mxu0 0.0
    %2436 = vmatpush1.xpose.msra.mxu0 0.0
    %2437 = vmatprep.subr.mxu0 0.0
    %2438 = vmatpush1.xpose.msra.mxu0 0.0
    %2439 = vmatprep.subr.mxu0 0.0
    %2440 = vmatpush1.xpose.msra.mxu0 0.0
    %2441 = vmatprep.mubr.f32.mxu0 %v841
    %2442 = vmatmul.mubr.f32.gmra.mrb[0].mxu0 %v840
    %v2443 = vpop.f32.mrb[0].mxu0
    %v2444 = vadd.f32 %v2359, %v2443
    %v2445 = vpop.f32.mrb[0].mxu0
    %2446 = vmatprep.mubr.f32.mxu0 %v905
    %2447 = vmatmul.mubr.f32.gmra.mrb[0].mxu0 %v904
    %v2448 = vpop.f32.mrb[0].mxu0
    %v2449 = vadd.f32 %v2364, %v2448
    %v2450 = vpop.f32.mrb[0].mxu0
    %2451 = vmatprep.mubr.f32.mxu0 %v969
    %2452 = vmatmul.mubr.f32.gmra.mrb[0].mxu0 %v968
    %v2453 = vpop.f32.mrb[0].mxu0
    %v2454 = vadd.f32 %v2369, %v2453
    %v2455 = vpop.f32.mrb[0].mxu0
    %2456 = vmatprep.mubr.f32.mxu0 %v1033
    %2457 = vmatmul.mubr.f32.gmra.mrb[0].mxu0 %v1032
    %v2458 = vpop.f32.mrb[0].mxu0
    %v2459 = vadd.f32 %v2374, %v2458
    %v2460 = vpop.f32.mrb[0].mxu0
    %2461 = vdwg.mxu0
    %2462 = vmatprep.subr.mxu0 %v1223
    %2463 = vmatpush1.xpose.msra.mxu0 %v1215
    %2464 = vmatprep.subr.mxu0 0.0
    %2465 = vmatpush1.xpose.msra.mxu0 0.0
    %2466 = vmatprep.subr.mxu0 0.0
    %2467 = vmatpush1.xpose.msra.mxu0 0.0
    %2468 = vmatprep.subr.mxu0 0.0
    %2469 = vmatpush1.xpose.msra.mxu0 0.0
    %2470 = vmatprep.subr.mxu0 0.0
    %2471 = vmatpush1.xpose.msra.mxu0 0.0
    %2472 = vmatprep.subr.mxu0 0.0
    %2473 = vmatpush1.xpose.msra.mxu0 0.0
    %2474 = vmatprep.subr.mxu0 0.0
    %2475 = vmatpush1.xpose.msra.mxu0 0.0
    %2476 = vmatprep.subr.mxu0 0.0
    %2477 = vmatpush1.xpose.msra.mxu0 0.0
    %2478 = vmatprep.subr.mxu0 0.0
    %2479 = vmatpush1.xpose.msra.mxu0 0.0
    %2480 = vmatprep.subr.mxu0 0.0
    %2481 = vmatpush1.xpose.msra.mxu0 0.0
    %2482 = vmatprep.subr.mxu0 0.0
    %2483 = vmatpush1.xpose.msra.mxu0 0.0
    %2484 = vmatprep.subr.mxu0 0.0
    %2485 = vmatpush1.xpose.msra.mxu0 0.0
    %2486 = vmatprep.subr.mxu0 0.0
    %2487 = vmatpush1.xpose.msra.mxu0 0.0
    %2488 = vmatprep.subr.mxu0 0.0
    %2489 = vmatpush1.xpose.msra.mxu0 0.0
    %2490 = vmatprep.subr.mxu0 0.0
    %2491 = vmatpush1.xpose.msra.mxu0 0.0
    %2492 = vmatprep.subr.mxu0 0.0
    %2493 = vmatpush1.xpose.msra.mxu0 0.0
    %2494 = vmatprep.subr.mxu0 0.0
    %2495 = vmatpush1.xpose.msra.mxu0 0.0
    %2496 = vmatprep.subr.mxu0 0.0
    %2497 = vmatpush1.xpose.msra.mxu0 0.0
    %2498 = vmatprep.subr.mxu0 0.0
    %2499 = vmatpush1.xpose.msra.mxu0 0.0
    %2500 = vmatprep.subr.mxu0 0.0
    %2501 = vmatpush1.xpose.msra.mxu0 0.0
    %2502 = vmatprep.subr.mxu0 0.0
    %2503 = vmatpush1.xpose.msra.mxu0 0.0
    %2504 = vmatprep.subr.mxu0 0.0
    %2505 = vmatpush1.xpose.msra.mxu0 0.0
    %2506 = vmatprep.subr.mxu0 0.0
    %2507 = vmatpush1.xpose.msra.mxu0 0.0
    %2508 = vmatprep.subr.mxu0 0.0
    %2509 = vmatpush1.xpose.msra.mxu0 0.0
    %2510 = vmatprep.subr.mxu0 0.0
    %2511 = vmatpush1.xpose.msra.mxu0 0.0
    %2512 = vmatprep.subr.mxu0 0.0
    %2513 = vmatpush1.xpose.msra.mxu0 0.0
    %2514 = vmatprep.subr.mxu0 0.0
    %2515 = vmatpush1.xpose.msra.mxu0 0.0
    %2516 = vmatprep.subr.mxu0 0.0
    %2517 = vmatpush1.xpose.msra.mxu0 0.0
    %2518 = vmatprep.subr.mxu0 0.0
    %2519 = vmatpush1.xpose.msra.mxu0 0.0
    %2520 = vmatprep.subr.mxu0 0.0
    %2521 = vmatpush1.xpose.msra.mxu0 0.0
    %2522 = vmatprep.subr.mxu0 0.0
    %2523 = vmatpush1.xpose.msra.mxu0 0.0
    %2524 = vmatprep.subr.mxu0 0.0
    %2525 = vmatpush1.xpose.msra.mxu0 0.0
    %2526 = vmatprep.mubr.f32.mxu0 %v843
    %2527 = vmatmul.mubr.f32.gmra.mrb[0].mxu0 %v842
    %v2528 = vpop.f32.mrb[0].mxu0
    %v2529 = vadd.f32 %v2444, %v2528
    %v2530 = vpop.f32.mrb[0].mxu0
    %2531 = vmatprep.mubr.f32.mxu0 %v907
    %2532 = vmatmul.mubr.f32.gmra.mrb[0].mxu0 %v906
    %v2533 = vpop.f32.mrb[0].mxu0
    %v2534 = vadd.f32 %v2449, %v2533
    %v2535 = vpop.f32.mrb[0].mxu0
    %2536 = vmatprep.mubr.f32.mxu0 %v971
    %2537 = vmatmul.mubr.f32.gmra.mrb[0].mxu0 %v970
    %v2538 = vpop.f32.mrb[0].mxu0
    %v2539 = vadd.f32 %v2454, %v2538
    %v2540 = vpop.f32.mrb[0].mxu0
    %2541 = vmatprep.mubr.f32.mxu0 %v1035
    %2542 = vmatmul.mubr.f32.gmra.mrb[0].mxu0 %v1034
    %v2543 = vpop.f32.mrb[0].mxu0
    %v2544 = vadd.f32 %v2459, %v2543
    %v2545 = vpop.f32.mrb[0].mxu0
    %2546 = vdwg.mxu0
    %2547 = vmatprep.subr.mxu0 %v1224
    %2548 = vmatpush1.xpose.msra.mxu0 %v1222
    %2549 = vmatprep.subr.mxu0 0.0
    %2550 = vmatpush1.xpose.msra.mxu0 0.0
    %2551 = vmatprep.subr.mxu0 0.0
    %2552 = vmatpush1.xpose.msra.mxu0 0.0
    %2553 = vmatprep.subr.mxu0 0.0
    %2554 = vmatpush1.xpose.msra.mxu0 0.0
    %2555 = vmatprep.subr.mxu0 0.0
    %2556 = vmatpush1.xpose.msra.mxu0 0.0
    %2557 = vmatprep.subr.mxu0 0.0
    %2558 = vmatpush1.xpose.msra.mxu0 0.0
    %2559 = vmatprep.subr.mxu0 0.0
    %2560 = vmatpush1.xpose.msra.mxu0 0.0
    %2561 = vmatprep.subr.mxu0 0.0
    %2562 = vmatpush1.xpose.msra.mxu0 0.0
    %2563 = vmatprep.subr.mxu0 0.0
    %2564 = vmatpush1.xpose.msra.mxu0 0.0
    %2565 = vmatprep.subr.mxu0 0.0
    %2566 = vmatpush1.xpose.msra.mxu0 0.0
    %2567 = vmatprep.subr.mxu0 0.0
    %2568 = vmatpush1.xpose.msra.mxu0 0.0
    %2569 = vmatprep.subr.mxu0 0.0
    %2570 = vmatpush1.xpose.msra.mxu0 0.0
    %2571 = vmatprep.subr.mxu0 0.0
    %2572 = vmatpush1.xpose.msra.mxu0 0.0
    %2573 = vmatprep.subr.mxu0 0.0
    %2574 = vmatpush1.xpose.msra.mxu0 0.0
    %2575 = vmatprep.subr.mxu0 0.0
    %2576 = vmatpush1.xpose.msra.mxu0 0.0
    %2577 = vmatprep.subr.mxu0 0.0
    %2578 = vmatpush1.xpose.msra.mxu0 0.0
    %2579 = vmatprep.subr.mxu0 0.0
    %2580 = vmatpush1.xpose.msra.mxu0 0.0
    %2581 = vmatprep.subr.mxu0 0.0
    %2582 = vmatpush1.xpose.msra.mxu0 0.0
    %2583 = vmatprep.subr.mxu0 0.0
    %2584 = vmatpush1.xpose.msra.mxu0 0.0
    %2585 = vmatprep.subr.mxu0 0.0
    %2586 = vmatpush1.xpose.msra.mxu0 0.0
    %2587 = vmatprep.subr.mxu0 0.0
    %2588 = vmatpush1.xpose.msra.mxu0 0.0
    %2589 = vmatprep.subr.mxu0 0.0
    %2590 = vmatpush1.xpose.msra.mxu0 0.0
    %2591 = vmatprep.subr.mxu0 0.0
    %2592 = vmatpush1.xpose.msra.mxu0 0.0
    %2593 = vmatprep.subr.mxu0 0.0
    %2594 = vmatpush1.xpose.msra.mxu0 0.0
    %2595 = vmatprep.subr.mxu0 0.0
    %2596 = vmatpush1.xpose.msra.mxu0 0.0
    %2597 = vmatprep.subr.mxu0 0.0
    %2598 = vmatpush1.xpose.msra.mxu0 0.0
    %2599 = vmatprep.subr.mxu0 0.0
    %2600 = vmatpush1.xpose.msra.mxu0 0.0
    %2601 = vmatprep.subr.mxu0 0.0
    %2602 = vmatpush1.xpose.msra.mxu0 0.0
    %2603 = vmatprep.subr.mxu0 0.0
    %2604 = vmatpush1.xpose.msra.mxu0 0.0
    %2605 = vmatprep.subr.mxu0 0.0
    %2606 = vmatpush1.xpose.msra.mxu0 0.0
    %2607 = vmatprep.subr.mxu0 0.0
    %2608 = vmatpush1.xpose.msra.mxu0 0.0
    %2609 = vmatprep.subr.mxu0 0.0
    %2610 = vmatpush1.xpose.msra.mxu0 0.0
    %2611 = vmatprep.mubr.f32.mxu0 %v845
    %2612 = vmatmul.mubr.f32.gmra.mrb[0].mxu0 %v844
    %v2613 = vpop.f32.mrb[0].mxu0
    %v2614 = vadd.f32 %v2529, %v2613
    %v2615 = vpop.f32.mrb[0].mxu0
    %2616 = vmatprep.mubr.f32.mxu0 %v909
    %2617 = vmatmul.mubr.f32.gmra.mrb[0].mxu0 %v908
    %v2618 = vpop.f32.mrb[0].mxu0
    %v2619 = vadd.f32 %v2534, %v2618
    %v2620 = vpop.f32.mrb[0].mxu0
    %2621 = vmatprep.mubr.f32.mxu0 %v973
    %2622 = vmatmul.mubr.f32.gmra.mrb[0].mxu0 %v972
    %v2623 = vpop.f32.mrb[0].mxu0
    %v2624 = vadd.f32 %v2539, %v2623
    %v2625 = vpop.f32.mrb[0].mxu0
    %2626 = vmatprep.mubr.f32.mxu0 %v1037
    %2627 = vmatmul.mubr.f32.gmra.mrb[0].mxu0 %v1036
    %v2628 = vpop.f32.mrb[0].mxu0
    %v2629 = vadd.f32 %v2544, %v2628
    %v2630 = vpop.f32.mrb[0].mxu0
    %2631 = vdwg.mxu0
    %2632 = vmatprep.subr.mxu0 %v1240
    %2633 = vmatpush1.xpose.msra.mxu0 %v1232
    %2634 = vmatprep.subr.mxu0 0.0
    %2635 = vmatpush1.xpose.msra.mxu0 0.0
    %2636 = vmatprep.subr.mxu0 0.0
    %2637 = vmatpush1.xpose.msra.mxu0 0.0
    %2638 = vmatprep.subr.mxu0 0.0
    %2639 = vmatpush1.xpose.msra.mxu0 0.0
    %2640 = vmatprep.subr.mxu0 0.0
    %2641 = vmatpush1.xpose.msra.mxu0 0.0
    %2642 = vmatprep.subr.mxu0 0.0
    %2643 = vmatpush1.xpose.msra.mxu0 0.0
    %2644 = vmatprep.subr.mxu0 0.0
    %2645 = vmatpush1.xpose.msra.mxu0 0.0
    %2646 = vmatprep.subr.mxu0 0.0
    %2647 = vmatpush1.xpose.msra.mxu0 0.0
    %2648 = vmatprep.subr.mxu0 0.0
    %2649 = vmatpush1.xpose.msra.mxu0 0.0
    %2650 = vmatprep.subr.mxu0 0.0
    %2651 = vmatpush1.xpose.msra.mxu0 0.0
    %2652 = vmatprep.subr.mxu0 0.0
    %2653 = vmatpush1.xpose.msra.mxu0 0.0
    %2654 = vmatprep.subr.mxu0 0.0
    %2655 = vmatpush1.xpose.msra.mxu0 0.0
    %2656 = vmatprep.subr.mxu0 0.0
    %2657 = vmatpush1.xpose.msra.mxu0 0.0
    %2658 = vmatprep.subr.mxu0 0.0
    %2659 = vmatpush1.xpose.msra.mxu0 0.0
    %2660 = vmatprep.subr.mxu0 0.0
    %2661 = vmatpush1.xpose.msra.mxu0 0.0
    %2662 = vmatprep.subr.mxu0 0.0
    %2663 = vmatpush1.xpose.msra.mxu0 0.0
    %2664 = vmatprep.subr.mxu0 0.0
    %2665 = vmatpush1.xpose.msra.mxu0 0.0
    %2666 = vmatprep.subr.mxu0 0.0
    %2667 = vmatpush1.xpose.msra.mxu0 0.0
    %2668 = vmatprep.subr.mxu0 0.0
    %2669 = vmatpush1.xpose.msra.mxu0 0.0
    %2670 = vmatprep.subr.mxu0 0.0
    %2671 = vmatpush1.xpose.msra.mxu0 0.0
    %2672 = vmatprep.subr.mxu0 0.0
    %2673 = vmatpush1.xpose.msra.mxu0 0.0
    %2674 = vmatprep.subr.mxu0 0.0
    %2675 = vmatpush1.xpose.msra.mxu0 0.0
    %2676 = vmatprep.subr.mxu0 0.0
    %2677 = vmatpush1.xpose.msra.mxu0 0.0
    %2678 = vmatprep.subr.mxu0 0.0
    %2679 = vmatpush1.xpose.msra.mxu0 0.0
    %2680 = vmatprep.subr.mxu0 0.0
    %2681 = vmatpush1.xpose.msra.mxu0 0.0
    %2682 = vmatprep.subr.mxu0 0.0
    %2683 = vmatpush1.xpose.msra.mxu0 0.0
    %2684 = vmatprep.subr.mxu0 0.0
    %2685 = vmatpush1.xpose.msra.mxu0 0.0
    %2686 = vmatprep.subr.mxu0 0.0
    %2687 = vmatpush1.xpose.msra.mxu0 0.0
    %2688 = vmatprep.subr.mxu0 0.0
    %2689 = vmatpush1.xpose.msra.mxu0 0.0
    %2690 = vmatprep.subr.mxu0 0.0
    %2691 = vmatpush1.xpose.msra.mxu0 0.0
    %2692 = vmatprep.subr.mxu0 0.0
    %2693 = vmatpush1.xpose.msra.mxu0 0.0
    %2694 = vmatprep.subr.mxu0 0.0
    %2695 = vmatpush1.xpose.msra.mxu0 0.0
    %2696 = vmatprep.mubr.f32.mxu0 %v847
    %2697 = vmatmul.mubr.f32.gmra.mrb[0].mxu0 %v846
    %v2698 = vpop.f32.mrb[0].mxu0
    %v2699 = vadd.f32 %v2614, %v2698
    %v2700 = vpop.f32.mrb[0].mxu0
    %2701 = vmatprep.mubr.f32.mxu0 %v911
    %2702 = vmatmul.mubr.f32.gmra.mrb[0].mxu0 %v910
    %v2703 = vpop.f32.mrb[0].mxu0
    %v2704 = vadd.f32 %v2619, %v2703
    %v2705 = vpop.f32.mrb[0].mxu0
    %2706 = vmatprep.mubr.f32.mxu0 %v975
    %2707 = vmatmul.mubr.f32.gmra.mrb[0].mxu0 %v974
    %v2708 = vpop.f32.mrb[0].mxu0
    %v2709 = vadd.f32 %v2624, %v2708
    %v2710 = vpop.f32.mrb[0].mxu0
    %2711 = vmatprep.mubr.f32.mxu0 %v1039
    %2712 = vmatmul.mubr.f32.gmra.mrb[0].mxu0 %v1038
    %v2713 = vpop.f32.mrb[0].mxu0
    %v2714 = vadd.f32 %v2629, %v2713
    %v2715 = vpop.f32.mrb[0].mxu0
    %2716 = vdwg.mxu0
    %2717 = vmatprep.subr.mxu0 %v1241
    %2718 = vmatpush1.xpose.msra.mxu0 %v1239
    %2719 = vmatprep.subr.mxu0 0.0
    %2720 = vmatpush1.xpose.msra.mxu0 0.0
    %2721 = vmatprep.subr.mxu0 0.0
    %2722 = vmatpush1.xpose.msra.mxu0 0.0
    %2723 = vmatprep.subr.mxu0 0.0
    %2724 = vmatpush1.xpose.msra.mxu0 0.0
    %2725 = vmatprep.subr.mxu0 0.0
    %2726 = vmatpush1.xpose.msra.mxu0 0.0
    %2727 = vmatprep.subr.mxu0 0.0
    %2728 = vmatpush1.xpose.msra.mxu0 0.0
    %2729 = vmatprep.subr.mxu0 0.0
    %2730 = vmatpush1.xpose.msra.mxu0 0.0
    %2731 = vmatprep.subr.mxu0 0.0
    %2732 = vmatpush1.xpose.msra.mxu0 0.0
    %2733 = vmatprep.subr.mxu0 0.0
    %2734 = vmatpush1.xpose.msra.mxu0 0.0
    %2735 = vmatprep.subr.mxu0 0.0
    %2736 = vmatpush1.xpose.msra.mxu0 0.0
    %2737 = vmatprep.subr.mxu0 0.0
    %2738 = vmatpush1.xpose.msra.mxu0 0.0
    %2739 = vmatprep.subr.mxu0 0.0
    %2740 = vmatpush1.xpose.msra.mxu0 0.0
    %2741 = vmatprep.subr.mxu0 0.0
    %2742 = vmatpush1.xpose.msra.mxu0 0.0
    %2743 = vmatprep.subr.mxu0 0.0
    %2744 = vmatpush1.xpose.msra.mxu0 0.0
    %2745 = vmatprep.subr.mxu0 0.0
    %2746 = vmatpush1.xpose.msra.mxu0 0.0
    %2747 = vmatprep.subr.mxu0 0.0
    %2748 = vmatpush1.xpose.msra.mxu0 0.0
    %2749 = vmatprep.subr.mxu0 0.0
    %2750 = vmatpush1.xpose.msra.mxu0 0.0
    %2751 = vmatprep.subr.mxu0 0.0
    %2752 = vmatpush1.xpose.msra.mxu0 0.0
    %2753 = vmatprep.subr.mxu0 0.0
    %2754 = vmatpush1.xpose.msra.mxu0 0.0
    %2755 = vmatprep.subr.mxu0 0.0
    %2756 = vmatpush1.xpose.msra.mxu0 0.0
    %2757 = vmatprep.subr.mxu0 0.0
    %2758 = vmatpush1.xpose.msra.mxu0 0.0
    %2759 = vmatprep.subr.mxu0 0.0
    %2760 = vmatpush1.xpose.msra.mxu0 0.0
    %2761 = vmatprep.subr.mxu0 0.0
    %2762 = vmatpush1.xpose.msra.mxu0 0.0
    %2763 = vmatprep.subr.mxu0 0.0
    %2764 = vmatpush1.xpose.msra.mxu0 0.0
    %2765 = vmatprep.subr.mxu0 0.0
    %2766 = vmatpush1.xpose.msra.mxu0 0.0
    %2767 = vmatprep.subr.mxu0 0.0
    %2768 = vmatpush1.xpose.msra.mxu0 0.0
    %2769 = vmatprep.subr.mxu0 0.0
    %2770 = vmatpush1.xpose.msra.mxu0 0.0
    %2771 = vmatprep.subr.mxu0 0.0
    %2772 = vmatpush1.xpose.msra.mxu0 0.0
    %2773 = vmatprep.subr.mxu0 0.0
    %2774 = vmatpush1.xpose.msra.mxu0 0.0
    %2775 = vmatprep.subr.mxu0 0.0
    %2776 = vmatpush1.xpose.msra.mxu0 0.0
    %2777 = vmatprep.subr.mxu0 0.0
    %2778 = vmatpush1.xpose.msra.mxu0 0.0
    %2779 = vmatprep.subr.mxu0 0.0
    %2780 = vmatpush1.xpose.msra.mxu0 0.0
    %2781 = vmatprep.mubr.f32.mxu0 %v849
    %2782 = vmatmul.mubr.f32.gmra.mrb[0].mxu0 %v848
    %v2783 = vpop.f32.mrb[0].mxu0
    %v2784 = vadd.f32 %v2699, %v2783
    %v2785 = vpop.f32.mrb[0].mxu0
    %2786 = vmatprep.mubr.f32.mxu0 %v913
    %2787 = vmatmul.mubr.f32.gmra.mrb[0].mxu0 %v912
    %v2788 = vpop.f32.mrb[0].mxu0
    %v2789 = vadd.f32 %v2704, %v2788
    %v2790 = vpop.f32.mrb[0].mxu0
    %2791 = vmatprep.mubr.f32.mxu0 %v977
    %2792 = vmatmul.mubr.f32.gmra.mrb[0].mxu0 %v976
    %v2793 = vpop.f32.mrb[0].mxu0
    %v2794 = vadd.f32 %v2709, %v2793
    %v2795 = vpop.f32.mrb[0].mxu0
    %2796 = vmatprep.mubr.f32.mxu0 %v1041
    %2797 = vmatmul.mubr.f32.gmra.mrb[0].mxu0 %v1040
    %v2798 = vpop.f32.mrb[0].mxu0
    %v2799 = vadd.f32 %v2714, %v2798
    %v2800 = vpop.f32.mrb[0].mxu0
    %2801 = vdwg.mxu0
    %2802 = vmatprep.subr.mxu0 %v1257
    %2803 = vmatpush1.xpose.msra.mxu0 %v1249
    %2804 = vmatprep.subr.mxu0 0.0
    %2805 = vmatpush1.xpose.msra.mxu0 0.0
    %2806 = vmatprep.subr.mxu0 0.0
    %2807 = vmatpush1.xpose.msra.mxu0 0.0
    %2808 = vmatprep.subr.mxu0 0.0
    %2809 = vmatpush1.xpose.msra.mxu0 0.0
    %2810 = vmatprep.subr.mxu0 0.0
    %2811 = vmatpush1.xpose.msra.mxu0 0.0
    %2812 = vmatprep.subr.mxu0 0.0
    %2813 = vmatpush1.xpose.msra.mxu0 0.0
    %2814 = vmatprep.subr.mxu0 0.0
    %2815 = vmatpush1.xpose.msra.mxu0 0.0
    %2816 = vmatprep.subr.mxu0 0.0
    %2817 = vmatpush1.xpose.msra.mxu0 0.0
    %2818 = vmatprep.subr.mxu0 0.0
    %2819 = vmatpush1.xpose.msra.mxu0 0.0
    %2820 = vmatprep.subr.mxu0 0.0
    %2821 = vmatpush1.xpose.msra.mxu0 0.0
    %2822 = vmatprep.subr.mxu0 0.0
    %2823 = vmatpush1.xpose.msra.mxu0 0.0
    %2824 = vmatprep.subr.mxu0 0.0
    %2825 = vmatpush1.xpose.msra.mxu0 0.0
    %2826 = vmatprep.subr.mxu0 0.0
    %2827 = vmatpush1.xpose.msra.mxu0 0.0
    %2828 = vmatprep.subr.mxu0 0.0
    %2829 = vmatpush1.xpose.msra.mxu0 0.0
    %2830 = vmatprep.subr.mxu0 0.0
    %2831 = vmatpush1.xpose.msra.mxu0 0.0
    %2832 = vmatprep.subr.mxu0 0.0
    %2833 = vmatpush1.xpose.msra.mxu0 0.0
    %2834 = vmatprep.subr.mxu0 0.0
    %2835 = vmatpush1.xpose.msra.mxu0 0.0
    %2836 = vmatprep.subr.mxu0 0.0
    %2837 = vmatpush1.xpose.msra.mxu0 0.0
    %2838 = vmatprep.subr.mxu0 0.0
    %2839 = vmatpush1.xpose.msra.mxu0 0.0
    %2840 = vmatprep.subr.mxu0 0.0
    %2841 = vmatpush1.xpose.msra.mxu0 0.0
    %2842 = vmatprep.subr.mxu0 0.0
    %2843 = vmatpush1.xpose.msra.mxu0 0.0
    %2844 = vmatprep.subr.mxu0 0.0
    %2845 = vmatpush1.xpose.msra.mxu0 0.0
    %2846 = vmatprep.subr.mxu0 0.0
    %2847 = vmatpush1.xpose.msra.mxu0 0.0
    %2848 = vmatprep.subr.mxu0 0.0
    %2849 = vmatpush1.xpose.msra.mxu0 0.0
    %2850 = vmatprep.subr.mxu0 0.0
    %2851 = vmatpush1.xpose.msra.mxu0 0.0
    %2852 = vmatprep.subr.mxu0 0.0
    %2853 = vmatpush1.xpose.msra.mxu0 0.0
    %2854 = vmatprep.subr.mxu0 0.0
    %2855 = vmatpush1.xpose.msra.mxu0 0.0
    %2856 = vmatprep.subr.mxu0 0.0
    %2857 = vmatpush1.xpose.msra.mxu0 0.0
    %2858 = vmatprep.subr.mxu0 0.0
    %2859 = vmatpush1.xpose.msra.mxu0 0.0
    %2860 = vmatprep.subr.mxu0 0.0
    %2861 = vmatpush1.xpose.msra.mxu0 0.0
    %2862 = vmatprep.subr.mxu0 0.0
    %2863 = vmatpush1.xpose.msra.mxu0 0.0
    %2864 = vmatprep.subr.mxu0 0.0
    %2865 = vmatpush1.xpose.msra.mxu0 0.0
    %2866 = vmatprep.mubr.f32.mxu0 %v851
    %2867 = vmatmul.mubr.f32.gmra.mrb[0].mxu0 %v850
    %v2868 = vpop.f32.mrb[0].mxu0
    %v2869 = vadd.f32 %v2784, %v2868
    %v2870 = vpop.f32.mrb[0].mxu0
    %2871 = vmatprep.mubr.f32.mxu0 %v915
    %2872 = vmatmul.mubr.f32.gmra.mrb[0].mxu0 %v914
    %v2873 = vpop.f32.mrb[0].mxu0
    %v2874 = vadd.f32 %v2789, %v2873
    %v2875 = vpop.f32.mrb[0].mxu0
    %2876 = vmatprep.mubr.f32.mxu0 %v979
    %2877 = vmatmul.mubr.f32.gmra.mrb[0].mxu0 %v978
    %v2878 = vpop.f32.mrb[0].mxu0
    %v2879 = vadd.f32 %v2794, %v2878
    %v2880 = vpop.f32.mrb[0].mxu0
    %2881 = vmatprep.mubr.f32.mxu0 %v1043
    %2882 = vmatmul.mubr.f32.gmra.mrb[0].mxu0 %v1042
    %v2883 = vpop.f32.mrb[0].mxu0
    %v2884 = vadd.f32 %v2799, %v2883
    %v2885 = vpop.f32.mrb[0].mxu0
    %2886 = vdwg.mxu0
    %2887 = vmatprep.subr.mxu0 %v1258
    %2888 = vmatpush1.xpose.msra.mxu0 %v1256
    %2889 = vmatprep.subr.mxu0 0.0
    %2890 = vmatpush1.xpose.msra.mxu0 0.0
    %2891 = vmatprep.subr.mxu0 0.0
    %2892 = vmatpush1.xpose.msra.mxu0 0.0
    %2893 = vmatprep.subr.mxu0 0.0
    %2894 = vmatpush1.xpose.msra.mxu0 0.0
    %2895 = vmatprep.subr.mxu0 0.0
    %2896 = vmatpush1.xpose.msra.mxu0 0.0
    %2897 = vmatprep.subr.mxu0 0.0
    %2898 = vmatpush1.xpose.msra.mxu0 0.0
    %2899 = vmatprep.subr.mxu0 0.0
    %2900 = vmatpush1.xpose.msra.mxu0 0.0
    %2901 = vmatprep.subr.mxu0 0.0
    %2902 = vmatpush1.xpose.msra.mxu0 0.0
    %2903 = vmatprep.subr.mxu0 0.0
    %2904 = vmatpush1.xpose.msra.mxu0 0.0
    %2905 = vmatprep.subr.mxu0 0.0
    %2906 = vmatpush1.xpose.msra.mxu0 0.0
    %2907 = vmatprep.subr.mxu0 0.0
    %2908 = vmatpush1.xpose.msra.mxu0 0.0
    %2909 = vmatprep.subr.mxu0 0.0
    %2910 = vmatpush1.xpose.msra.mxu0 0.0
    %2911 = vmatprep.subr.mxu0 0.0
    %2912 = vmatpush1.xpose.msra.mxu0 0.0
    %2913 = vmatprep.subr.mxu0 0.0
    %2914 = vmatpush1.xpose.msra.mxu0 0.0
    %2915 = vmatprep.subr.mxu0 0.0
    %2916 = vmatpush1.xpose.msra.mxu0 0.0
    %2917 = vmatprep.subr.mxu0 0.0
    %2918 = vmatpush1.xpose.msra.mxu0 0.0
    %2919 = vmatprep.subr.mxu0 0.0
    %2920 = vmatpush1.xpose.msra.mxu0 0.0
    %2921 = vmatprep.subr.mxu0 0.0
    %2922 = vmatpush1.xpose.msra.mxu0 0.0
    %2923 = vmatprep.subr.mxu0 0.0
    %2924 = vmatpush1.xpose.msra.mxu0 0.0
    %2925 = vmatprep.subr.mxu0 0.0
    %2926 = vmatpush1.xpose.msra.mxu0 0.0
    %2927 = vmatprep.subr.mxu0 0.0
    %2928 = vmatpush1.xpose.msra.mxu0 0.0
    %2929 = vmatprep.subr.mxu0 0.0
    %2930 = vmatpush1.xpose.msra.mxu0 0.0
    %2931 = vmatprep.subr.mxu0 0.0
    %2932 = vmatpush1.xpose.msra.mxu0 0.0
    %2933 = vmatprep.subr.mxu0 0.0
    %2934 = vmatpush1.xpose.msra.mxu0 0.0
    %2935 = vmatprep.subr.mxu0 0.0
    %2936 = vmatpush1.xpose.msra.mxu0 0.0
    %2937 = vmatprep.subr.mxu0 0.0
    %2938 = vmatpush1.xpose.msra.mxu0 0.0
    %2939 = vmatprep.subr.mxu0 0.0
    %2940 = vmatpush1.xpose.msra.mxu0 0.0
    %2941 = vmatprep.subr.mxu0 0.0
    %2942 = vmatpush1.xpose.msra.mxu0 0.0
    %2943 = vmatprep.subr.mxu0 0.0
    %2944 = vmatpush1.xpose.msra.mxu0 0.0
    %2945 = vmatprep.subr.mxu0 0.0
    %2946 = vmatpush1.xpose.msra.mxu0 0.0
    %2947 = vmatprep.subr.mxu0 0.0
    %2948 = vmatpush1.xpose.msra.mxu0 0.0
    %2949 = vmatprep.subr.mxu0 0.0
    %2950 = vmatpush1.xpose.msra.mxu0 0.0
    %2951 = vmatprep.mubr.f32.mxu0 %v853
    %2952 = vmatmul.mubr.f32.gmra.mrb[0].mxu0 %v852
    %v2953 = vpop.f32.mrb[0].mxu0
    %v2954 = vadd.f32 %v2869, %v2953
    %v2955 = vpop.f32.mrb[0].mxu0
    %2956 = vmatprep.mubr.f32.mxu0 %v917
    %2957 = vmatmul.mubr.f32.gmra.mrb[0].mxu0 %v916
    %v2958 = vpop.f32.mrb[0].mxu0
    %v2959 = vadd.f32 %v2874, %v2958
    %v2960 = vpop.f32.mrb[0].mxu0
    %2961 = vmatprep.mubr.f32.mxu0 %v981
    %2962 = vmatmul.mubr.f32.gmra.mrb[0].mxu0 %v980
    %v2963 = vpop.f32.mrb[0].mxu0
    %v2964 = vadd.f32 %v2879, %v2963
    %v2965 = vpop.f32.mrb[0].mxu0
    %2966 = vmatprep.mubr.f32.mxu0 %v1045
    %2967 = vmatmul.mubr.f32.gmra.mrb[0].mxu0 %v1044
    %v2968 = vpop.f32.mrb[0].mxu0
    %v2969 = vadd.f32 %v2884, %v2968
    %v2970 = vpop.f32.mrb[0].mxu0
    %2971 = vdwg.mxu0
    %2972 = vmatprep.subr.mxu0 %v1274
    %2973 = vmatpush1.xpose.msra.mxu0 %v1266
    %2974 = vmatprep.subr.mxu0 0.0
    %2975 = vmatpush1.xpose.msra.mxu0 0.0
    %2976 = vmatprep.subr.mxu0 0.0
    %2977 = vmatpush1.xpose.msra.mxu0 0.0
    %2978 = vmatprep.subr.mxu0 0.0
    %2979 = vmatpush1.xpose.msra.mxu0 0.0
    %2980 = vmatprep.subr.mxu0 0.0
    %2981 = vmatpush1.xpose.msra.mxu0 0.0
    %2982 = vmatprep.subr.mxu0 0.0
    %2983 = vmatpush1.xpose.msra.mxu0 0.0
    %2984 = vmatprep.subr.mxu0 0.0
    %2985 = vmatpush1.xpose.msra.mxu0 0.0
    %2986 = vmatprep.subr.mxu0 0.0
    %2987 = vmatpush1.xpose.msra.mxu0 0.0
    %2988 = vmatprep.subr.mxu0 0.0
    %2989 = vmatpush1.xpose.msra.mxu0 0.0
    %2990 = vmatprep.subr.mxu0 0.0
    %2991 = vmatpush1.xpose.msra.mxu0 0.0
    %2992 = vmatprep.subr.mxu0 0.0
    %2993 = vmatpush1.xpose.msra.mxu0 0.0
    %2994 = vmatprep.subr.mxu0 0.0
    %2995 = vmatpush1.xpose.msra.mxu0 0.0
    %2996 = vmatprep.subr.mxu0 0.0
    %2997 = vmatpush1.xpose.msra.mxu0 0.0
    %2998 = vmatprep.subr.mxu0 0.0
    %2999 = vmatpush1.xpose.msra.mxu0 0.0
    %3000 = vmatprep.subr.mxu0 0.0
    %3001 = vmatpush1.xpose.msra.mxu0 0.0
    %3002 = vmatprep.subr.mxu0 0.0
    %3003 = vmatpush1.xpose.msra.mxu0 0.0
    %3004 = vmatprep.subr.mxu0 0.0
    %3005 = vmatpush1.xpose.msra.mxu0 0.0
    %3006 = vmatprep.subr.mxu0 0.0
    %3007 = vmatpush1.xpose.msra.mxu0 0.0
    %3008 = vmatprep.subr.mxu0 0.0
    %3009 = vmatpush1.xpose.msra.mxu0 0.0
    %3010 = vmatprep.subr.mxu0 0.0
    %3011 = vmatpush1.xpose.msra.mxu0 0.0
    %3012 = vmatprep.subr.mxu0 0.0
    %3013 = vmatpush1.xpose.msra.mxu0 0.0
    %3014 = vmatprep.subr.mxu0 0.0
    %3015 = vmatpush1.xpose.msra.mxu0 0.0
    %3016 = vmatprep.subr.mxu0 0.0
    %3017 = vmatpush1.xpose.msra.mxu0 0.0
    %3018 = vmatprep.subr.mxu0 0.0
    %3019 = vmatpush1.xpose.msra.mxu0 0.0
    %3020 = vmatprep.subr.mxu0 0.0
    %3021 = vmatpush1.xpose.msra.mxu0 0.0
    %3022 = vmatprep.subr.mxu0 0.0
    %3023 = vmatpush1.xpose.msra.mxu0 0.0
    %3024 = vmatprep.subr.mxu0 0.0
    %3025 = vmatpush1.xpose.msra.mxu0 0.0
    %3026 = vmatprep.subr.mxu0 0.0
    %3027 = vmatpush1.xpose.msra.mxu0 0.0
    %3028 = vmatprep.subr.mxu0 0.0
    %3029 = vmatpush1.xpose.msra.mxu0 0.0
    %3030 = vmatprep.subr.mxu0 0.0
    %3031 = vmatpush1.xpose.msra.mxu0 0.0
    %3032 = vmatprep.subr.mxu0 0.0
    %3033 = vmatpush1.xpose.msra.mxu0 0.0
    %3034 = vmatprep.subr.mxu0 0.0
    %3035 = vmatpush1.xpose.msra.mxu0 0.0
    %3036 = vmatprep.mubr.f32.mxu0 %v855
    %3037 = vmatmul.mubr.f32.gmra.mrb[0].mxu0 %v854
    %v3038 = vpop.f32.mrb[0].mxu0
    %v3039 = vadd.f32 %v2954, %v3038
    %v3040 = vpop.f32.mrb[0].mxu0
    %3041 = vmatprep.mubr.f32.mxu0 %v919
    %3042 = vmatmul.mubr.f32.gmra.mrb[0].mxu0 %v918
    %v3043 = vpop.f32.mrb[0].mxu0
    %v3044 = vadd.f32 %v2959, %v3043
    %v3045 = vpop.f32.mrb[0].mxu0
    %3046 = vmatprep.mubr.f32.mxu0 %v983
    %3047 = vmatmul.mubr.f32.gmra.mrb[0].mxu0 %v982
    %v3048 = vpop.f32.mrb[0].mxu0
    %v3049 = vadd.f32 %v2964, %v3048
    %v3050 = vpop.f32.mrb[0].mxu0
    %3051 = vmatprep.mubr.f32.mxu0 %v1047
    %3052 = vmatmul.mubr.f32.gmra.mrb[0].mxu0 %v1046
    %v3053 = vpop.f32.mrb[0].mxu0
    %v3054 = vadd.f32 %v2969, %v3053
    %v3055 = vpop.f32.mrb[0].mxu0
    %3056 = vdwg.mxu0
    %3057 = vmatprep.subr.mxu0 %v1275
    %3058 = vmatpush1.xpose.msra.mxu0 %v1273
    %3059 = vmatprep.subr.mxu0 0.0
    %3060 = vmatpush1.xpose.msra.mxu0 0.0
    %3061 = vmatprep.subr.mxu0 0.0
    %3062 = vmatpush1.xpose.msra.mxu0 0.0
    %3063 = vmatprep.subr.mxu0 0.0
    %3064 = vmatpush1.xpose.msra.mxu0 0.0
    %3065 = vmatprep.subr.mxu0 0.0
    %3066 = vmatpush1.xpose.msra.mxu0 0.0
    %3067 = vmatprep.subr.mxu0 0.0
    %3068 = vmatpush1.xpose.msra.mxu0 0.0
    %3069 = vmatprep.subr.mxu0 0.0
    %3070 = vmatpush1.xpose.msra.mxu0 0.0
    %3071 = vmatprep.subr.mxu0 0.0
    %3072 = vmatpush1.xpose.msra.mxu0 0.0
    %3073 = vmatprep.subr.mxu0 0.0
    %3074 = vmatpush1.xpose.msra.mxu0 0.0
    %3075 = vmatprep.subr.mxu0 0.0
    %3076 = vmatpush1.xpose.msra.mxu0 0.0
    %3077 = vmatprep.subr.mxu0 0.0
    %3078 = vmatpush1.xpose.msra.mxu0 0.0
    %3079 = vmatprep.subr.mxu0 0.0
    %3080 = vmatpush1.xpose.msra.mxu0 0.0
    %3081 = vmatprep.subr.mxu0 0.0
    %3082 = vmatpush1.xpose.msra.mxu0 0.0
    %3083 = vmatprep.subr.mxu0 0.0
    %3084 = vmatpush1.xpose.msra.mxu0 0.0
    %3085 = vmatprep.subr.mxu0 0.0
    %3086 = vmatpush1.xpose.msra.mxu0 0.0
    %3087 = vmatprep.subr.mxu0 0.0
    %3088 = vmatpush1.xpose.msra.mxu0 0.0
    %3089 = vmatprep.subr.mxu0 0.0
    %3090 = vmatpush1.xpose.msra.mxu0 0.0
    %3091 = vmatprep.subr.mxu0 0.0
    %3092 = vmatpush1.xpose.msra.mxu0 0.0
    %3093 = vmatprep.subr.mxu0 0.0
    %3094 = vmatpush1.xpose.msra.mxu0 0.0
    %3095 = vmatprep.subr.mxu0 0.0
    %3096 = vmatpush1.xpose.msra.mxu0 0.0
    %3097 = vmatprep.subr.mxu0 0.0
    %3098 = vmatpush1.xpose.msra.mxu0 0.0
    %3099 = vmatprep.subr.mxu0 0.0
    %3100 = vmatpush1.xpose.msra.mxu0 0.0
    %3101 = vmatprep.subr.mxu0 0.0
    %3102 = vmatpush1.xpose.msra.mxu0 0.0
    %3103 = vmatprep.subr.mxu0 0.0
    %3104 = vmatpush1.xpose.msra.mxu0 0.0
    %3105 = vmatprep.subr.mxu0 0.0
    %3106 = vmatpush1.xpose.msra.mxu0 0.0
    %3107 = vmatprep.subr.mxu0 0.0
    %3108 = vmatpush1.xpose.msra.mxu0 0.0
    %3109 = vmatprep.subr.mxu0 0.0
    %3110 = vmatpush1.xpose.msra.mxu0 0.0
    %3111 = vmatprep.subr.mxu0 0.0
    %3112 = vmatpush1.xpose.msra.mxu0 0.0
    %3113 = vmatprep.subr.mxu0 0.0
    %3114 = vmatpush1.xpose.msra.mxu0 0.0
    %3115 = vmatprep.subr.mxu0 0.0
    %3116 = vmatpush1.xpose.msra.mxu0 0.0
    %3117 = vmatprep.subr.mxu0 0.0
    %3118 = vmatpush1.xpose.msra.mxu0 0.0
    %3119 = vmatprep.subr.mxu0 0.0
    %3120 = vmatpush1.xpose.msra.mxu0 0.0
    %3121 = vmatprep.mubr.f32.mxu0 %v857
    %3122 = vmatmul.mubr.f32.gmra.mrb[0].mxu0 %v856
    %v3123 = vpop.f32.mrb[0].mxu0
    %v3124 = vadd.f32 %v3039, %v3123
    %v3125 = vpop.f32.mrb[0].mxu0
    %3126 = vmatprep.mubr.f32.mxu0 %v921
    %3127 = vmatmul.mubr.f32.gmra.mrb[0].mxu0 %v920
    %v3128 = vpop.f32.mrb[0].mxu0
    %v3129 = vadd.f32 %v3044, %v3128
    %v3130 = vpop.f32.mrb[0].mxu0
    %3131 = vmatprep.mubr.f32.mxu0 %v985
    %3132 = vmatmul.mubr.f32.gmra.mrb[0].mxu0 %v984
    %v3133 = vpop.f32.mrb[0].mxu0
    %v3134 = vadd.f32 %v3049, %v3133
    %v3135 = vpop.f32.mrb[0].mxu0
    %3136 = vmatprep.mubr.f32.mxu0 %v1049
    %3137 = vmatmul.mubr.f32.gmra.mrb[0].mxu0 %v1048
    %v3138 = vpop.f32.mrb[0].mxu0
    %v3139 = vadd.f32 %v3054, %v3138
    %v3140 = vpop.f32.mrb[0].mxu0
    %3141 = vdwg.mxu0
    %3142 = vmatprep.subr.mxu0 %v1291
    %3143 = vmatpush1.xpose.msra.mxu0 %v1283
    %3144 = vmatprep.subr.mxu0 0.0
    %3145 = vmatpush1.xpose.msra.mxu0 0.0
    %3146 = vmatprep.subr.mxu0 0.0
    %3147 = vmatpush1.xpose.msra.mxu0 0.0
    %3148 = vmatprep.subr.mxu0 0.0
    %3149 = vmatpush1.xpose.msra.mxu0 0.0
    %3150 = vmatprep.subr.mxu0 0.0
    %3151 = vmatpush1.xpose.msra.mxu0 0.0
    %3152 = vmatprep.subr.mxu0 0.0
    %3153 = vmatpush1.xpose.msra.mxu0 0.0
    %3154 = vmatprep.subr.mxu0 0.0
    %3155 = vmatpush1.xpose.msra.mxu0 0.0
    %3156 = vmatprep.subr.mxu0 0.0
    %3157 = vmatpush1.xpose.msra.mxu0 0.0
    %3158 = vmatprep.subr.mxu0 0.0
    %3159 = vmatpush1.xpose.msra.mxu0 0.0
    %3160 = vmatprep.subr.mxu0 0.0
    %3161 = vmatpush1.xpose.msra.mxu0 0.0
    %3162 = vmatprep.subr.mxu0 0.0
    %3163 = vmatpush1.xpose.msra.mxu0 0.0
    %3164 = vmatprep.subr.mxu0 0.0
    %3165 = vmatpush1.xpose.msra.mxu0 0.0
    %3166 = vmatprep.subr.mxu0 0.0
    %3167 = vmatpush1.xpose.msra.mxu0 0.0
    %3168 = vmatprep.subr.mxu0 0.0
    %3169 = vmatpush1.xpose.msra.mxu0 0.0
    %3170 = vmatprep.subr.mxu0 0.0
    %3171 = vmatpush1.xpose.msra.mxu0 0.0
    %3172 = vmatprep.subr.mxu0 0.0
    %3173 = vmatpush1.xpose.msra.mxu0 0.0
    %3174 = vmatprep.subr.mxu0 0.0
    %3175 = vmatpush1.xpose.msra.mxu0 0.0
    %3176 = vmatprep.subr.mxu0 0.0
    %3177 = vmatpush1.xpose.msra.mxu0 0.0
    %3178 = vmatprep.subr.mxu0 0.0
    %3179 = vmatpush1.xpose.msra.mxu0 0.0
    %3180 = vmatprep.subr.mxu0 0.0
    %3181 = vmatpush1.xpose.msra.mxu0 0.0
    %3182 = vmatprep.subr.mxu0 0.0
    %3183 = vmatpush1.xpose.msra.mxu0 0.0
    %3184 = vmatprep.subr.mxu0 0.0
    %3185 = vmatpush1.xpose.msra.mxu0 0.0
    %3186 = vmatprep.subr.mxu0 0.0
    %3187 = vmatpush1.xpose.msra.mxu0 0.0
    %3188 = vmatprep.subr.mxu0 0.0
    %3189 = vmatpush1.xpose.msra.mxu0 0.0
    %3190 = vmatprep.subr.mxu0 0.0
    %3191 = vmatpush1.xpose.msra.mxu0 0.0
    %3192 = vmatprep.subr.mxu0 0.0
    %3193 = vmatpush1.xpose.msra.mxu0 0.0
    %3194 = vmatprep.subr.mxu0 0.0
    %3195 = vmatpush1.xpose.msra.mxu0 0.0
    %3196 = vmatprep.subr.mxu0 0.0
    %3197 = vmatpush1.xpose.msra.mxu0 0.0
    %3198 = vmatprep.subr.mxu0 0.0
    %3199 = vmatpush1.xpose.msra.mxu0 0.0
    %3200 = vmatprep.subr.mxu0 0.0
    %3201 = vmatpush1.xpose.msra.mxu0 0.0
    %3202 = vmatprep.subr.mxu0 0.0
    %3203 = vmatpush1.xpose.msra.mxu0 0.0
    %3204 = vmatprep.subr.mxu0 0.0
    %3205 = vmatpush1.xpose.msra.mxu0 0.0
    %3206 = vmatprep.mubr.f32.mxu0 %v859
    %3207 = vmatmul.mubr.f32.gmra.mrb[0].mxu0 %v858
    %v3208 = vpop.f32.mrb[0].mxu0
    %v3209 = vadd.f32 %v3124, %v3208
    %v3210 = vpop.f32.mrb[0].mxu0
    %3211 = vmatprep.mubr.f32.mxu0 %v923
    %3212 = vmatmul.mubr.f32.gmra.mrb[0].mxu0 %v922
    %v3213 = vpop.f32.mrb[0].mxu0
    %v3214 = vadd.f32 %v3129, %v3213
    %v3215 = vpop.f32.mrb[0].mxu0
    %3216 = vmatprep.mubr.f32.mxu0 %v987
    %3217 = vmatmul.mubr.f32.gmra.mrb[0].mxu0 %v986
    %v3218 = vpop.f32.mrb[0].mxu0
    %v3219 = vadd.f32 %v3134, %v3218
    %v3220 = vpop.f32.mrb[0].mxu0
    %3221 = vmatprep.mubr.f32.mxu0 %v1051
    %3222 = vmatmul.mubr.f32.gmra.mrb[0].mxu0 %v1050
    %v3223 = vpop.f32.mrb[0].mxu0
    %v3224 = vadd.f32 %v3139, %v3223
    %v3225 = vpop.f32.mrb[0].mxu0
    %3226 = vdwg.mxu0
    %3227 = vmatprep.subr.mxu0 %v1292
    %3228 = vmatpush1.xpose.msra.mxu0 %v1290
    %3229 = vmatprep.subr.mxu0 0.0
    %3230 = vmatpush1.xpose.msra.mxu0 0.0
    %3231 = vmatprep.subr.mxu0 0.0
    %3232 = vmatpush1.xpose.msra.mxu0 0.0
    %3233 = vmatprep.subr.mxu0 0.0
    %3234 = vmatpush1.xpose.msra.mxu0 0.0
    %3235 = vmatprep.subr.mxu0 0.0
    %3236 = vmatpush1.xpose.msra.mxu0 0.0
    %3237 = vmatprep.subr.mxu0 0.0
    %3238 = vmatpush1.xpose.msra.mxu0 0.0
    %3239 = vmatprep.subr.mxu0 0.0
    %3240 = vmatpush1.xpose.msra.mxu0 0.0
    %3241 = vmatprep.subr.mxu0 0.0
    %3242 = vmatpush1.xpose.msra.mxu0 0.0
    %3243 = vmatprep.subr.mxu0 0.0
    %3244 = vmatpush1.xpose.msra.mxu0 0.0
    %3245 = vmatprep.subr.mxu0 0.0
    %3246 = vmatpush1.xpose.msra.mxu0 0.0
    %3247 = vmatprep.subr.mxu0 0.0
    %3248 = vmatpush1.xpose.msra.mxu0 0.0
    %3249 = vmatprep.subr.mxu0 0.0
    %3250 = vmatpush1.xpose.msra.mxu0 0.0
    %3251 = vmatprep.subr.mxu0 0.0
    %3252 = vmatpush1.xpose.msra.mxu0 0.0
    %3253 = vmatprep.subr.mxu0 0.0
    %3254 = vmatpush1.xpose.msra.mxu0 0.0
    %3255 = vmatprep.subr.mxu0 0.0
    %3256 = vmatpush1.xpose.msra.mxu0 0.0
    %3257 = vmatprep.subr.mxu0 0.0
    %3258 = vmatpush1.xpose.msra.mxu0 0.0
    %3259 = vmatprep.subr.mxu0 0.0
    %3260 = vmatpush1.xpose.msra.mxu0 0.0
    %3261 = vmatprep.subr.mxu0 0.0
    %3262 = vmatpush1.xpose.msra.mxu0 0.0
    %3263 = vmatprep.subr.mxu0 0.0
    %3264 = vmatpush1.xpose.msra.mxu0 0.0
    %3265 = vmatprep.subr.mxu0 0.0
    %3266 = vmatpush1.xpose.msra.mxu0 0.0
    %3267 = vmatprep.subr.mxu0 0.0
    %3268 = vmatpush1.xpose.msra.mxu0 0.0
    %3269 = vmatprep.subr.mxu0 0.0
    %3270 = vmatpush1.xpose.msra.mxu0 0.0
    %3271 = vmatprep.subr.mxu0 0.0
    %3272 = vmatpush1.xpose.msra.mxu0 0.0
    %3273 = vmatprep.subr.mxu0 0.0
    %3274 = vmatpush1.xpose.msra.mxu0 0.0
    %3275 = vmatprep.subr.mxu0 0.0
    %3276 = vmatpush1.xpose.msra.mxu0 0.0
    %3277 = vmatprep.subr.mxu0 0.0
    %3278 = vmatpush1.xpose.msra.mxu0 0.0
    %3279 = vmatprep.subr.mxu0 0.0
    %3280 = vmatpush1.xpose.msra.mxu0 0.0
    %3281 = vmatprep.subr.mxu0 0.0
    %3282 = vmatpush1.xpose.msra.mxu0 0.0
    %3283 = vmatprep.subr.mxu0 0.0
    %3284 = vmatpush1.xpose.msra.mxu0 0.0
    %3285 = vmatprep.subr.mxu0 0.0
    %3286 = vmatpush1.xpose.msra.mxu0 0.0
    %3287 = vmatprep.subr.mxu0 0.0
    %3288 = vmatpush1.xpose.msra.mxu0 0.0
    %3289 = vmatprep.subr.mxu0 0.0
    %3290 = vmatpush1.xpose.msra.mxu0 0.0
    %3291 = vmatprep.mubr.f32.mxu0 %v861
    %3292 = vmatmul.mubr.f32.gmra.mrb[0].mxu0 %v860
    %v3293 = vpop.f32.mrb[0].mxu0
    %v3294 = vadd.f32 %v3209, %v3293
    %v3295 = vpop.f32.mrb[0].mxu0
    %3296 = vmatprep.mubr.f32.mxu0 %v925
    %3297 = vmatmul.mubr.f32.gmra.mrb[0].mxu0 %v924
    %v3298 = vpop.f32.mrb[0].mxu0
    %v3299 = vadd.f32 %v3214, %v3298
    %v3300 = vpop.f32.mrb[0].mxu0
    %3301 = vmatprep.mubr.f32.mxu0 %v989
    %3302 = vmatmul.mubr.f32.gmra.mrb[0].mxu0 %v988
    %v3303 = vpop.f32.mrb[0].mxu0
    %v3304 = vadd.f32 %v3219, %v3303
    %v3305 = vpop.f32.mrb[0].mxu0
    %3306 = vmatprep.mubr.f32.mxu0 %v1053
    %3307 = vmatmul.mubr.f32.gmra.mrb[0].mxu0 %v1052
    %v3308 = vpop.f32.mrb[0].mxu0
    %v3309 = vadd.f32 %v3224, %v3308
    %v3310 = vpop.f32.mrb[0].mxu0
    %3311 = vdwg.mxu0
    %3312 = vmatprep.subr.mxu0 %v1308
    %3313 = vmatpush1.xpose.msra.mxu0 %v1300
    %3314 = vmatprep.subr.mxu0 0.0
    %3315 = vmatpush1.xpose.msra.mxu0 0.0
    %3316 = vmatprep.subr.mxu0 0.0
    %3317 = vmatpush1.xpose.msra.mxu0 0.0
    %3318 = vmatprep.subr.mxu0 0.0
    %3319 = vmatpush1.xpose.msra.mxu0 0.0
    %3320 = vmatprep.subr.mxu0 0.0
    %3321 = vmatpush1.xpose.msra.mxu0 0.0
    %3322 = vmatprep.subr.mxu0 0.0
    %3323 = vmatpush1.xpose.msra.mxu0 0.0
    %3324 = vmatprep.subr.mxu0 0.0
    %3325 = vmatpush1.xpose.msra.mxu0 0.0
    %3326 = vmatprep.subr.mxu0 0.0
    %3327 = vmatpush1.xpose.msra.mxu0 0.0
    %3328 = vmatprep.subr.mxu0 0.0
    %3329 = vmatpush1.xpose.msra.mxu0 0.0
    %3330 = vmatprep.subr.mxu0 0.0
    %3331 = vmatpush1.xpose.msra.mxu0 0.0
    %3332 = vmatprep.subr.mxu0 0.0
    %3333 = vmatpush1.xpose.msra.mxu0 0.0
    %3334 = vmatprep.subr.mxu0 0.0
    %3335 = vmatpush1.xpose.msra.mxu0 0.0
    %3336 = vmatprep.subr.mxu0 0.0
    %3337 = vmatpush1.xpose.msra.mxu0 0.0
    %3338 = vmatprep.subr.mxu0 0.0
    %3339 = vmatpush1.xpose.msra.mxu0 0.0
    %3340 = vmatprep.subr.mxu0 0.0
    %3341 = vmatpush1.xpose.msra.mxu0 0.0
    %3342 = vmatprep.subr.mxu0 0.0
    %3343 = vmatpush1.xpose.msra.mxu0 0.0
    %3344 = vmatprep.subr.mxu0 0.0
    %3345 = vmatpush1.xpose.msra.mxu0 0.0
    %3346 = vmatprep.subr.mxu0 0.0
    %3347 = vmatpush1.xpose.msra.mxu0 0.0
    %3348 = vmatprep.subr.mxu0 0.0
    %3349 = vmatpush1.xpose.msra.mxu0 0.0
    %3350 = vmatprep.subr.mxu0 0.0
    %3351 = vmatpush1.xpose.msra.mxu0 0.0
    %3352 = vmatprep.subr.mxu0 0.0
    %3353 = vmatpush1.xpose.msra.mxu0 0.0
    %3354 = vmatprep.subr.mxu0 0.0
    %3355 = vmatpush1.xpose.msra.mxu0 0.0
    %3356 = vmatprep.subr.mxu0 0.0
    %3357 = vmatpush1.xpose.msra.mxu0 0.0
    %3358 = vmatprep.subr.mxu0 0.0
    %3359 = vmatpush1.xpose.msra.mxu0 0.0
    %3360 = vmatprep.subr.mxu0 0.0
    %3361 = vmatpush1.xpose.msra.mxu0 0.0
    %3362 = vmatprep.subr.mxu0 0.0
    %3363 = vmatpush1.xpose.msra.mxu0 0.0
    %3364 = vmatprep.subr.mxu0 0.0
    %3365 = vmatpush1.xpose.msra.mxu0 0.0
    %3366 = vmatprep.subr.mxu0 0.0
    %3367 = vmatpush1.xpose.msra.mxu0 0.0
    %3368 = vmatprep.subr.mxu0 0.0
    %3369 = vmatpush1.xpose.msra.mxu0 0.0
    %3370 = vmatprep.subr.mxu0 0.0
    %3371 = vmatpush1.xpose.msra.mxu0 0.0
    %3372 = vmatprep.subr.mxu0 0.0
    %3373 = vmatpush1.xpose.msra.mxu0 0.0
    %3374 = vmatprep.subr.mxu0 0.0
    %3375 = vmatpush1.xpose.msra.mxu0 0.0
    %3376 = vmatprep.mubr.f32.mxu0 %v863
    %3377 = vmatmul.mubr.f32.gmra.mrb[0].mxu0 %v862
    %v3378 = vpop.f32.mrb[0].mxu0
    %v3379 = vadd.f32 %v3294, %v3378
    %v3380 = vpop.f32.mrb[0].mxu0
    %3381 = vmatprep.mubr.f32.mxu0 %v927
    %3382 = vmatmul.mubr.f32.gmra.mrb[0].mxu0 %v926
    %v3383 = vpop.f32.mrb[0].mxu0
    %v3384 = vadd.f32 %v3299, %v3383
    %v3385 = vpop.f32.mrb[0].mxu0
    %3386 = vmatprep.mubr.f32.mxu0 %v991
    %3387 = vmatmul.mubr.f32.gmra.mrb[0].mxu0 %v990
    %v3388 = vpop.f32.mrb[0].mxu0
    %v3389 = vadd.f32 %v3304, %v3388
    %v3390 = vpop.f32.mrb[0].mxu0
    %3391 = vmatprep.mubr.f32.mxu0 %v1055
    %3392 = vmatmul.mubr.f32.gmra.mrb[0].mxu0 %v1054
    %v3393 = vpop.f32.mrb[0].mxu0
    %v3394 = vadd.f32 %v3309, %v3393
    %v3395 = vpop.f32.mrb[0].mxu0
    %3396 = vdwg.mxu0
    %3397 = vmatprep.subr.mxu0 %v1309
    %3398 = vmatpush1.xpose.msra.mxu0 %v1307
    %3399 = vmatprep.subr.mxu0 0.0
    %3400 = vmatpush1.xpose.msra.mxu0 0.0
    %3401 = vmatprep.subr.mxu0 0.0
    %3402 = vmatpush1.xpose.msra.mxu0 0.0
    %3403 = vmatprep.subr.mxu0 0.0
    %3404 = vmatpush1.xpose.msra.mxu0 0.0
    %3405 = vmatprep.subr.mxu0 0.0
    %3406 = vmatpush1.xpose.msra.mxu0 0.0
    %3407 = vmatprep.subr.mxu0 0.0
    %3408 = vmatpush1.xpose.msra.mxu0 0.0
    %3409 = vmatprep.subr.mxu0 0.0
    %3410 = vmatpush1.xpose.msra.mxu0 0.0
    %3411 = vmatprep.subr.mxu0 0.0
    %3412 = vmatpush1.xpose.msra.mxu0 0.0
    %3413 = vmatprep.subr.mxu0 0.0
    %3414 = vmatpush1.xpose.msra.mxu0 0.0
    %3415 = vmatprep.subr.mxu0 0.0
    %3416 = vmatpush1.xpose.msra.mxu0 0.0
    %3417 = vmatprep.subr.mxu0 0.0
    %3418 = vmatpush1.xpose.msra.mxu0 0.0
    %3419 = vmatprep.subr.mxu0 0.0
    %3420 = vmatpush1.xpose.msra.mxu0 0.0
    %3421 = vmatprep.subr.mxu0 0.0
    %3422 = vmatpush1.xpose.msra.mxu0 0.0
    %3423 = vmatprep.subr.mxu0 0.0
    %3424 = vmatpush1.xpose.msra.mxu0 0.0
    %3425 = vmatprep.subr.mxu0 0.0
    %3426 = vmatpush1.xpose.msra.mxu0 0.0
    %3427 = vmatprep.subr.mxu0 0.0
    %3428 = vmatpush1.xpose.msra.mxu0 0.0
    %3429 = vmatprep.subr.mxu0 0.0
    %3430 = vmatpush1.xpose.msra.mxu0 0.0
    %3431 = vmatprep.subr.mxu0 0.0
    %3432 = vmatpush1.xpose.msra.mxu0 0.0
    %3433 = vmatprep.subr.mxu0 0.0
    %3434 = vmatpush1.xpose.msra.mxu0 0.0
    %3435 = vmatprep.subr.mxu0 0.0
    %3436 = vmatpush1.xpose.msra.mxu0 0.0
    %3437 = vmatprep.subr.mxu0 0.0
    %3438 = vmatpush1.xpose.msra.mxu0 0.0
    %3439 = vmatprep.subr.mxu0 0.0
    %3440 = vmatpush1.xpose.msra.mxu0 0.0
    %3441 = vmatprep.subr.mxu0 0.0
    %3442 = vmatpush1.xpose.msra.mxu0 0.0
    %3443 = vmatprep.subr.mxu0 0.0
    %3444 = vmatpush1.xpose.msra.mxu0 0.0
    %3445 = vmatprep.subr.mxu0 0.0
    %3446 = vmatpush1.xpose.msra.mxu0 0.0
    %3447 = vmatprep.subr.mxu0 0.0
    %3448 = vmatpush1.xpose.msra.mxu0 0.0
    %3449 = vmatprep.subr.mxu0 0.0
    %3450 = vmatpush1.xpose.msra.mxu0 0.0
    %3451 = vmatprep.subr.mxu0 0.0
    %3452 = vmatpush1.xpose.msra.mxu0 0.0
    %3453 = vmatprep.subr.mxu0 0.0
    %3454 = vmatpush1.xpose.msra.mxu0 0.0
    %3455 = vmatprep.subr.mxu0 0.0
    %3456 = vmatpush1.xpose.msra.mxu0 0.0
    %3457 = vmatprep.subr.mxu0 0.0
    %3458 = vmatpush1.xpose.msra.mxu0 0.0
    %3459 = vmatprep.subr.mxu0 0.0
    %3460 = vmatpush1.xpose.msra.mxu0 0.0
    %3461 = vmatprep.mubr.f32.mxu0 %v865
    %3462 = vmatmul.mubr.f32.gmra.mrb[0].mxu0 %v864
    %v3463 = vpop.f32.mrb[0].mxu0
    %v3464 = vadd.f32 %v3379, %v3463
    %v3465 = vpop.f32.mrb[0].mxu0
    %3466 = vmatprep.mubr.f32.mxu0 %v929
    %3467 = vmatmul.mubr.f32.gmra.mrb[0].mxu0 %v928
    %v3468 = vpop.f32.mrb[0].mxu0
    %v3469 = vadd.f32 %v3384, %v3468
    %v3470 = vpop.f32.mrb[0].mxu0
    %3471 = vmatprep.mubr.f32.mxu0 %v993
    %3472 = vmatmul.mubr.f32.gmra.mrb[0].mxu0 %v992
    %v3473 = vpop.f32.mrb[0].mxu0
    %v3474 = vadd.f32 %v3389, %v3473
    %v3475 = vpop.f32.mrb[0].mxu0
    %3476 = vmatprep.mubr.f32.mxu0 %v1057
    %3477 = vmatmul.mubr.f32.gmra.mrb[0].mxu0 %v1056
    %v3478 = vpop.f32.mrb[0].mxu0
    %v3479 = vadd.f32 %v3394, %v3478
    %v3480 = vpop.f32.mrb[0].mxu0
    %3481 = vdwg.mxu0
    %3482 = vmatprep.subr.mxu0 %v1325
    %3483 = vmatpush1.xpose.msra.mxu0 %v1317
    %3484 = vmatprep.subr.mxu0 0.0
    %3485 = vmatpush1.xpose.msra.mxu0 0.0
    %3486 = vmatprep.subr.mxu0 0.0
    %3487 = vmatpush1.xpose.msra.mxu0 0.0
    %3488 = vmatprep.subr.mxu0 0.0
    %3489 = vmatpush1.xpose.msra.mxu0 0.0
    %3490 = vmatprep.subr.mxu0 0.0
    %3491 = vmatpush1.xpose.msra.mxu0 0.0
    %3492 = vmatprep.subr.mxu0 0.0
    %3493 = vmatpush1.xpose.msra.mxu0 0.0
    %3494 = vmatprep.subr.mxu0 0.0
    %3495 = vmatpush1.xpose.msra.mxu0 0.0
    %3496 = vmatprep.subr.mxu0 0.0
    %3497 = vmatpush1.xpose.msra.mxu0 0.0
    %3498 = vmatprep.subr.mxu0 0.0
    %3499 = vmatpush1.xpose.msra.mxu0 0.0
    %3500 = vmatprep.subr.mxu0 0.0
    %3501 = vmatpush1.xpose.msra.mxu0 0.0
    %3502 = vmatprep.subr.mxu0 0.0
    %3503 = vmatpush1.xpose.msra.mxu0 0.0
    %3504 = vmatprep.subr.mxu0 0.0
    %3505 = vmatpush1.xpose.msra.mxu0 0.0
    %3506 = vmatprep.subr.mxu0 0.0
    %3507 = vmatpush1.xpose.msra.mxu0 0.0
    %3508 = vmatprep.subr.mxu0 0.0
    %3509 = vmatpush1.xpose.msra.mxu0 0.0
    %3510 = vmatprep.subr.mxu0 0.0
    %3511 = vmatpush1.xpose.msra.mxu0 0.0
    %3512 = vmatprep.subr.mxu0 0.0
    %3513 = vmatpush1.xpose.msra.mxu0 0.0
    %3514 = vmatprep.subr.mxu0 0.0
    %3515 = vmatpush1.xpose.msra.mxu0 0.0
    %3516 = vmatprep.subr.mxu0 0.0
    %3517 = vmatpush1.xpose.msra.mxu0 0.0
    %3518 = vmatprep.subr.mxu0 0.0
    %3519 = vmatpush1.xpose.msra.mxu0 0.0
    %3520 = vmatprep.subr.mxu0 0.0
    %3521 = vmatpush1.xpose.msra.mxu0 0.0
    %3522 = vmatprep.subr.mxu0 0.0
    %3523 = vmatpush1.xpose.msra.mxu0 0.0
    %3524 = vmatprep.subr.mxu0 0.0
    %3525 = vmatpush1.xpose.msra.mxu0 0.0
    %3526 = vmatprep.subr.mxu0 0.0
    %3527 = vmatpush1.xpose.msra.mxu0 0.0
    %3528 = vmatprep.subr.mxu0 0.0
    %3529 = vmatpush1.xpose.msra.mxu0 0.0
    %3530 = vmatprep.subr.mxu0 0.0
    %3531 = vmatpush1.xpose.msra.mxu0 0.0
    %3532 = vmatprep.subr.mxu0 0.0
    %3533 = vmatpush1.xpose.msra.mxu0 0.0
    %3534 = vmatprep.subr.mxu0 0.0
    %3535 = vmatpush1.xpose.msra.mxu0 0.0
    %3536 = vmatprep.subr.mxu0 0.0
    %3537 = vmatpush1.xpose.msra.mxu0 0.0
    %3538 = vmatprep.subr.mxu0 0.0
    %3539 = vmatpush1.xpose.msra.mxu0 0.0
    %3540 = vmatprep.subr.mxu0 0.0
    %3541 = vmatpush1.xpose.msra.mxu0 0.0
    %3542 = vmatprep.subr.mxu0 0.0
    %3543 = vmatpush1.xpose.msra.mxu0 0.0
    %3544 = vmatprep.subr.mxu0 0.0
    %3545 = vmatpush1.xpose.msra.mxu0 0.0
    %3546 = vmatprep.mubr.f32.mxu0 %v867
    %3547 = vmatmul.mubr.f32.gmra.mrb[0].mxu0 %v866
    %v3548 = vpop.f32.mrb[0].mxu0
    %v3549 = vadd.f32 %v3464, %v3548
    %v3550 = vpop.f32.mrb[0].mxu0
    %3551 = vmatprep.mubr.f32.mxu0 %v931
    %3552 = vmatmul.mubr.f32.gmra.mrb[0].mxu0 %v930
    %v3553 = vpop.f32.mrb[0].mxu0
    %v3554 = vadd.f32 %v3469, %v3553
    %v3555 = vpop.f32.mrb[0].mxu0
    %3556 = vmatprep.mubr.f32.mxu0 %v995
    %3557 = vmatmul.mubr.f32.gmra.mrb[0].mxu0 %v994
    %v3558 = vpop.f32.mrb[0].mxu0
    %v3559 = vadd.f32 %v3474, %v3558
    %v3560 = vpop.f32.mrb[0].mxu0
    %3561 = vmatprep.mubr.f32.mxu0 %v1059
    %3562 = vmatmul.mubr.f32.gmra.mrb[0].mxu0 %v1058
    %v3563 = vpop.f32.mrb[0].mxu0
    %v3564 = vadd.f32 %v3479, %v3563
    %v3565 = vpop.f32.mrb[0].mxu0
    %3566 = vdwg.mxu0
    %3567 = vmatprep.subr.mxu0 %v1326
    %3568 = vmatpush1.xpose.msra.mxu0 %v1324
    %3569 = vmatprep.subr.mxu0 0.0
    %3570 = vmatpush1.xpose.msra.mxu0 0.0
    %3571 = vmatprep.subr.mxu0 0.0
    %3572 = vmatpush1.xpose.msra.mxu0 0.0
    %3573 = vmatprep.subr.mxu0 0.0
    %3574 = vmatpush1.xpose.msra.mxu0 0.0
    %3575 = vmatprep.subr.mxu0 0.0
    %3576 = vmatpush1.xpose.msra.mxu0 0.0
    %3577 = vmatprep.subr.mxu0 0.0
    %3578 = vmatpush1.xpose.msra.mxu0 0.0
    %3579 = vmatprep.subr.mxu0 0.0
    %3580 = vmatpush1.xpose.msra.mxu0 0.0
    %3581 = vmatprep.subr.mxu0 0.0
    %3582 = vmatpush1.xpose.msra.mxu0 0.0
    %3583 = vmatprep.subr.mxu0 0.0
    %3584 = vmatpush1.xpose.msra.mxu0 0.0
    %3585 = vmatprep.subr.mxu0 0.0
    %3586 = vmatpush1.xpose.msra.mxu0 0.0
    %3587 = vmatprep.subr.mxu0 0.0
    %3588 = vmatpush1.xpose.msra.mxu0 0.0
    %3589 = vmatprep.subr.mxu0 0.0
    %3590 = vmatpush1.xpose.msra.mxu0 0.0
    %3591 = vmatprep.subr.mxu0 0.0
    %3592 = vmatpush1.xpose.msra.mxu0 0.0
    %3593 = vmatprep.subr.mxu0 0.0
    %3594 = vmatpush1.xpose.msra.mxu0 0.0
    %3595 = vmatprep.subr.mxu0 0.0
    %3596 = vmatpush1.xpose.msra.mxu0 0.0
    %3597 = vmatprep.subr.mxu0 0.0
    %3598 = vmatpush1.xpose.msra.mxu0 0.0
    %3599 = vmatprep.subr.mxu0 0.0
    %3600 = vmatpush1.xpose.msra.mxu0 0.0
    %3601 = vmatprep.subr.mxu0 0.0
    %3602 = vmatpush1.xpose.msra.mxu0 0.0
    %3603 = vmatprep.subr.mxu0 0.0
    %3604 = vmatpush1.xpose.msra.mxu0 0.0
    %3605 = vmatprep.subr.mxu0 0.0
    %3606 = vmatpush1.xpose.msra.mxu0 0.0
    %3607 = vmatprep.subr.mxu0 0.0
    %3608 = vmatpush1.xpose.msra.mxu0 0.0
    %3609 = vmatprep.subr.mxu0 0.0
    %3610 = vmatpush1.xpose.msra.mxu0 0.0
    %3611 = vmatprep.subr.mxu0 0.0
    %3612 = vmatpush1.xpose.msra.mxu0 0.0
    %3613 = vmatprep.subr.mxu0 0.0
    %3614 = vmatpush1.xpose.msra.mxu0 0.0
    %3615 = vmatprep.subr.mxu0 0.0
    %3616 = vmatpush1.xpose.msra.mxu0 0.0
    %3617 = vmatprep.subr.mxu0 0.0
    %3618 = vmatpush1.xpose.msra.mxu0 0.0
    %3619 = vmatprep.subr.mxu0 0.0
    %3620 = vmatpush1.xpose.msra.mxu0 0.0
    %3621 = vmatprep.subr.mxu0 0.0
    %3622 = vmatpush1.xpose.msra.mxu0 0.0
    %3623 = vmatprep.subr.mxu0 0.0
    %3624 = vmatpush1.xpose.msra.mxu0 0.0
    %3625 = vmatprep.subr.mxu0 0.0
    %3626 = vmatpush1.xpose.msra.mxu0 0.0
    %3627 = vmatprep.subr.mxu0 0.0
    %3628 = vmatpush1.xpose.msra.mxu0 0.0
    %3629 = vmatprep.subr.mxu0 0.0
    %3630 = vmatpush1.xpose.msra.mxu0 0.0
    %3631 = vmatprep.mubr.f32.mxu0 %v869
    %3632 = vmatmul.mubr.f32.gmra.mrb[0].mxu0 %v868
    %v3633 = vpop.f32.mrb[0].mxu0
    %v3634 = vadd.f32 %v3549, %v3633
    %v3635 = vpop.f32.mrb[0].mxu0
    %3636 = vmatprep.mubr.f32.mxu0 %v933
    %3637 = vmatmul.mubr.f32.gmra.mrb[0].mxu0 %v932
    %v3638 = vpop.f32.mrb[0].mxu0
    %v3639 = vadd.f32 %v3554, %v3638
    %v3640 = vpop.f32.mrb[0].mxu0
    %3641 = vmatprep.mubr.f32.mxu0 %v997
    %3642 = vmatmul.mubr.f32.gmra.mrb[0].mxu0 %v996
    %v3643 = vpop.f32.mrb[0].mxu0
    %v3644 = vadd.f32 %v3559, %v3643
    %v3645 = vpop.f32.mrb[0].mxu0
    %3646 = vmatprep.mubr.f32.mxu0 %v1061
    %3647 = vmatmul.mubr.f32.gmra.mrb[0].mxu0 %v1060
    %v3648 = vpop.f32.mrb[0].mxu0
    %v3649 = vadd.f32 %v3564, %v3648
    %v3650 = vpop.f32.mrb[0].mxu0
    %3651 = vdwg.mxu0
    %3652 = vmatprep.subr.mxu0 %v1342
    %3653 = vmatpush1.xpose.msra.mxu0 %v1334
    %3654 = vmatprep.subr.mxu0 0.0
    %3655 = vmatpush1.xpose.msra.mxu0 0.0
    %3656 = vmatprep.subr.mxu0 0.0
    %3657 = vmatpush1.xpose.msra.mxu0 0.0
    %3658 = vmatprep.subr.mxu0 0.0
    %3659 = vmatpush1.xpose.msra.mxu0 0.0
    %3660 = vmatprep.subr.mxu0 0.0
    %3661 = vmatpush1.xpose.msra.mxu0 0.0
    %3662 = vmatprep.subr.mxu0 0.0
    %3663 = vmatpush1.xpose.msra.mxu0 0.0
    %3664 = vmatprep.subr.mxu0 0.0
    %3665 = vmatpush1.xpose.msra.mxu0 0.0
    %3666 = vmatprep.subr.mxu0 0.0
    %3667 = vmatpush1.xpose.msra.mxu0 0.0
    %3668 = vmatprep.subr.mxu0 0.0
    %3669 = vmatpush1.xpose.msra.mxu0 0.0
    %3670 = vmatprep.subr.mxu0 0.0
    %3671 = vmatpush1.xpose.msra.mxu0 0.0
    %3672 = vmatprep.subr.mxu0 0.0
    %3673 = vmatpush1.xpose.msra.mxu0 0.0
    %3674 = vmatprep.subr.mxu0 0.0
    %3675 = vmatpush1.xpose.msra.mxu0 0.0
    %3676 = vmatprep.subr.mxu0 0.0
    %3677 = vmatpush1.xpose.msra.mxu0 0.0
    %3678 = vmatprep.subr.mxu0 0.0
    %3679 = vmatpush1.xpose.msra.mxu0 0.0
    %3680 = vmatprep.subr.mxu0 0.0
    %3681 = vmatpush1.xpose.msra.mxu0 0.0
    %3682 = vmatprep.subr.mxu0 0.0
    %3683 = vmatpush1.xpose.msra.mxu0 0.0
    %3684 = vmatprep.subr.mxu0 0.0
    %3685 = vmatpush1.xpose.msra.mxu0 0.0
    %3686 = vmatprep.subr.mxu0 0.0
    %3687 = vmatpush1.xpose.msra.mxu0 0.0
    %3688 = vmatprep.subr.mxu0 0.0
    %3689 = vmatpush1.xpose.msra.mxu0 0.0
    %3690 = vmatprep.subr.mxu0 0.0
    %3691 = vmatpush1.xpose.msra.mxu0 0.0
    %3692 = vmatprep.subr.mxu0 0.0
    %3693 = vmatpush1.xpose.msra.mxu0 0.0
    %3694 = vmatprep.subr.mxu0 0.0
    %3695 = vmatpush1.xpose.msra.mxu0 0.0
    %3696 = vmatprep.subr.mxu0 0.0
    %3697 = vmatpush1.xpose.msra.mxu0 0.0
    %3698 = vmatprep.subr.mxu0 0.0
    %3699 = vmatpush1.xpose.msra.mxu0 0.0
    %3700 = vmatprep.subr.mxu0 0.0
    %3701 = vmatpush1.xpose.msra.mxu0 0.0
    %3702 = vmatprep.subr.mxu0 0.0
    %3703 = vmatpush1.xpose.msra.mxu0 0.0
    %3704 = vmatprep.subr.mxu0 0.0
    %3705 = vmatpush1.xpose.msra.mxu0 0.0
    %3706 = vmatprep.subr.mxu0 0.0
    %3707 = vmatpush1.xpose.msra.mxu0 0.0
    %3708 = vmatprep.subr.mxu0 0.0
    %3709 = vmatpush1.xpose.msra.mxu0 0.0
    %3710 = vmatprep.subr.mxu0 0.0
    %3711 = vmatpush1.xpose.msra.mxu0 0.0
    %3712 = vmatprep.subr.mxu0 0.0
    %3713 = vmatpush1.xpose.msra.mxu0 0.0
    %3714 = vmatprep.subr.mxu0 0.0
    %3715 = vmatpush1.xpose.msra.mxu0 0.0
    %3716 = vmatprep.mubr.f32.mxu0 %v871
    %3717 = vmatmul.mubr.f32.gmra.mrb[0].mxu0 %v870
    %v3718 = vpop.f32.mrb[0].mxu0
    %v3719 = vadd.f32 %v3634, %v3718
    %v3720 = vpop.f32.mrb[0].mxu0
    %3721 = vmatprep.mubr.f32.mxu0 %v935
    %3722 = vmatmul.mubr.f32.gmra.mrb[0].mxu0 %v934
    %v3723 = vpop.f32.mrb[0].mxu0
    %v3724 = vadd.f32 %v3639, %v3723
    %v3725 = vpop.f32.mrb[0].mxu0
    %3726 = vmatprep.mubr.f32.mxu0 %v999
    %3727 = vmatmul.mubr.f32.gmra.mrb[0].mxu0 %v998
    %v3728 = vpop.f32.mrb[0].mxu0
    %v3729 = vadd.f32 %v3644, %v3728
    %v3730 = vpop.f32.mrb[0].mxu0
    %3731 = vmatprep.mubr.f32.mxu0 %v1063
    %3732 = vmatmul.mubr.f32.gmra.mrb[0].mxu0 %v1062
    %v3733 = vpop.f32.mrb[0].mxu0
    %v3734 = vadd.f32 %v3649, %v3733
    %v3735 = vpop.f32.mrb[0].mxu0
    %3736 = vdwg.mxu0
    %3737 = vmatprep.subr.mxu0 %v1343
    %3738 = vmatpush1.xpose.msra.mxu0 %v1341
    %3739 = vmatprep.subr.mxu0 0.0
    %3740 = vmatpush1.xpose.msra.mxu0 0.0
    %3741 = vmatprep.subr.mxu0 0.0
    %3742 = vmatpush1.xpose.msra.mxu0 0.0
    %3743 = vmatprep.subr.mxu0 0.0
    %3744 = vmatpush1.xpose.msra.mxu0 0.0
    %3745 = vmatprep.subr.mxu0 0.0
    %3746 = vmatpush1.xpose.msra.mxu0 0.0
    %3747 = vmatprep.subr.mxu0 0.0
    %3748 = vmatpush1.xpose.msra.mxu0 0.0
    %3749 = vmatprep.subr.mxu0 0.0
    %3750 = vmatpush1.xpose.msra.mxu0 0.0
    %3751 = vmatprep.subr.mxu0 0.0
    %3752 = vmatpush1.xpose.msra.mxu0 0.0
    %3753 = vmatprep.subr.mxu0 0.0
    %3754 = vmatpush1.xpose.msra.mxu0 0.0
    %3755 = vmatprep.subr.mxu0 0.0
    %3756 = vmatpush1.xpose.msra.mxu0 0.0
    %3757 = vmatprep.subr.mxu0 0.0
    %3758 = vmatpush1.xpose.msra.mxu0 0.0
    %3759 = vmatprep.subr.mxu0 0.0
    %3760 = vmatpush1.xpose.msra.mxu0 0.0
    %3761 = vmatprep.subr.mxu0 0.0
    %3762 = vmatpush1.xpose.msra.mxu0 0.0
    %3763 = vmatprep.subr.mxu0 0.0
    %3764 = vmatpush1.xpose.msra.mxu0 0.0
    %3765 = vmatprep.subr.mxu0 0.0
    %3766 = vmatpush1.xpose.msra.mxu0 0.0
    %3767 = vmatprep.subr.mxu0 0.0
    %3768 = vmatpush1.xpose.msra.mxu0 0.0
    %3769 = vmatprep.subr.mxu0 0.0
    %3770 = vmatpush1.xpose.msra.mxu0 0.0
    %3771 = vmatprep.subr.mxu0 0.0
    %3772 = vmatpush1.xpose.msra.mxu0 0.0
    %3773 = vmatprep.subr.mxu0 0.0
    %3774 = vmatpush1.xpose.msra.mxu0 0.0
    %3775 = vmatprep.subr.mxu0 0.0
    %3776 = vmatpush1.xpose.msra.mxu0 0.0
    %3777 = vmatprep.subr.mxu0 0.0
    %3778 = vmatpush1.xpose.msra.mxu0 0.0
    %3779 = vmatprep.subr.mxu0 0.0
    %3780 = vmatpush1.xpose.msra.mxu0 0.0
    %3781 = vmatprep.subr.mxu0 0.0
    %3782 = vmatpush1.xpose.msra.mxu0 0.0
    %3783 = vmatprep.subr.mxu0 0.0
    %3784 = vmatpush1.xpose.msra.mxu0 0.0
    %3785 = vmatprep.subr.mxu0 0.0
    %3786 = vmatpush1.xpose.msra.mxu0 0.0
    %3787 = vmatprep.subr.mxu0 0.0
    %3788 = vmatpush1.xpose.msra.mxu0 0.0
    %3789 = vmatprep.subr.mxu0 0.0
    %3790 = vmatpush1.xpose.msra.mxu0 0.0
    %3791 = vmatprep.subr.mxu0 0.0
    %3792 = vmatpush1.xpose.msra.mxu0 0.0
    %3793 = vmatprep.subr.mxu0 0.0
    %3794 = vmatpush1.xpose.msra.mxu0 0.0
    %3795 = vmatprep.subr.mxu0 0.0
    %3796 = vmatpush1.xpose.msra.mxu0 0.0
    %3797 = vmatprep.subr.mxu0 0.0
    %3798 = vmatpush1.xpose.msra.mxu0 0.0
    %3799 = vmatprep.subr.mxu0 0.0
    %3800 = vmatpush1.xpose.msra.mxu0 0.0
    %3801 = vmatprep.mubr.f32.mxu0 %v873
    %3802 = vmatmul.mubr.f32.gmra.mrb[0].mxu0 %v872
    %v3803 = vpop.f32.mrb[0].mxu0
    %v3804 = vadd.f32 %v3719, %v3803
    %v3805 = vpop.f32.mrb[0].mxu0
    %3806 = vmatprep.mubr.f32.mxu0 %v937
    %3807 = vmatmul.mubr.f32.gmra.mrb[0].mxu0 %v936
    %v3808 = vpop.f32.mrb[0].mxu0
    %v3809 = vadd.f32 %v3724, %v3808
    %v3810 = vpop.f32.mrb[0].mxu0
    %3811 = vmatprep.mubr.f32.mxu0 %v1001
    %3812 = vmatmul.mubr.f32.gmra.mrb[0].mxu0 %v1000
    %v3813 = vpop.f32.mrb[0].mxu0
    %v3814 = vadd.f32 %v3729, %v3813
    %v3815 = vpop.f32.mrb[0].mxu0
    %3816 = vmatprep.mubr.f32.mxu0 %v1065
    %3817 = vmatmul.mubr.f32.gmra.mrb[0].mxu0 %v1064
    %v3818 = vpop.f32.mrb[0].mxu0
    %v3819 = vadd.f32 %v3734, %v3818
    %v3820 = vpop.f32.mrb[0].mxu0
    %3821 = vdwg.mxu0
    %3822 = vmatprep.subr.mxu0 %v1359
    %3823 = vmatpush1.xpose.msra.mxu0 %v1351
    %3824 = vmatprep.subr.mxu0 0.0
    %3825 = vmatpush1.xpose.msra.mxu0 0.0
    %3826 = vmatprep.subr.mxu0 0.0
    %3827 = vmatpush1.xpose.msra.mxu0 0.0
    %3828 = vmatprep.subr.mxu0 0.0
    %3829 = vmatpush1.xpose.msra.mxu0 0.0
    %3830 = vmatprep.subr.mxu0 0.0
    %3831 = vmatpush1.xpose.msra.mxu0 0.0
    %3832 = vmatprep.subr.mxu0 0.0
    %3833 = vmatpush1.xpose.msra.mxu0 0.0
    %3834 = vmatprep.subr.mxu0 0.0
    %3835 = vmatpush1.xpose.msra.mxu0 0.0
    %3836 = vmatprep.subr.mxu0 0.0
    %3837 = vmatpush1.xpose.msra.mxu0 0.0
    %3838 = vmatprep.subr.mxu0 0.0
    %3839 = vmatpush1.xpose.msra.mxu0 0.0
    %3840 = vmatprep.subr.mxu0 0.0
    %3841 = vmatpush1.xpose.msra.mxu0 0.0
    %3842 = vmatprep.subr.mxu0 0.0
    %3843 = vmatpush1.xpose.msra.mxu0 0.0
    %3844 = vmatprep.subr.mxu0 0.0
    %3845 = vmatpush1.xpose.msra.mxu0 0.0
    %3846 = vmatprep.subr.mxu0 0.0
    %3847 = vmatpush1.xpose.msra.mxu0 0.0
    %3848 = vmatprep.subr.mxu0 0.0
    %3849 = vmatpush1.xpose.msra.mxu0 0.0
    %3850 = vmatprep.subr.mxu0 0.0
    %3851 = vmatpush1.xpose.msra.mxu0 0.0
    %3852 = vmatprep.subr.mxu0 0.0
    %3853 = vmatpush1.xpose.msra.mxu0 0.0
    %3854 = vmatprep.subr.mxu0 0.0
    %3855 = vmatpush1.xpose.msra.mxu0 0.0
    %3856 = vmatprep.subr.mxu0 0.0
    %3857 = vmatpush1.xpose.msra.mxu0 0.0
    %3858 = vmatprep.subr.mxu0 0.0
    %3859 = vmatpush1.xpose.msra.mxu0 0.0
    %3860 = vmatprep.subr.mxu0 0.0
    %3861 = vmatpush1.xpose.msra.mxu0 0.0
    %3862 = vmatprep.subr.mxu0 0.0
    %3863 = vmatpush1.xpose.msra.mxu0 0.0
    %3864 = vmatprep.subr.mxu0 0.0
    %3865 = vmatpush1.xpose.msra.mxu0 0.0
    %3866 = vmatprep.subr.mxu0 0.0
    %3867 = vmatpush1.xpose.msra.mxu0 0.0
    %3868 = vmatprep.subr.mxu0 0.0
    %3869 = vmatpush1.xpose.msra.mxu0 0.0
    %3870 = vmatprep.subr.mxu0 0.0
    %3871 = vmatpush1.xpose.msra.mxu0 0.0
    %3872 = vmatprep.subr.mxu0 0.0
    %3873 = vmatpush1.xpose.msra.mxu0 0.0
    %3874 = vmatprep.subr.mxu0 0.0
    %3875 = vmatpush1.xpose.msra.mxu0 0.0
    %3876 = vmatprep.subr.mxu0 0.0
    %3877 = vmatpush1.xpose.msra.mxu0 0.0
    %3878 = vmatprep.subr.mxu0 0.0
    %3879 = vmatpush1.xpose.msra.mxu0 0.0
    %3880 = vmatprep.subr.mxu0 0.0
    %3881 = vmatpush1.xpose.msra.mxu0 0.0
    %3882 = vmatprep.subr.mxu0 0.0
    %3883 = vmatpush1.xpose.msra.mxu0 0.0
    %3884 = vmatprep.subr.mxu0 0.0
    %3885 = vmatpush1.xpose.msra.mxu0 0.0
    %3886 = vmatprep.mubr.f32.mxu0 %v875
    %3887 = vmatmul.mubr.f32.gmra.mrb[0].mxu0 %v874
    %v3888 = vpop.f32.mrb[0].mxu0
    %v3889 = vadd.f32 %v3804, %v3888
    %v3890 = vpop.f32.mrb[0].mxu0
    %3891 = vmatprep.mubr.f32.mxu0 %v939
    %3892 = vmatmul.mubr.f32.gmra.mrb[0].mxu0 %v938
    %v3893 = vpop.f32.mrb[0].mxu0
    %v3894 = vadd.f32 %v3809, %v3893
    %v3895 = vpop.f32.mrb[0].mxu0
    %3896 = vmatprep.mubr.f32.mxu0 %v1003
    %3897 = vmatmul.mubr.f32.gmra.mrb[0].mxu0 %v1002
    %v3898 = vpop.f32.mrb[0].mxu0
    %v3899 = vadd.f32 %v3814, %v3898
    %v3900 = vpop.f32.mrb[0].mxu0
    %3901 = vmatprep.mubr.f32.mxu0 %v1067
    %3902 = vmatmul.mubr.f32.gmra.mrb[0].mxu0 %v1066
    %v3903 = vpop.f32.mrb[0].mxu0
    %v3904 = vadd.f32 %v3819, %v3903
    %v3905 = vpop.f32.mrb[0].mxu0
    %3906 = vdwg.mxu0
    %3907 = vmatprep.subr.mxu0 %v1360
    %3908 = vmatpush1.xpose.msra.mxu0 %v1358
    %3909 = vmatprep.subr.mxu0 0.0
    %3910 = vmatpush1.xpose.msra.mxu0 0.0
    %3911 = vmatprep.subr.mxu0 0.0
    %3912 = vmatpush1.xpose.msra.mxu0 0.0
    %3913 = vmatprep.subr.mxu0 0.0
    %3914 = vmatpush1.xpose.msra.mxu0 0.0
    %3915 = vmatprep.subr.mxu0 0.0
    %3916 = vmatpush1.xpose.msra.mxu0 0.0
    %3917 = vmatprep.subr.mxu0 0.0
    %3918 = vmatpush1.xpose.msra.mxu0 0.0
    %3919 = vmatprep.subr.mxu0 0.0
    %3920 = vmatpush1.xpose.msra.mxu0 0.0
    %3921 = vmatprep.subr.mxu0 0.0
    %3922 = vmatpush1.xpose.msra.mxu0 0.0
    %3923 = vmatprep.subr.mxu0 0.0
    %3924 = vmatpush1.xpose.msra.mxu0 0.0
    %3925 = vmatprep.subr.mxu0 0.0
    %3926 = vmatpush1.xpose.msra.mxu0 0.0
    %3927 = vmatprep.subr.mxu0 0.0
    %3928 = vmatpush1.xpose.msra.mxu0 0.0
    %3929 = vmatprep.subr.mxu0 0.0
    %3930 = vmatpush1.xpose.msra.mxu0 0.0
    %3931 = vmatprep.subr.mxu0 0.0
    %3932 = vmatpush1.xpose.msra.mxu0 0.0
    %3933 = vmatprep.subr.mxu0 0.0
    %3934 = vmatpush1.xpose.msra.mxu0 0.0
    %3935 = vmatprep.subr.mxu0 0.0
    %3936 = vmatpush1.xpose.msra.mxu0 0.0
    %3937 = vmatprep.subr.mxu0 0.0
    %3938 = vmatpush1.xpose.msra.mxu0 0.0
    %3939 = vmatprep.subr.mxu0 0.0
    %3940 = vmatpush1.xpose.msra.mxu0 0.0
    %3941 = vmatprep.subr.mxu0 0.0
    %3942 = vmatpush1.xpose.msra.mxu0 0.0
    %3943 = vmatprep.subr.mxu0 0.0
    %3944 = vmatpush1.xpose.msra.mxu0 0.0
    %3945 = vmatprep.subr.mxu0 0.0
    %3946 = vmatpush1.xpose.msra.mxu0 0.0
    %3947 = vmatprep.subr.mxu0 0.0
    %3948 = vmatpush1.xpose.msra.mxu0 0.0
    %3949 = vmatprep.subr.mxu0 0.0
    %3950 = vmatpush1.xpose.msra.mxu0 0.0
    %3951 = vmatprep.subr.mxu0 0.0
    %3952 = vmatpush1.xpose.msra.mxu0 0.0
    %3953 = vmatprep.subr.mxu0 0.0
    %3954 = vmatpush1.xpose.msra.mxu0 0.0
    %3955 = vmatprep.subr.mxu0 0.0
    %3956 = vmatpush1.xpose.msra.mxu0 0.0
    %3957 = vmatprep.subr.mxu0 0.0
    %3958 = vmatpush1.xpose.msra.mxu0 0.0
    %3959 = vmatprep.subr.mxu0 0.0
    %3960 = vmatpush1.xpose.msra.mxu0 0.0
    %3961 = vmatprep.subr.mxu0 0.0
    %3962 = vmatpush1.xpose.msra.mxu0 0.0
    %3963 = vmatprep.subr.mxu0 0.0
    %3964 = vmatpush1.xpose.msra.mxu0 0.0
    %3965 = vmatprep.subr.mxu0 0.0
    %3966 = vmatpush1.xpose.msra.mxu0 0.0
    %3967 = vmatprep.subr.mxu0 0.0
    %3968 = vmatpush1.xpose.msra.mxu0 0.0
    %3969 = vmatprep.subr.mxu0 0.0
    %3970 = vmatpush1.xpose.msra.mxu0 0.0
    %3971 = vmatprep.mubr.f32.mxu0 %v877
    %3972 = vmatmul.mubr.f32.gmra.mrb[0].mxu0 %v876
    %v3973 = vpop.f32.mrb[0].mxu0
    %v3974 = vadd.f32 %v3889, %v3973
    %v3975 = vpop.f32.mrb[0].mxu0
    %3976 = vmatprep.mubr.f32.mxu0 %v941
    %3977 = vmatmul.mubr.f32.gmra.mrb[0].mxu0 %v940
    %v3978 = vpop.f32.mrb[0].mxu0
    %v3979 = vadd.f32 %v3894, %v3978
    %v3980 = vpop.f32.mrb[0].mxu0
    %3981 = vmatprep.mubr.f32.mxu0 %v1005
    %3982 = vmatmul.mubr.f32.gmra.mrb[0].mxu0 %v1004
    %v3983 = vpop.f32.mrb[0].mxu0
    %v3984 = vadd.f32 %v3899, %v3983
    %v3985 = vpop.f32.mrb[0].mxu0
    %3986 = vmatprep.mubr.f32.mxu0 %v1069
    %3987 = vmatmul.mubr.f32.gmra.mrb[0].mxu0 %v1068
    %v3988 = vpop.f32.mrb[0].mxu0
    %v3989 = vadd.f32 %v3904, %v3988
    %v3990 = vpop.f32.mrb[0].mxu0
    %3991 = vdwg.mxu0
    %3992 = vmatprep.subr.mxu0 %v1376
    %3993 = vmatpush1.xpose.msra.mxu0 %v1368
    %3994 = vmatprep.subr.mxu0 0.0
    %3995 = vmatpush1.xpose.msra.mxu0 0.0
    %3996 = vmatprep.subr.mxu0 0.0
    %3997 = vmatpush1.xpose.msra.mxu0 0.0
    %3998 = vmatprep.subr.mxu0 0.0
    %3999 = vmatpush1.xpose.msra.mxu0 0.0
    %4000 = vmatprep.subr.mxu0 0.0
    %4001 = vmatpush1.xpose.msra.mxu0 0.0
    %4002 = vmatprep.subr.mxu0 0.0
    %4003 = vmatpush1.xpose.msra.mxu0 0.0
    %4004 = vmatprep.subr.mxu0 0.0
    %4005 = vmatpush1.xpose.msra.mxu0 0.0
    %4006 = vmatprep.subr.mxu0 0.0
    %4007 = vmatpush1.xpose.msra.mxu0 0.0
    %4008 = vmatprep.subr.mxu0 0.0
    %4009 = vmatpush1.xpose.msra.mxu0 0.0
    %4010 = vmatprep.subr.mxu0 0.0
    %4011 = vmatpush1.xpose.msra.mxu0 0.0
    %4012 = vmatprep.subr.mxu0 0.0
    %4013 = vmatpush1.xpose.msra.mxu0 0.0
    %4014 = vmatprep.subr.mxu0 0.0
    %4015 = vmatpush1.xpose.msra.mxu0 0.0
    %4016 = vmatprep.subr.mxu0 0.0
    %4017 = vmatpush1.xpose.msra.mxu0 0.0
    %4018 = vmatprep.subr.mxu0 0.0
    %4019 = vmatpush1.xpose.msra.mxu0 0.0
    %4020 = vmatprep.subr.mxu0 0.0
    %4021 = vmatpush1.xpose.msra.mxu0 0.0
    %4022 = vmatprep.subr.mxu0 0.0
    %4023 = vmatpush1.xpose.msra.mxu0 0.0
    %4024 = vmatprep.subr.mxu0 0.0
    %4025 = vmatpush1.xpose.msra.mxu0 0.0
    %4026 = vmatprep.subr.mxu0 0.0
    %4027 = vmatpush1.xpose.msra.mxu0 0.0
    %4028 = vmatprep.subr.mxu0 0.0
    %4029 = vmatpush1.xpose.msra.mxu0 0.0
    %4030 = vmatprep.subr.mxu0 0.0
    %4031 = vmatpush1.xpose.msra.mxu0 0.0
    %4032 = vmatprep.subr.mxu0 0.0
    %4033 = vmatpush1.xpose.msra.mxu0 0.0
    %4034 = vmatprep.subr.mxu0 0.0
    %4035 = vmatpush1.xpose.msra.mxu0 0.0
    %4036 = vmatprep.subr.mxu0 0.0
    %4037 = vmatpush1.xpose.msra.mxu0 0.0
    %4038 = vmatprep.subr.mxu0 0.0
    %4039 = vmatpush1.xpose.msra.mxu0 0.0
    %4040 = vmatprep.subr.mxu0 0.0
    %4041 = vmatpush1.xpose.msra.mxu0 0.0
    %4042 = vmatprep.subr.mxu0 0.0
    %4043 = vmatpush1.xpose.msra.mxu0 0.0
    %4044 = vmatprep.subr.mxu0 0.0
    %4045 = vmatpush1.xpose.msra.mxu0 0.0
    %4046 = vmatprep.subr.mxu0 0.0
    %4047 = vmatpush1.xpose.msra.mxu0 0.0
    %4048 = vmatprep.subr.mxu0 0.0
    %4049 = vmatpush1.xpose.msra.mxu0 0.0
    %4050 = vmatprep.subr.mxu0 0.0
    %4051 = vmatpush1.xpose.msra.mxu0 0.0
    %4052 = vmatprep.subr.mxu0 0.0
    %4053 = vmatpush1.xpose.msra.mxu0 0.0
    %4054 = vmatprep.subr.mxu0 0.0
    %4055 = vmatpush1.xpose.msra.mxu0 0.0
    %4056 = vmatprep.mubr.f32.mxu0 %v879
    %4057 = vmatmul.mubr.f32.gmra.mrb[0].mxu0 %v878
    %v4058 = vpop.f32.mrb[0].mxu0
    %v4059 = vadd.f32 %v3974, %v4058
    %v4060 = vpop.f32.mrb[0].mxu0
    %4061 = vmatprep.mubr.f32.mxu0 %v943
    %4062 = vmatmul.mubr.f32.gmra.mrb[0].mxu0 %v942
    %v4063 = vpop.f32.mrb[0].mxu0
    %v4064 = vadd.f32 %v3979, %v4063
    %v4065 = vpop.f32.mrb[0].mxu0
    %4066 = vmatprep.mubr.f32.mxu0 %v1007
    %4067 = vmatmul.mubr.f32.gmra.mrb[0].mxu0 %v1006
    %v4068 = vpop.f32.mrb[0].mxu0
    %v4069 = vadd.f32 %v3984, %v4068
    %v4070 = vpop.f32.mrb[0].mxu0
    %4071 = vmatprep.mubr.f32.mxu0 %v1071
    %4072 = vmatmul.mubr.f32.gmra.mrb[0].mxu0 %v1070
    %v4073 = vpop.f32.mrb[0].mxu0
    %v4074 = vadd.f32 %v3989, %v4073
    %v4075 = vpop.f32.mrb[0].mxu0
    %4076 = vdwg.mxu0
    %4077 = vmatprep.subr.mxu0 %v1377
    %4078 = vmatpush1.xpose.msra.mxu0 %v1375
    %4079 = vmatprep.subr.mxu0 0.0
    %4080 = vmatpush1.xpose.msra.mxu0 0.0
    %4081 = vmatprep.subr.mxu0 0.0
    %4082 = vmatpush1.xpose.msra.mxu0 0.0
    %4083 = vmatprep.subr.mxu0 0.0
    %4084 = vmatpush1.xpose.msra.mxu0 0.0
    %4085 = vmatprep.subr.mxu0 0.0
    %4086 = vmatpush1.xpose.msra.mxu0 0.0
    %4087 = vmatprep.subr.mxu0 0.0
    %4088 = vmatpush1.xpose.msra.mxu0 0.0
    %4089 = vmatprep.subr.mxu0 0.0
    %4090 = vmatpush1.xpose.msra.mxu0 0.0
    %4091 = vmatprep.subr.mxu0 0.0
    %4092 = vmatpush1.xpose.msra.mxu0 0.0
    %4093 = vmatprep.subr.mxu0 0.0
    %4094 = vmatpush1.xpose.msra.mxu0 0.0
    %4095 = vmatprep.subr.mxu0 0.0
    %4096 = vmatpush1.xpose.msra.mxu0 0.0
    %4097 = vmatprep.subr.mxu0 0.0
    %4098 = vmatpush1.xpose.msra.mxu0 0.0
    %4099 = vmatprep.subr.mxu0 0.0
    %4100 = vmatpush1.xpose.msra.mxu0 0.0
    %4101 = vmatprep.subr.mxu0 0.0
    %4102 = vmatpush1.xpose.msra.mxu0 0.0
    %4103 = vmatprep.subr.mxu0 0.0
    %4104 = vmatpush1.xpose.msra.mxu0 0.0
    %4105 = vmatprep.subr.mxu0 0.0
    %4106 = vmatpush1.xpose.msra.mxu0 0.0
    %4107 = vmatprep.subr.mxu0 0.0
    %4108 = vmatpush1.xpose.msra.mxu0 0.0
    %4109 = vmatprep.subr.mxu0 0.0
    %4110 = vmatpush1.xpose.msra.mxu0 0.0
    %4111 = vmatprep.subr.mxu0 0.0
    %4112 = vmatpush1.xpose.msra.mxu0 0.0
    %4113 = vmatprep.subr.mxu0 0.0
    %4114 = vmatpush1.xpose.msra.mxu0 0.0
    %4115 = vmatprep.subr.mxu0 0.0
    %4116 = vmatpush1.xpose.msra.mxu0 0.0
    %4117 = vmatprep.subr.mxu0 0.0
    %4118 = vmatpush1.xpose.msra.mxu0 0.0
    %4119 = vmatprep.subr.mxu0 0.0
    %4120 = vmatpush1.xpose.msra.mxu0 0.0
    %4121 = vmatprep.subr.mxu0 0.0
    %4122 = vmatpush1.xpose.msra.mxu0 0.0
    %4123 = vmatprep.subr.mxu0 0.0
    %4124 = vmatpush1.xpose.msra.mxu0 0.0
    %4125 = vmatprep.subr.mxu0 0.0
    %4126 = vmatpush1.xpose.msra.mxu0 0.0
    %4127 = vmatprep.subr.mxu0 0.0
    %4128 = vmatpush1.xpose.msra.mxu0 0.0
    %4129 = vmatprep.subr.mxu0 0.0
    %4130 = vmatpush1.xpose.msra.mxu0 0.0
    %4131 = vmatprep.subr.mxu0 0.0
    %4132 = vmatpush1.xpose.msra.mxu0 0.0
    %4133 = vmatprep.subr.mxu0 0.0
    %4134 = vmatpush1.xpose.msra.mxu0 0.0
    %4135 = vmatprep.subr.mxu0 0.0
    %4136 = vmatpush1.xpose.msra.mxu0 0.0
    %4137 = vmatprep.subr.mxu0 0.0
    %4138 = vmatpush1.xpose.msra.mxu0 0.0
    %4139 = vmatprep.subr.mxu0 0.0
    %4140 = vmatpush1.xpose.msra.mxu0 0.0
    %4141 = vmatprep.mubr.f32.mxu0 %v881
    %4142 = vmatmul.mubr.f32.gmra.mrb[0].mxu0 %v880
    %v4143 = vpop.f32.mrb[0].mxu0
    %v4144 = vadd.f32 %v4059, %v4143
    %v4145 = vpop.f32.mrb[0].mxu0
    %4146 = vmatprep.mubr.f32.mxu0 %v945
    %4147 = vmatmul.mubr.f32.gmra.mrb[0].mxu0 %v944
    %v4148 = vpop.f32.mrb[0].mxu0
    %v4149 = vadd.f32 %v4064, %v4148
    %v4150 = vpop.f32.mrb[0].mxu0
    %4151 = vmatprep.mubr.f32.mxu0 %v1009
    %4152 = vmatmul.mubr.f32.gmra.mrb[0].mxu0 %v1008
    %v4153 = vpop.f32.mrb[0].mxu0
    %v4154 = vadd.f32 %v4069, %v4153
    %v4155 = vpop.f32.mrb[0].mxu0
    %4156 = vmatprep.mubr.f32.mxu0 %v1073
    %4157 = vmatmul.mubr.f32.gmra.mrb[0].mxu0 %v1072
    %v4158 = vpop.f32.mrb[0].mxu0
    %v4159 = vadd.f32 %v4074, %v4158
    %v4160 = vpop.f32.mrb[0].mxu0
    %4161 = vdwg.mxu0
    %vm4162 = vcmask 15360
    %4163 = vst.msk [vmem:[%s6] sm:$0xff] %vm4162, %v4144
    %4164 = vst.msk [vmem:[%s6 + $0x8] sm:$0xff] %vm4162, %v4149
    %4165 = vst.msk [vmem:[%s6 + $0x10] sm:$0xff] %vm4162, %v4154
    %4166 = vst.msk [vmem:[%s6 + $0x18] sm:$0xff] %vm4162, %v4159
    %v4167 = vld [vmem:[%s4] sm:$0xf]
    %v4168 = vld [vmem:[%s5] sm:$0xf]
    %4170 = vset.pattern.permute.xlu0 0
    %4171 = vperm.xlu0 %4170, %v4168
    %v4172 = vpop.permute.xlu0 %4171
    %vm4174 = vcmask 261120
    %v4176 = vsel %vm4174, %v4167, 0
    %4178 = vmatprep.subr.mxu0 0.0
    %4179 = vmatpush1.msra.mxu0 %v4144
    %4180 = vmatprep.subr.mxu0 0.0
    %4181 = vmatpush1.msra.mxu0 %v4149
    %4182 = vmatprep.subr.mxu0 0.0
    %4183 = vmatpush1.msra.mxu0 %v4154
    %4184 = vmatprep.subr.mxu0 0.0
    %4185 = vmatpush1.msra.mxu0 %v4159
    %4186 = vmatprep.subr.mxu0 0.0
    %4187 = vmatpush1.msra.mxu0 0.0
    %4188 = vmatprep.subr.mxu0 0.0
    %4189 = vmatpush1.msra.mxu0 0.0
    %4190 = vmatprep.subr.mxu0 0.0
    %4191 = vmatpush1.msra.mxu0 0.0
    %4192 = vmatprep.subr.mxu0 0.0
    %4193 = vmatpush1.msra.mxu0 0.0
    %4194 = vmatprep.subr.mxu0 0.0
    %4195 = vmatpush1.msra.mxu0 0.0
    %4196 = vmatprep.subr.mxu0 0.0
    %4197 = vmatpush1.msra.mxu0 0.0
    %4198 = vmatprep.subr.mxu0 0.0
    %4199 = vmatpush1.msra.mxu0 0.0
    %4200 = vmatprep.subr.mxu0 0.0
    %4201 = vmatpush1.msra.mxu0 0.0
    %4202 = vmatprep.subr.mxu0 0.0
    %4203 = vmatpush1.msra.mxu0 0.0
    %4204 = vmatprep.subr.mxu0 0.0
    %4205 = vmatpush1.msra.mxu0 0.0
    %4206 = vmatprep.subr.mxu0 0.0
    %4207 = vmatpush1.msra.mxu0 0.0
    %4208 = vmatprep.subr.mxu0 0.0
    %4209 = vmatpush1.msra.mxu0 0.0
    %4210 = vmatprep.subr.mxu0 0.0
    %4211 = vmatpush1.msra.mxu0 0.0
    %4212 = vmatprep.subr.mxu0 0.0
    %4213 = vmatpush1.msra.mxu0 0.0
    %4214 = vmatprep.subr.mxu0 0.0
    %4215 = vmatpush1.msra.mxu0 0.0
    %4216 = vmatprep.subr.mxu0 0.0
    %4217 = vmatpush1.msra.mxu0 0.0
    %4218 = vmatprep.subr.mxu0 0.0
    %4219 = vmatpush1.msra.mxu0 0.0
    %4220 = vmatprep.subr.mxu0 0.0
    %4221 = vmatpush1.msra.mxu0 0.0
    %4222 = vmatprep.subr.mxu0 0.0
    %4223 = vmatpush1.msra.mxu0 0.0
    %4224 = vmatprep.subr.mxu0 0.0
    %4225 = vmatpush1.msra.mxu0 0.0
    %4226 = vmatprep.subr.mxu0 0.0
    %4227 = vmatpush1.msra.mxu0 0.0
    %4228 = vmatprep.subr.mxu0 0.0
    %4229 = vmatpush1.msra.mxu0 0.0
    %4230 = vmatprep.subr.mxu0 0.0
    %4231 = vmatpush1.msra.mxu0 0.0
    %4232 = vmatprep.subr.mxu0 0.0
    %4233 = vmatpush1.msra.mxu0 0.0
    %4234 = vmatprep.subr.mxu0 0.0
    %4235 = vmatpush1.msra.mxu0 0.0
    %4236 = vmatprep.subr.mxu0 0.0
    %4237 = vmatpush1.msra.mxu0 0.0
    %4238 = vmatprep.subr.mxu0 0.0
    %4239 = vmatpush1.msra.mxu0 0.0
    %4240 = vmatprep.subr.mxu0 0.0
    %4241 = vmatpush1.msra.mxu0 0.0
    %4242 = vmatprep.mubr.f32.mxu0 0.0
    %4243 = vmatmul.mubr.f32.gmra.mrb[0].mxu0 %v4176
    %v4244 = vpop.f32.mrb[0].mxu0
    %v4245 = vadd.f32 %v4172, %v4244
    %v4246 = vpop.f32.mrb[0].mxu0
    %4247 = vdwg.mxu0
    %vm4248 = vcmask 11264
    %4249 = vst.msk [vmem:[%s7] sm:$0xf] %vm4248, %v4245
    // Predicated region
    $region34: #{iclassifier_forward.1} parent=1 // pred_check
      _
    $region35: #{iclassifier_forward.1} parent=1 // pred_check_branch
      %4251 = sbr.rel (0) target = $region37
    $region36: #{iclassifier_forward.1} parent=1 // pred_region
      _
    $region37: #{iclassifier_forward.1} parent=1 // pred_fallthru
      _
    // Predicated region
    $region38: #{iclassifier_forward.1} parent=1 // pred_check
      _
    $region39: #{iclassifier_forward.1} parent=1 // pred_check_branch
      %4253 = sbr.rel (0) target = $region41
    $region40: #{iclassifier_forward.1} parent=1 // pred_region
      _
    $region41: #{iclassifier_forward.1} parent=1 // pred_fallthru
      _
    // Predicated region
    $region42: #{iclassifier_forward.1} parent=1 // pred_check
      _
    $region43: #{iclassifier_forward.1} parent=1 // pred_check_branch
      %4255 = sbr.rel (0) target = $region45
    $region44: #{iclassifier_forward.1} parent=1 // pred_region
      _
    $region45: #{iclassifier_forward.1} parent=1 // pred_fallthru
      _
    // Predicated region
    $region46: #{iclassifier_forward.1} parent=1 // pred_check
      _
    $region47: #{iclassifier_forward.1} parent=1 // pred_check_branch
      %4257 = sbr.rel (0) target = $region49
    $region48: #{iclassifier_forward.1} parent=1 // pred_region
      _
    $region49: #{iclassifier_forward.1} parent=1 // pred_fallthru
      _
    %4258 = vsyncpa [#allocation4], 1
    %4259 = vsyncpa [#allocation6], 1

</llo_original>
